<compile_context>
chip_gen: v5e
topology: v5e:2x2
jax: 0.10.0
libtpu: 0.0.40
codegen_flags: <defaults>
</compile_context>

<pallas_src>
import math
import jax
import jax.numpy as jnp
from jax.experimental import pallas as pl
from jax.experimental.pallas import tpu as pltpu

# ---------------- configuration (configs.*) ----------------
B, N, L, P = 2, 4, 8, 4          # batch, nodes, seq_len, enc_in
BN = B * N
D_MODEL = 32                     # configs.d_model
N_HEADS = 2                      # configs.n_heads
D_HEAD = D_MODEL // N_HEADS
D_FF = 64                        # configs.d_ff
E_LAYERS = 2                     # configs.e_layers
D_MARK = 4                       # time-feature dim (embed='timeF', freq='h')
# activation = 'relu'; dropout inactive; output_attention=False

LOG2_L = L.bit_length() - 1
LOG2_NL = (N * L).bit_length() - 1
assert (1 << LOG2_L) == L and (1 << LOG2_NL) == N * L, "L and N*L must be powers of 2"


def _layer_norm(v, w, b, eps=1e-5):
    mu = jnp.mean(v, axis=-1, keepdims=True)
    var = jnp.mean((v - mu) ** 2, axis=-1, keepdims=True)
    return (v - mu) * jax.lax.rsqrt(var + eps) * w + b


def transformer_encoder_kernel(
    x_ref, xmark_ref, pos_ref,
    w_tok_ref, w_temp_ref,
    w_qkv_ref, b_qkv_ref, wo_ref, bo_ref, ln_ref,
    c1w_ref, c1b_ref, c2w_ref, c2b_ref, lnf_ref,
    out_ref,
):
    f32 = jnp.float32
    BNL = BN * L
    BL = B * L

    def dot(a, b):
        return jnp.dot(a, b, preferred_element_type=jnp.float32)

    # ---- constant permutation / mask / pooling matrices from 2-D iota ----
    ri = jax.lax.broadcasted_iota(jnp.int32, (BNL, BNL), 0)
    ci = jax.lax.broadcasted_iota(jnp.int32, (BNL, BNL), 1)
    same_seq = jnp.right_shift(ri, LOG2_L) == jnp.right_shift(ci, LOG2_L)
    ri_t = jnp.bitwise_and(ri, L - 1)
    ci_t = jnp.bitwise_and(ci, L - 1)
    prev_t = jnp.bitwise_and(ri_t + (L - 1), L - 1)   # (t - 1) mod L
    next_t = jnp.bitwise_and(ri_t + 1, L - 1)         # (t + 1) mod L
    perm_p1 = jnp.where(same_seq & (ci_t == prev_t), 1.0, 0.0).astype(f32)
    perm_m1 = jnp.where(same_seq & (ci_t == next_t), 1.0, 0.0).astype(f32)
    neg_mask = jnp.where(same_seq, 0.0, -1e9).astype(f32)   # block-diag attention mask

    pr = jax.lax.broadcasted_iota(jnp.int32, (BN, BNL), 0)
    pc = jax.lax.broadcasted_iota(jnp.int32, (BN, BNL), 1)
    pool = jnp.where(jnp.right_shift(pc, LOG2_L) == pr, 1.0 / L, 0.0).astype(f32)

    sr = jax.lax.broadcasted_iota(jnp.int32, (BNL, BL), 0)
    sc = jax.lax.broadcasted_iota(jnp.int32, (BNL, BL), 1)
    # stacked row i = (b*N + n)*L + t  ->  mark row b*L + t
    tgt = jnp.bitwise_or(
        jnp.left_shift(jnp.right_shift(sr, LOG2_NL), LOG2_L),
        jnp.bitwise_and(sr, L - 1))
    sel_mark = jnp.where(sc == tgt, 1.0, 0.0).astype(f32)

    # ---- DataEmbedding: circular Conv1d(k=3) + timeF linear + positional ----
    xr = x_ref[...]                                      # (BNL, P)
    tok = (dot(perm_p1, dot(xr, w_tok_ref[0]))           # tap 0 -> x[t-1]
           + dot(xr, w_tok_ref[1])                       # tap 1 -> x[t]
           + dot(perm_m1, dot(xr, w_tok_ref[2])))        # tap 2 -> x[t+1]
    emb_bt = dot(xmark_ref[...], w_temp_ref[...]) + pos_ref[...]   # (B*L, D)
    x = tok + dot(sel_mark, emb_bt)                      # (BNL, D_MODEL)

    scale = 1.0 / math.sqrt(D_HEAD)
    for l in range(E_LAYERS):
        # ---- AttentionLayer: per-head block-diagonal attention over the slab ----
        acc = None
        for h in range(N_HEADS):
            iq = (l * 3 + 0) * N_HEADS + h
            ik = (l * 3 + 1) * N_HEADS + h
            iv = (l * 3 + 2) * N_HEADS + h
            q = dot(x, w_qkv_ref[iq]) + b_qkv_ref[iq]    # (BNL, D_HEAD)
            k = dot(x, w_qkv_ref[ik]) + b_qkv_ref[ik]
            v = dot(x, w_qkv_ref[iv]) + b_qkv_ref[iv]
            s = jax.lax.dot_general(q, k, (((1,), (1,)), ((), ())),
                                    preferred_element_type=jnp.float32) * scale
            s = s + neg_mask                             # kill cross-sequence terms
            s = s - jnp.max(s, axis=-1, keepdims=True)
            e = jnp.exp(s)
            a = e * pl.reciprocal(jnp.sum(e, axis=-1, keepdims=True), approx=True)
            c = dot(dot(a, v), wo_ref[l * N_HEADS + h])  # head output -> D_MODEL
            acc = c if acc is None else acc + c
        attn_out = acc + bo_ref[l]

        # ---- EncoderLayer: residual + LN + position-wise FFN (1x1 convs, relu) ----
        x = _layer_norm(x + attn_out, ln_ref[4 * l + 0], ln_ref[4 * l + 1])
        y = jnp.maximum(dot(x, c1w_ref[l]) + c1b_ref[l], 0.0)
        y = dot(y, c2w_ref[l]) + c2b_ref[l]
        x = _layer_norm(x + y, ln_ref[4 * l + 2], ln_ref[4 * l + 3])

    # ---- final encoder LayerNorm + mean over sequence (one pooling matmul) ----
    x = _layer_norm(x, lnf_ref[0], lnf_ref[1])
    out_ref[...] = dot(pool, x)                          # (BN, D_MODEL), single store


def make_params(key):
    ks = jax.random.split(key, 16)

    def nrm(k, shape, scale=0.1):
        return scale * jax.random.normal(k, shape, dtype=jnp.float32)

    ln = jnp.zeros((E_LAYERS * 4, 1, D_MODEL), jnp.float32)
    for l in range(E_LAYERS):
        ln = ln.at[4 * l + 0].set(1.0)   # ln1 weight
        ln = ln.at[4 * l + 2].set(1.0)   # ln2 weight

    params = {
        # TokenEmbedding Conv1d weight, per kernel tap: (3, P, d_model)
        "w_tok": nrm(ks[0], (3, P, D_MODEL)),
        # TimeFeatureEmbedding Linear(D_MARK, D_MODEL, bias=False)
        "w_temp": nrm(ks[1], (D_MARK, D_MODEL)),
        # packed per-layer, per-head attention projections:
        # index = (l*3 + {0:q,1:k,2:v}) * N_HEADS + h
        "w_qkv": nrm(ks[2], (E_LAYERS * 3 * N_HEADS, D_MODEL, D_HEAD)),
        "b_qkv": nrm(ks[3], (E_LAYERS * 3 * N_HEADS, 1, D_HEAD), 0.02),
        # per-head rows of the output projection: index = l*N_HEADS + h
        "wo": nrm(ks[4], (E_LAYERS * N_HEADS, D_HEAD, D_MODEL)),
        "bo": nrm(ks[5], (E_LAYERS, 1, D_MODEL), 0.02),
        # packed layer norms: [ln1w, ln1b, ln2w, ln2b] per layer
        "ln": ln,
        # FFN (Conv1d kernel_size=1 == Linear)
        "c1w": nrm(ks[6], (E_LAYERS, D_MODEL, D_FF)),
        "c1b": nrm(ks[7], (E_LAYERS, 1, D_FF), 0.02),
        "c2w": nrm(ks[8], (E_LAYERS, D_FF, D_MODEL)),
        "c2b": nrm(ks[9], (E_LAYERS, 1, D_MODEL), 0.02),
        # final encoder LayerNorm [weight, bias]
        "lnf": jnp.concatenate([jnp.ones((1, 1, D_MODEL), jnp.float32),
                                jnp.zeros((1, 1, D_MODEL), jnp.float32)], axis=0),
    }

    # sinusoidal positional embedding (PositionalEmbedding)
    position = jnp.arange(L, dtype=jnp.float32)[:, None]
    div_term = jnp.exp(jnp.arange(0, D_MODEL, 2, dtype=jnp.float32)
                       * (-math.log(10000.0) / D_MODEL))
    pe = jnp.zeros((L, D_MODEL), jnp.float32)
    pe = pe.at[:, 0::2].set(jnp.sin(position * div_term))
    pe = pe.at[:, 1::2].set(jnp.cos(position * div_term))
    params["pos"] = pe
    return params


@jax.jit
def transformer_encoder(x_enc, x_mark_enc, params):
    Bq, Nq, Lq, Pq = x_enc.shape
    # pure metadata reshapes: no broadcast over N, no 3x conv-window duplication
    x_flat = x_enc.reshape(Bq * Nq * Lq, Pq)                     # (BNL, P)
    x_mark_flat = x_mark_enc.reshape(Bq * Lq, x_mark_enc.shape[-1])  # (B*L, D_MARK)
    pos_bt = jnp.tile(params["pos"], (Bq, 1))                    # (B*L, D_MODEL) const

    out = pl.pallas_call(
        transformer_encoder_kernel,
        out_shape=jax.ShapeDtypeStruct((Bq * Nq, D_MODEL), jnp.float32),
    )(
        x_flat, x_mark_flat, pos_bt,
        params["w_tok"], params["w_temp"],
        params["w_qkv"], params["b_qkv"], params["wo"], params["bo"], params["ln"],
        params["c1w"], params["c1b"], params["c2w"], params["c2b"], params["lnf"],
    )
    return out.reshape(Bq, Nq, D_MODEL)


def reference(x_enc, x_mark_enc, p):
    """Pure-JAX reference mirroring the PyTorch forward (eval mode)."""
    x = x_enc.reshape(B * N, L, P)
    x_mark = jnp.broadcast_to(x_mark_enc, (B, N, L, D_MARK)).reshape(B * N, L, D_MARK)
    h = (jnp.roll(x, 1, axis=1) @ p["w_tok"][0]
         + x @ p["w_tok"][1]
         + jnp.roll(x, -1, axis=1) @ p["w_tok"][2]
         + x_mark @ p["w_temp"]
         + p["pos"][None])

    def ln(v, w, b):
        mu = v.mean(-1, keepdims=True)
        var = ((v - mu) ** 2).mean(-1, keepdims=True)
        return (v - mu) / jnp.sqrt(var + 1e-5) * w + b

    for l in range(E_LAYERS):
        contribs = []
        for hd in range(N_HEADS):
            iq = (l * 3 + 0) * N_HEADS + hd
            ik = (l * 3 + 1) * N_HEADS + hd
            iv = (l * 3 + 2) * N_HEADS + hd
            q = h @ p["w_qkv"][iq] + p["b_qkv"][iq]
            k = h @ p["w_qkv"][ik] + p["b_qkv"][ik]
            v = h @ p["w_qkv"][iv] + p["b_qkv"][iv]
            s = jnp.einsum("ble,bse->bls", q, k) / math.sqrt(D_HEAD)
            a = jax.nn.softmax(s, axis=-1)
            o = jnp.einsum("bls,bse->ble", a, v)
            contribs.append(o @ p["wo"][l * N_HEADS + hd])
        attn = sum(contribs) + p["bo"][l]
        h = ln(h + attn, p["ln"][4 * l + 0], p["ln"][4 * l + 1])
        y = jnp.maximum(h @ p["c1w"][l] + p["c1b"][l], 0.0)
        y = y @ p["c2w"][l] + p["c2b"][l]
        h = ln(h + y, p["ln"][4 * l + 2], p["ln"][4 * l + 3])
    h = ln(h, p["lnf"][0], p["lnf"][1])
    return h.mean(axis=-2).reshape(B, N, D_MODEL)


if __name__ == "__main__":
    key = jax.random.PRNGKey(0)
    k_param, k_x, k_m = jax.random.split(key, 3)
    params = make_params(k_param)

    x_enc = jax.random.normal(k_x, (B, N, L, P), dtype=jnp.float32)
    x_mark_enc = jax.random.normal(k_m, (B, 1, L, D_MARK), dtype=jnp.float32)

    out = transformer_encoder(x_enc, x_mark_enc, params)
    out = jax.block_until_ready(out)

    assert out.shape == (B, N, D_MODEL), out.shape
    assert bool(jnp.all(jnp.isfinite(out)))

    ref = jax.block_until_ready(reference(x_enc, x_mark_enc, params))
    assert bool(jnp.allclose(out, ref, rtol=1e-2, atol=1e-2)), (
        float(jnp.max(jnp.abs(out - ref))))

    print("KERNEL_OK")
</pallas_src>

<mosaic_0001>
module attributes {stable_mosaic.version = 11 : i64} {
  func.func @transformer_encoder_kernel(%arg0: memref<64x4xf32, #tpu.memory_space<vmem>>, %arg1: memref<16x4xf32, #tpu.memory_space<vmem>>, %arg2: memref<16x32xf32, #tpu.memory_space<vmem>>, %arg3: memref<3x4x32xf32, #tpu.memory_space<vmem>>, %arg4: memref<4x32xf32, #tpu.memory_space<vmem>>, %arg5: memref<12x32x16xf32, #tpu.memory_space<vmem>>, %arg6: memref<12x1x16xf32, #tpu.memory_space<vmem>>, %arg7: memref<4x16x32xf32, #tpu.memory_space<vmem>>, %arg8: memref<2x1x32xf32, #tpu.memory_space<vmem>>, %arg9: memref<8x1x32xf32, #tpu.memory_space<vmem>>, %arg10: memref<2x32x64xf32, #tpu.memory_space<vmem>>, %arg11: memref<2x1x64xf32, #tpu.memory_space<vmem>>, %arg12: memref<2x64x32xf32, #tpu.memory_space<vmem>>, %arg13: memref<2x1x32xf32, #tpu.memory_space<vmem>>, %arg14: memref<2x1x32xf32, #tpu.memory_space<vmem>>, %arg15: memref<8x32xf32, #tpu.memory_space<vmem>>) attributes {dimension_semantics = [], scalar_prefetch = 0 : i64, scratch_operands = 0 : i64, tpu.core_type = #tpu.core_type<tc>} {
    %0 = tpu.iota {dimensions = array<i32: 0>} : vector<64x64xi32>
    %1 = tpu.iota {dimensions = array<i32: 1>} : vector<64x64xi32>
    %c3_i32 = arith.constant 3 : i32
    %2 = vector.broadcast %c3_i32 : i32 to vector<64x64xi32>
    %3 = arith.shrsi %0, %2 : vector<64x64xi32>
    %c3_i32_0 = arith.constant 3 : i32
    %4 = vector.broadcast %c3_i32_0 : i32 to vector<64x64xi32>
    %5 = arith.shrsi %1, %4 : vector<64x64xi32>
    %6 = arith.cmpi eq, %3, %5 : vector<64x64xi32>
    %c7_i32 = arith.constant 7 : i32
    %7 = vector.broadcast %c7_i32 : i32 to vector<64x64xi32>
    %8 = arith.andi %0, %7 : vector<64x64xi32>
    %c7_i32_1 = arith.constant 7 : i32
    %9 = vector.broadcast %c7_i32_1 : i32 to vector<64x64xi32>
    %10 = arith.andi %1, %9 : vector<64x64xi32>
    %c7_i32_2 = arith.constant 7 : i32
    %11 = vector.broadcast %c7_i32_2 : i32 to vector<64x64xi32>
    %12 = arith.addi %8, %11 : vector<64x64xi32>
    %c7_i32_3 = arith.constant 7 : i32
    %13 = vector.broadcast %c7_i32_3 : i32 to vector<64x64xi32>
    %14 = arith.andi %12, %13 : vector<64x64xi32>
    %c1_i32 = arith.constant 1 : i32
    %15 = vector.broadcast %c1_i32 : i32 to vector<64x64xi32>
    %16 = arith.addi %8, %15 : vector<64x64xi32>
    %c7_i32_4 = arith.constant 7 : i32
    %17 = vector.broadcast %c7_i32_4 : i32 to vector<64x64xi32>
    %18 = arith.andi %16, %17 : vector<64x64xi32>
    %19 = arith.cmpi eq, %10, %14 : vector<64x64xi32>
    %20 = arith.andi %6, %19 : vector<64x64xi1>
    %cst = arith.constant 1.000000e+00 : f32
    %cst_5 = arith.constant 0.000000e+00 : f32
    %21 = vector.broadcast %cst : f32 to vector<64x64xf32>
    %22 = vector.broadcast %cst_5 : f32 to vector<64x64xf32>
    %23 = arith.select %20, %21, %22 : vector<64x64xi1>, vector<64x64xf32>
    %24 = arith.cmpi eq, %10, %18 : vector<64x64xi32>
    %25 = arith.andi %6, %24 : vector<64x64xi1>
    %cst_6 = arith.constant 1.000000e+00 : f32
    %cst_7 = arith.constant 0.000000e+00 : f32
    %26 = vector.broadcast %cst_6 : f32 to vector<64x64xf32>
    %27 = vector.broadcast %cst_7 : f32 to vector<64x64xf32>
    %28 = arith.select %25, %26, %27 : vector<64x64xi1>, vector<64x64xf32>
    %cst_8 = arith.constant 0.000000e+00 : f32
    %cst_9 = arith.constant -1.000000e+09 : f32
    %29 = vector.broadcast %cst_8 : f32 to vector<64x64xf32>
    %30 = vector.broadcast %cst_9 : f32 to vector<64x64xf32>
    %31 = arith.select %6, %29, %30 : vector<64x64xi1>, vector<64x64xf32>
    %32 = tpu.iota {dimensions = array<i32: 0>} : vector<8x64xi32>
    %33 = tpu.iota {dimensions = array<i32: 1>} : vector<8x64xi32>
    %c3_i32_10 = arith.constant 3 : i32
    %34 = vector.broadcast %c3_i32_10 : i32 to vector<8x64xi32>
    %35 = arith.shrsi %33, %34 : vector<8x64xi32>
    %36 = arith.cmpi eq, %35, %32 : vector<8x64xi32>
    %cst_11 = arith.constant 1.250000e-01 : f32
    %cst_12 = arith.constant 0.000000e+00 : f32
    %37 = vector.broadcast %cst_11 : f32 to vector<8x64xf32>
    %38 = vector.broadcast %cst_12 : f32 to vector<8x64xf32>
    %39 = arith.select %36, %37, %38 : vector<8x64xi1>, vector<8x64xf32>
    %40 = tpu.iota {dimensions = array<i32: 0>} : vector<64x16xi32>
    %41 = tpu.iota {dimensions = array<i32: 1>} : vector<64x16xi32>
    %c5_i32 = arith.constant 5 : i32
    %42 = vector.broadcast %c5_i32 : i32 to vector<64x16xi32>
    %43 = arith.shrsi %40, %42 : vector<64x16xi32>
    %c3_i32_13 = arith.constant 3 : i32
    %44 = vector.broadcast %c3_i32_13 : i32 to vector<64x16xi32>
    %45 = arith.shli %43, %44 : vector<64x16xi32>
    %c7_i32_14 = arith.constant 7 : i32
    %46 = vector.broadcast %c7_i32_14 : i32 to vector<64x16xi32>
    %47 = arith.andi %40, %46 : vector<64x16xi32>
    %48 = arith.ori %45, %47 : vector<64x16xi32>
    %49 = arith.cmpi eq, %41, %48 : vector<64x16xi32>
    %cst_15 = arith.constant 1.000000e+00 : f32
    %cst_16 = arith.constant 0.000000e+00 : f32
    %50 = vector.broadcast %cst_15 : f32 to vector<64x16xf32>
    %51 = vector.broadcast %cst_16 : f32 to vector<64x16xf32>
    %52 = arith.select %49, %50, %51 : vector<64x16xi1>, vector<64x16xf32>
    %c0 = arith.constant 0 : index
    %c0_17 = arith.constant 0 : index
    %53 = vector.load %arg0[%c0, %c0_17] : memref<64x4xf32, #tpu.memory_space<vmem>>, vector<64x4xf32>
    %c0_18 = arith.constant 0 : index
    %c0_19 = arith.constant 0 : index
    %c0_20 = arith.constant 0 : index
    %54 = vector.load %arg3[%c0_18, %c0_19, %c0_20] : memref<3x4x32xf32, #tpu.memory_space<vmem>>, vector<1x4x32xf32>
    %55 = vector.shape_cast %54 : vector<1x4x32xf32> to vector<4x32xf32>
    %cst_21 = arith.constant dense<0.000000e+00> : vector<64x32xf32>
    %56 = tpu.matmul %53, %55, %cst_21 {dimension_numbers = #tpu.dot_dimension_numbers<[1], [0], [0], [1], [0, 0, 1, 1], [], []>} : vector<64x4xf32>, vector<4x32xf32>, vector<64x32xf32> -> vector<64x32xf32>
    %cst_22 = arith.constant dense<0.000000e+00> : vector<64x32xf32>
    %57 = tpu.matmul %23, %56, %cst_22 {dimension_numbers = #tpu.dot_dimension_numbers<[1], [0], [0], [1], [0, 0, 1, 1], [], []>} : vector<64x64xf32>, vector<64x32xf32>, vector<64x32xf32> -> vector<64x32xf32>
    %c1 = arith.constant 1 : index
    %c0_23 = arith.constant 0 : index
    %c0_24 = arith.constant 0 : index
    %58 = vector.load %arg3[%c1, %c0_23, %c0_24] : memref<3x4x32xf32, #tpu.memory_space<vmem>>, vector<1x4x32xf32>
    %59 = vector.shape_cast %58 : vector<1x4x32xf32> to vector<4x32xf32>
    %cst_25 = arith.constant dense<0.000000e+00> : vector<64x32xf32>
    %60 = tpu.matmul %53, %59, %cst_25 {dimension_numbers = #tpu.dot_dimension_numbers<[1], [0], [0], [1], [0, 0, 1, 1], [], []>} : vector<64x4xf32>, vector<4x32xf32>, vector<64x32xf32> -> vector<64x32xf32>
    %61 = arith.addf %57, %60 : vector<64x32xf32>
    %c2 = arith.constant 2 : index
    %c0_26 = arith.constant 0 : index
    %c0_27 = arith.constant 0 : index
    %62 = vector.load %arg3[%c2, %c0_26, %c0_27] : memref<3x4x32xf32, #tpu.memory_space<vmem>>, vector<1x4x32xf32>
    %63 = vector.shape_cast %62 : vector<1x4x32xf32> to vector<4x32xf32>
    %cst_28 = arith.constant dense<0.000000e+00> : vector<64x32xf32>
    %64 = tpu.matmul %53, %63, %cst_28 {dimension_numbers = #tpu.dot_dimension_numbers<[1], [0], [0], [1], [0, 0, 1, 1], [], []>} : vector<64x4xf32>, vector<4x32xf32>, vector<64x32xf32> -> vector<64x32xf32>
    %cst_29 = arith.constant dense<0.000000e+00> : vector<64x32xf32>
    %65 = tpu.matmul %28, %64, %cst_29 {dimension_numbers = #tpu.dot_dimension_numbers<[1], [0], [0], [1], [0, 0, 1, 1], [], []>} : vector<64x64xf32>, vector<64x32xf32>, vector<64x32xf32> -> vector<64x32xf32>
    %66 = arith.addf %61, %65 : vector<64x32xf32>
    %c0_30 = arith.constant 0 : index
    %c0_31 = arith.constant 0 : index
    %67 = vector.load %arg1[%c0_30, %c0_31] : memref<16x4xf32, #tpu.memory_space<vmem>>, vector<16x4xf32>
    %c0_32 = arith.constant 0 : index
    %c0_33 = arith.constant 0 : index
    %68 = vector.load %arg4[%c0_32, %c0_33] : memref<4x32xf32, #tpu.memory_space<vmem>>, vector<4x32xf32>
    %cst_34 = arith.constant dense<0.000000e+00> : vector<16x32xf32>
    %69 = tpu.matmul %67, %68, %cst_34 {dimension_numbers = #tpu.dot_dimension_numbers<[1], [0], [0], [1], [0, 0, 1, 1], [], []>} : vector<16x4xf32>, vector<4x32xf32>, vector<16x32xf32> -> vector<16x32xf32>
    %c0_35 = arith.constant 0 : index
    %c0_36 = arith.constant 0 : index
    %70 = vector.load %arg2[%c0_35, %c0_36] : memref<16x32xf32, #tpu.memory_space<vmem>>, vector<16x32xf32>
    %71 = arith.addf %69, %70 : vector<16x32xf32>
    %cst_37 = arith.constant dense<0.000000e+00> : vector<64x32xf32>
    %72 = tpu.matmul %52, %71, %cst_37 {dimension_numbers = #tpu.dot_dimension_numbers<[1], [0], [0], [1], [0, 0, 1, 1], [], []>} : vector<64x16xf32>, vector<16x32xf32>, vector<64x32xf32> -> vector<64x32xf32>
    %73 = arith.addf %66, %72 : vector<64x32xf32>
    %c0_38 = arith.constant 0 : index
    %c0_39 = arith.constant 0 : index
    %c0_40 = arith.constant 0 : index
    %74 = vector.load %arg5[%c0_38, %c0_39, %c0_40] : memref<12x32x16xf32, #tpu.memory_space<vmem>>, vector<1x32x16xf32>
    %75 = vector.shape_cast %74 : vector<1x32x16xf32> to vector<32x16xf32>
    %cst_41 = arith.constant dense<0.000000e+00> : vector<64x16xf32>
    %76 = tpu.matmul %73, %75, %cst_41 {dimension_numbers = #tpu.dot_dimension_numbers<[1], [0], [0], [1], [0, 0, 1, 1], [], []>} : vector<64x32xf32>, vector<32x16xf32>, vector<64x16xf32> -> vector<64x16xf32>
    %c0_42 = arith.constant 0 : index
    %c0_43 = arith.constant 0 : index
    %c0_44 = arith.constant 0 : index
    %77 = vector.load %arg6[%c0_42, %c0_43, %c0_44] : memref<12x1x16xf32, #tpu.memory_space<vmem>>, vector<1x1x16xf32>
    %78 = vector.shape_cast %77 : vector<1x1x16xf32> to vector<1x16xf32>
    %79 = vector.broadcast %78 : vector<1x16xf32> to vector<64x16xf32>
    %80 = arith.addf %76, %79 : vector<64x16xf32>
    %c2_45 = arith.constant 2 : index
    %c0_46 = arith.constant 0 : index
    %c0_47 = arith.constant 0 : index
    %81 = vector.load %arg5[%c2_45, %c0_46, %c0_47] : memref<12x32x16xf32, #tpu.memory_space<vmem>>, vector<1x32x16xf32>
    %82 = vector.shape_cast %81 : vector<1x32x16xf32> to vector<32x16xf32>
    %cst_48 = arith.constant dense<0.000000e+00> : vector<64x16xf32>
    %83 = tpu.matmul %73, %82, %cst_48 {dimension_numbers = #tpu.dot_dimension_numbers<[1], [0], [0], [1], [0, 0, 1, 1], [], []>} : vector<64x32xf32>, vector<32x16xf32>, vector<64x16xf32> -> vector<64x16xf32>
    %c2_49 = arith.constant 2 : index
    %c0_50 = arith.constant 0 : index
    %c0_51 = arith.constant 0 : index
    %84 = vector.load %arg6[%c2_49, %c0_50, %c0_51] : memref<12x1x16xf32, #tpu.memory_space<vmem>>, vector<1x1x16xf32>
    %85 = vector.shape_cast %84 : vector<1x1x16xf32> to vector<1x16xf32>
    %86 = vector.broadcast %85 : vector<1x16xf32> to vector<64x16xf32>
    %87 = arith.addf %83, %86 : vector<64x16xf32>
    %c4 = arith.constant 4 : index
    %c0_52 = arith.constant 0 : index
    %c0_53 = arith.constant 0 : index
    %88 = vector.load %arg5[%c4, %c0_52, %c0_53] : memref<12x32x16xf32, #tpu.memory_space<vmem>>, vector<1x32x16xf32>
    %89 = vector.shape_cast %88 : vector<1x32x16xf32> to vector<32x16xf32>
    %cst_54 = arith.constant dense<0.000000e+00> : vector<64x16xf32>
    %90 = tpu.matmul %73, %89, %cst_54 {dimension_numbers = #tpu.dot_dimension_numbers<[1], [0], [0], [1], [0, 0, 1, 1], [], []>} : vector<64x32xf32>, vector<32x16xf32>, vector<64x16xf32> -> vector<64x16xf32>
    %c4_55 = arith.constant 4 : index
    %c0_56 = arith.constant 0 : index
    %c0_57 = arith.constant 0 : index
    %91 = vector.load %arg6[%c4_55, %c0_56, %c0_57] : memref<12x1x16xf32, #tpu.memory_space<vmem>>, vector<1x1x16xf32>
    %92 = vector.shape_cast %91 : vector<1x1x16xf32> to vector<1x16xf32>
    %93 = vector.broadcast %92 : vector<1x16xf32> to vector<64x16xf32>
    %94 = arith.addf %90, %93 : vector<64x16xf32>
    %cst_58 = arith.constant dense<0.000000e+00> : vector<64x64xf32>
    %95 = tpu.matmul %80, %87, %cst_58 {dimension_numbers = #tpu.dot_dimension_numbers<[1], [1], [0], [0], [0, 0, 1, 0], [], []>} : vector<64x16xf32>, vector<64x16xf32>, vector<64x64xf32> -> vector<64x64xf32>
    %cst_59 = arith.constant 2.500000e-01 : f32
    %96 = vector.broadcast %cst_59 : f32 to vector<64x64xf32>
    %97 = arith.mulf %95, %96 : vector<64x64xf32>
    %98 = arith.addf %97, %31 : vector<64x64xf32>
    %cst_60 = arith.constant dense<0xFF800000> : vector<64xf32>
    %99 = vector.multi_reduction <maximumf>, %98, %cst_60 [1] : vector<64x64xf32> to vector<64xf32>
    %100 = vector.shape_cast %99 : vector<64xf32> to vector<64x1xf32>
    %101 = vector.broadcast %100 : vector<64x1xf32> to vector<64x64xf32>
    %102 = arith.subf %98, %101 : vector<64x64xf32>
    %103 = math.exp %102 : vector<64x64xf32>
    %cst_61 = arith.constant dense<0.000000e+00> : vector<64xf32>
    %104 = vector.multi_reduction <add>, %103, %cst_61 [1] : vector<64x64xf32> to vector<64xf32>
    %105 = vector.shape_cast %104 : vector<64xf32> to vector<64x1xf32>
    %106 = tpu.reciprocal %105 {approx = true} : vector<64x1xf32> -> vector<64x1xf32>
    %107 = vector.broadcast %106 : vector<64x1xf32> to vector<64x64xf32>
    %108 = arith.mulf %103, %107 : vector<64x64xf32>
    %cst_62 = arith.constant dense<0.000000e+00> : vector<64x16xf32>
    %109 = tpu.matmul %108, %94, %cst_62 {dimension_numbers = #tpu.dot_dimension_numbers<[1], [0], [0], [1], [0, 0, 1, 1], [], []>} : vector<64x64xf32>, vector<64x16xf32>, vector<64x16xf32> -> vector<64x16xf32>
    %c0_63 = arith.constant 0 : index
    %c0_64 = arith.constant 0 : index
    %c0_65 = arith.constant 0 : index
    %110 = vector.load %arg7[%c0_63, %c0_64, %c0_65] : memref<4x16x32xf32, #tpu.memory_space<vmem>>, vector<1x16x32xf32>
    %111 = vector.shape_cast %110 : vector<1x16x32xf32> to vector<16x32xf32>
    %cst_66 = arith.constant dense<0.000000e+00> : vector<64x32xf32>
    %112 = tpu.matmul %109, %111, %cst_66 {dimension_numbers = #tpu.dot_dimension_numbers<[1], [0], [0], [1], [0, 0, 1, 1], [], []>} : vector<64x16xf32>, vector<16x32xf32>, vector<64x32xf32> -> vector<64x32xf32>
    %c1_67 = arith.constant 1 : index
    %c0_68 = arith.constant 0 : index
    %c0_69 = arith.constant 0 : index
    %113 = vector.load %arg5[%c1_67, %c0_68, %c0_69] : memref<12x32x16xf32, #tpu.memory_space<vmem>>, vector<1x32x16xf32>
    %114 = vector.shape_cast %113 : vector<1x32x16xf32> to vector<32x16xf32>
    %cst_70 = arith.constant dense<0.000000e+00> : vector<64x16xf32>
    %115 = tpu.matmul %73, %114, %cst_70 {dimension_numbers = #tpu.dot_dimension_numbers<[1], [0], [0], [1], [0, 0, 1, 1], [], []>} : vector<64x32xf32>, vector<32x16xf32>, vector<64x16xf32> -> vector<64x16xf32>
    %c1_71 = arith.constant 1 : index
    %c0_72 = arith.constant 0 : index
    %c0_73 = arith.constant 0 : index
    %116 = vector.load %arg6[%c1_71, %c0_72, %c0_73] : memref<12x1x16xf32, #tpu.memory_space<vmem>>, vector<1x1x16xf32>
    %117 = vector.shape_cast %116 : vector<1x1x16xf32> to vector<1x16xf32>
    %118 = vector.broadcast %117 : vector<1x16xf32> to vector<64x16xf32>
    %119 = arith.addf %115, %118 : vector<64x16xf32>
    %c3 = arith.constant 3 : index
    %c0_74 = arith.constant 0 : index
    %c0_75 = arith.constant 0 : index
    %120 = vector.load %arg5[%c3, %c0_74, %c0_75] : memref<12x32x16xf32, #tpu.memory_space<vmem>>, vector<1x32x16xf32>
    %121 = vector.shape_cast %120 : vector<1x32x16xf32> to vector<32x16xf32>
    %cst_76 = arith.constant dense<0.000000e+00> : vector<64x16xf32>
    %122 = tpu.matmul %73, %121, %cst_76 {dimension_numbers = #tpu.dot_dimension_numbers<[1], [0], [0], [1], [0, 0, 1, 1], [], []>} : vector<64x32xf32>, vector<32x16xf32>, vector<64x16xf32> -> vector<64x16xf32>
    %c3_77 = arith.constant 3 : index
    %c0_78 = arith.constant 0 : index
    %c0_79 = arith.constant 0 : index
    %123 = vector.load %arg6[%c3_77, %c0_78, %c0_79] : memref<12x1x16xf32, #tpu.memory_space<vmem>>, vector<1x1x16xf32>
    %124 = vector.shape_cast %123 : vector<1x1x16xf32> to vector<1x16xf32>
    %125 = vector.broadcast %124 : vector<1x16xf32> to vector<64x16xf32>
    %126 = arith.addf %122, %125 : vector<64x16xf32>
    %c5 = arith.constant 5 : index
    %c0_80 = arith.constant 0 : index
    %c0_81 = arith.constant 0 : index
    %127 = vector.load %arg5[%c5, %c0_80, %c0_81] : memref<12x32x16xf32, #tpu.memory_space<vmem>>, vector<1x32x16xf32>
    %128 = vector.shape_cast %127 : vector<1x32x16xf32> to vector<32x16xf32>
    %cst_82 = arith.constant dense<0.000000e+00> : vector<64x16xf32>
    %129 = tpu.matmul %73, %128, %cst_82 {dimension_numbers = #tpu.dot_dimension_numbers<[1], [0], [0], [1], [0, 0, 1, 1], [], []>} : vector<64x32xf32>, vector<32x16xf32>, vector<64x16xf32> -> vector<64x16xf32>
    %c5_83 = arith.constant 5 : index
    %c0_84 = arith.constant 0 : index
    %c0_85 = arith.constant 0 : index
    %130 = vector.load %arg6[%c5_83, %c0_84, %c0_85] : memref<12x1x16xf32, #tpu.memory_space<vmem>>, vector<1x1x16xf32>
    %131 = vector.shape_cast %130 : vector<1x1x16xf32> to vector<1x16xf32>
    %132 = vector.broadcast %131 : vector<1x16xf32> to vector<64x16xf32>
    %133 = arith.addf %129, %132 : vector<64x16xf32>
    %cst_86 = arith.constant dense<0.000000e+00> : vector<64x64xf32>
    %134 = tpu.matmul %119, %126, %cst_86 {dimension_numbers = #tpu.dot_dimension_numbers<[1], [1], [0], [0], [0, 0, 1, 0], [], []>} : vector<64x16xf32>, vector<64x16xf32>, vector<64x64xf32> -> vector<64x64xf32>
    %cst_87 = arith.constant 2.500000e-01 : f32
    %135 = vector.broadcast %cst_87 : f32 to vector<64x64xf32>
    %136 = arith.mulf %134, %135 : vector<64x64xf32>
    %137 = arith.addf %136, %31 : vector<64x64xf32>
    %cst_88 = arith.constant dense<0xFF800000> : vector<64xf32>
    %138 = vector.multi_reduction <maximumf>, %137, %cst_88 [1] : vector<64x64xf32> to vector<64xf32>
    %139 = vector.shape_cast %138 : vector<64xf32> to vector<64x1xf32>
    %140 = vector.broadcast %139 : vector<64x1xf32> to vector<64x64xf32>
    %141 = arith.subf %137, %140 : vector<64x64xf32>
    %142 = math.exp %141 : vector<64x64xf32>
    %cst_89 = arith.constant dense<0.000000e+00> : vector<64xf32>
    %143 = vector.multi_reduction <add>, %142, %cst_89 [1] : vector<64x64xf32> to vector<64xf32>
    %144 = vector.shape_cast %143 : vector<64xf32> to vector<64x1xf32>
    %145 = tpu.reciprocal %144 {approx = true} : vector<64x1xf32> -> vector<64x1xf32>
    %146 = vector.broadcast %145 : vector<64x1xf32> to vector<64x64xf32>
    %147 = arith.mulf %142, %146 : vector<64x64xf32>
    %cst_90 = arith.constant dense<0.000000e+00> : vector<64x16xf32>
    %148 = tpu.matmul %147, %133, %cst_90 {dimension_numbers = #tpu.dot_dimension_numbers<[1], [0], [0], [1], [0, 0, 1, 1], [], []>} : vector<64x64xf32>, vector<64x16xf32>, vector<64x16xf32> -> vector<64x16xf32>
    %c1_91 = arith.constant 1 : index
    %c0_92 = arith.constant 0 : index
    %c0_93 = arith.constant 0 : index
    %149 = vector.load %arg7[%c1_91, %c0_92, %c0_93] : memref<4x16x32xf32, #tpu.memory_space<vmem>>, vector<1x16x32xf32>
    %150 = vector.shape_cast %149 : vector<1x16x32xf32> to vector<16x32xf32>
    %cst_94 = arith.constant dense<0.000000e+00> : vector<64x32xf32>
    %151 = tpu.matmul %148, %150, %cst_94 {dimension_numbers = #tpu.dot_dimension_numbers<[1], [0], [0], [1], [0, 0, 1, 1], [], []>} : vector<64x16xf32>, vector<16x32xf32>, vector<64x32xf32> -> vector<64x32xf32>
    %152 = arith.addf %112, %151 : vector<64x32xf32>
    %c0_95 = arith.constant 0 : index
    %c0_96 = arith.constant 0 : index
    %c0_97 = arith.constant 0 : index
    %153 = vector.load %arg8[%c0_95, %c0_96, %c0_97] : memref<2x1x32xf32, #tpu.memory_space<vmem>>, vector<1x1x32xf32>
    %154 = vector.shape_cast %153 : vector<1x1x32xf32> to vector<1x32xf32>
    %155 = vector.broadcast %154 : vector<1x32xf32> to vector<64x32xf32>
    %156 = arith.addf %152, %155 : vector<64x32xf32>
    %157 = arith.addf %73, %156 : vector<64x32xf32>
    %c0_98 = arith.constant 0 : index
    %c0_99 = arith.constant 0 : index
    %c0_100 = arith.constant 0 : index
    %158 = vector.load %arg9[%c0_98, %c0_99, %c0_100] : memref<8x1x32xf32, #tpu.memory_space<vmem>>, vector<1x1x32xf32>
    %159 = vector.shape_cast %158 : vector<1x1x32xf32> to vector<1x32xf32>
    %c1_101 = arith.constant 1 : index
    %c0_102 = arith.constant 0 : index
    %c0_103 = arith.constant 0 : index
    %160 = vector.load %arg9[%c1_101, %c0_102, %c0_103] : memref<8x1x32xf32, #tpu.memory_space<vmem>>, vector<1x1x32xf32>
    %161 = vector.shape_cast %160 : vector<1x1x32xf32> to vector<1x32xf32>
    %cst_104 = arith.constant dense<0.000000e+00> : vector<64xf32>
    %162 = vector.multi_reduction <add>, %157, %cst_104 [1] : vector<64x32xf32> to vector<64xf32>
    %163 = vector.shape_cast %162 : vector<64xf32> to vector<64x1xf32>
    %cst_105 = arith.constant 3.200000e+01 : f32
    %164 = vector.broadcast %cst_105 : f32 to vector<64x1xf32>
    %165 = arith.divf %163, %164 : vector<64x1xf32>
    %166 = vector.broadcast %165 : vector<64x1xf32> to vector<64x32xf32>
    %167 = arith.subf %157, %166 : vector<64x32xf32>
    %168 = arith.mulf %167, %167 : vector<64x32xf32>
    %cst_106 = arith.constant dense<0.000000e+00> : vector<64xf32>
    %169 = vector.multi_reduction <add>, %168, %cst_106 [1] : vector<64x32xf32> to vector<64xf32>
    %170 = vector.shape_cast %169 : vector<64xf32> to vector<64x1xf32>
    %cst_107 = arith.constant 3.200000e+01 : f32
    %171 = vector.broadcast %cst_107 : f32 to vector<64x1xf32>
    %172 = arith.divf %170, %171 : vector<64x1xf32>
    %173 = vector.broadcast %165 : vector<64x1xf32> to vector<64x32xf32>
    %174 = arith.subf %157, %173 : vector<64x32xf32>
    %cst_108 = arith.constant 9.99999974E-6 : f32
    %175 = vector.broadcast %cst_108 : f32 to vector<64x1xf32>
    %176 = arith.addf %172, %175 : vector<64x1xf32>
    %177 = math.rsqrt %176 : vector<64x1xf32>
    %178 = vector.broadcast %177 : vector<64x1xf32> to vector<64x32xf32>
    %179 = arith.mulf %174, %178 : vector<64x32xf32>
    %180 = vector.broadcast %159 : vector<1x32xf32> to vector<64x32xf32>
    %181 = arith.mulf %179, %180 : vector<64x32xf32>
    %182 = vector.broadcast %161 : vector<1x32xf32> to vector<64x32xf32>
    %183 = arith.addf %181, %182 : vector<64x32xf32>
    %c0_109 = arith.constant 0 : index
    %c0_110 = arith.constant 0 : index
    %c0_111 = arith.constant 0 : index
    %184 = vector.load %arg10[%c0_109, %c0_110, %c0_111] : memref<2x32x64xf32, #tpu.memory_space<vmem>>, vector<1x32x64xf32>
    %185 = vector.shape_cast %184 : vector<1x32x64xf32> to vector<32x64xf32>
    %cst_112 = arith.constant dense<0.000000e+00> : vector<64x64xf32>
    %186 = tpu.matmul %183, %185, %cst_112 {dimension_numbers = #tpu.dot_dimension_numbers<[1], [0], [0], [1], [0, 0, 1, 1], [], []>} : vector<64x32xf32>, vector<32x64xf32>, vector<64x64xf32> -> vector<64x64xf32>
    %c0_113 = arith.constant 0 : index
    %c0_114 = arith.constant 0 : index
    %c0_115 = arith.constant 0 : index
    %187 = vector.load %arg11[%c0_113, %c0_114, %c0_115] : memref<2x1x64xf32, #tpu.memory_space<vmem>>, vector<1x1x64xf32>
    %188 = vector.shape_cast %187 : vector<1x1x64xf32> to vector<1x64xf32>
    %189 = vector.broadcast %188 : vector<1x64xf32> to vector<64x64xf32>
    %190 = arith.addf %186, %189 : vector<64x64xf32>
    %cst_116 = arith.constant 0.000000e+00 : f32
    %191 = vector.broadcast %cst_116 : f32 to vector<64x64xf32>
    %192 = arith.maximumf %190, %191 : vector<64x64xf32>
    %c0_117 = arith.constant 0 : index
    %c0_118 = arith.constant 0 : index
    %c0_119 = arith.constant 0 : index
    %193 = vector.load %arg12[%c0_117, %c0_118, %c0_119] : memref<2x64x32xf32, #tpu.memory_space<vmem>>, vector<1x64x32xf32>
    %194 = vector.shape_cast %193 : vector<1x64x32xf32> to vector<64x32xf32>
    %cst_120 = arith.constant dense<0.000000e+00> : vector<64x32xf32>
    %195 = tpu.matmul %192, %194, %cst_120 {dimension_numbers = #tpu.dot_dimension_numbers<[1], [0], [0], [1], [0, 0, 1, 1], [], []>} : vector<64x64xf32>, vector<64x32xf32>, vector<64x32xf32> -> vector<64x32xf32>
    %c0_121 = arith.constant 0 : index
    %c0_122 = arith.constant 0 : index
    %c0_123 = arith.constant 0 : index
    %196 = vector.load %arg13[%c0_121, %c0_122, %c0_123] : memref<2x1x32xf32, #tpu.memory_space<vmem>>, vector<1x1x32xf32>
    %197 = vector.shape_cast %196 : vector<1x1x32xf32> to vector<1x32xf32>
    %198 = vector.broadcast %197 : vector<1x32xf32> to vector<64x32xf32>
    %199 = arith.addf %195, %198 : vector<64x32xf32>
    %200 = arith.addf %183, %199 : vector<64x32xf32>
    %c2_124 = arith.constant 2 : index
    %c0_125 = arith.constant 0 : index
    %c0_126 = arith.constant 0 : index
    %201 = vector.load %arg9[%c2_124, %c0_125, %c0_126] : memref<8x1x32xf32, #tpu.memory_space<vmem>>, vector<1x1x32xf32>
    %202 = vector.shape_cast %201 : vector<1x1x32xf32> to vector<1x32xf32>
    %c3_127 = arith.constant 3 : index
    %c0_128 = arith.constant 0 : index
    %c0_129 = arith.constant 0 : index
    %203 = vector.load %arg9[%c3_127, %c0_128, %c0_129] : memref<8x1x32xf32, #tpu.memory_space<vmem>>, vector<1x1x32xf32>
    %204 = vector.shape_cast %203 : vector<1x1x32xf32> to vector<1x32xf32>
    %cst_130 = arith.constant dense<0.000000e+00> : vector<64xf32>
    %205 = vector.multi_reduction <add>, %200, %cst_130 [1] : vector<64x32xf32> to vector<64xf32>
    %206 = vector.shape_cast %205 : vector<64xf32> to vector<64x1xf32>
    %cst_131 = arith.constant 3.200000e+01 : f32
    %207 = vector.broadcast %cst_131 : f32 to vector<64x1xf32>
    %208 = arith.divf %206, %207 : vector<64x1xf32>
    %209 = vector.broadcast %208 : vector<64x1xf32> to vector<64x32xf32>
    %210 = arith.subf %200, %209 : vector<64x32xf32>
    %211 = arith.mulf %210, %210 : vector<64x32xf32>
    %cst_132 = arith.constant dense<0.000000e+00> : vector<64xf32>
    %212 = vector.multi_reduction <add>, %211, %cst_132 [1] : vector<64x32xf32> to vector<64xf32>
    %213 = vector.shape_cast %212 : vector<64xf32> to vector<64x1xf32>
    %cst_133 = arith.constant 3.200000e+01 : f32
    %214 = vector.broadcast %cst_133 : f32 to vector<64x1xf32>
    %215 = arith.divf %213, %214 : vector<64x1xf32>
    %216 = vector.broadcast %208 : vector<64x1xf32> to vector<64x32xf32>
    %217 = arith.subf %200, %216 : vector<64x32xf32>
    %cst_134 = arith.constant 9.99999974E-6 : f32
    %218 = vector.broadcast %cst_134 : f32 to vector<64x1xf32>
    %219 = arith.addf %215, %218 : vector<64x1xf32>
    %220 = math.rsqrt %219 : vector<64x1xf32>
    %221 = vector.broadcast %220 : vector<64x1xf32> to vector<64x32xf32>
    %222 = arith.mulf %217, %221 : vector<64x32xf32>
    %223 = vector.broadcast %202 : vector<1x32xf32> to vector<64x32xf32>
    %224 = arith.mulf %222, %223 : vector<64x32xf32>
    %225 = vector.broadcast %204 : vector<1x32xf32> to vector<64x32xf32>
    %226 = arith.addf %224, %225 : vector<64x32xf32>
    %c6 = arith.constant 6 : index
    %c0_135 = arith.constant 0 : index
    %c0_136 = arith.constant 0 : index
    %227 = vector.load %arg5[%c6, %c0_135, %c0_136] : memref<12x32x16xf32, #tpu.memory_space<vmem>>, vector<1x32x16xf32>
    %228 = vector.shape_cast %227 : vector<1x32x16xf32> to vector<32x16xf32>
    %cst_137 = arith.constant dense<0.000000e+00> : vector<64x16xf32>
    %229 = tpu.matmul %226, %228, %cst_137 {dimension_numbers = #tpu.dot_dimension_numbers<[1], [0], [0], [1], [0, 0, 1, 1], [], []>} : vector<64x32xf32>, vector<32x16xf32>, vector<64x16xf32> -> vector<64x16xf32>
    %c6_138 = arith.constant 6 : index
    %c0_139 = arith.constant 0 : index
    %c0_140 = arith.constant 0 : index
    %230 = vector.load %arg6[%c6_138, %c0_139, %c0_140] : memref<12x1x16xf32, #tpu.memory_space<vmem>>, vector<1x1x16xf32>
    %231 = vector.shape_cast %230 : vector<1x1x16xf32> to vector<1x16xf32>
    %232 = vector.broadcast %231 : vector<1x16xf32> to vector<64x16xf32>
    %233 = arith.addf %229, %232 : vector<64x16xf32>
    %c8 = arith.constant 8 : index
    %c0_141 = arith.constant 0 : index
    %c0_142 = arith.constant 0 : index
    %234 = vector.load %arg5[%c8, %c0_141, %c0_142] : memref<12x32x16xf32, #tpu.memory_space<vmem>>, vector<1x32x16xf32>
    %235 = vector.shape_cast %234 : vector<1x32x16xf32> to vector<32x16xf32>
    %cst_143 = arith.constant dense<0.000000e+00> : vector<64x16xf32>
    %236 = tpu.matmul %226, %235, %cst_143 {dimension_numbers = #tpu.dot_dimension_numbers<[1], [0], [0], [1], [0, 0, 1, 1], [], []>} : vector<64x32xf32>, vector<32x16xf32>, vector<64x16xf32> -> vector<64x16xf32>
    %c8_144 = arith.constant 8 : index
    %c0_145 = arith.constant 0 : index
    %c0_146 = arith.constant 0 : index
    %237 = vector.load %arg6[%c8_144, %c0_145, %c0_146] : memref<12x1x16xf32, #tpu.memory_space<vmem>>, vector<1x1x16xf32>
    %238 = vector.shape_cast %237 : vector<1x1x16xf32> to vector<1x16xf32>
    %239 = vector.broadcast %238 : vector<1x16xf32> to vector<64x16xf32>
    %240 = arith.addf %236, %239 : vector<64x16xf32>
    %c10 = arith.constant 10 : index
    %c0_147 = arith.constant 0 : index
    %c0_148 = arith.constant 0 : index
    %241 = vector.load %arg5[%c10, %c0_147, %c0_148] : memref<12x32x16xf32, #tpu.memory_space<vmem>>, vector<1x32x16xf32>
    %242 = vector.shape_cast %241 : vector<1x32x16xf32> to vector<32x16xf32>
    %cst_149 = arith.constant dense<0.000000e+00> : vector<64x16xf32>
    %243 = tpu.matmul %226, %242, %cst_149 {dimension_numbers = #tpu.dot_dimension_numbers<[1], [0], [0], [1], [0, 0, 1, 1], [], []>} : vector<64x32xf32>, vector<32x16xf32>, vector<64x16xf32> -> vector<64x16xf32>
    %c10_150 = arith.constant 10 : index
    %c0_151 = arith.constant 0 : index
    %c0_152 = arith.constant 0 : index
    %244 = vector.load %arg6[%c10_150, %c0_151, %c0_152] : memref<12x1x16xf32, #tpu.memory_space<vmem>>, vector<1x1x16xf32>
    %245 = vector.shape_cast %244 : vector<1x1x16xf32> to vector<1x16xf32>
    %246 = vector.broadcast %245 : vector<1x16xf32> to vector<64x16xf32>
    %247 = arith.addf %243, %246 : vector<64x16xf32>
    %cst_153 = arith.constant dense<0.000000e+00> : vector<64x64xf32>
    %248 = tpu.matmul %233, %240, %cst_153 {dimension_numbers = #tpu.dot_dimension_numbers<[1], [1], [0], [0], [0, 0, 1, 0], [], []>} : vector<64x16xf32>, vector<64x16xf32>, vector<64x64xf32> -> vector<64x64xf32>
    %cst_154 = arith.constant 2.500000e-01 : f32
    %249 = vector.broadcast %cst_154 : f32 to vector<64x64xf32>
    %250 = arith.mulf %248, %249 : vector<64x64xf32>
    %251 = arith.addf %250, %31 : vector<64x64xf32>
    %cst_155 = arith.constant dense<0xFF800000> : vector<64xf32>
    %252 = vector.multi_reduction <maximumf>, %251, %cst_155 [1] : vector<64x64xf32> to vector<64xf32>
    %253 = vector.shape_cast %252 : vector<64xf32> to vector<64x1xf32>
    %254 = vector.broadcast %253 : vector<64x1xf32> to vector<64x64xf32>
    %255 = arith.subf %251, %254 : vector<64x64xf32>
    %256 = math.exp %255 : vector<64x64xf32>
    %cst_156 = arith.constant dense<0.000000e+00> : vector<64xf32>
    %257 = vector.multi_reduction <add>, %256, %cst_156 [1] : vector<64x64xf32> to vector<64xf32>
    %258 = vector.shape_cast %257 : vector<64xf32> to vector<64x1xf32>
    %259 = tpu.reciprocal %258 {approx = true} : vector<64x1xf32> -> vector<64x1xf32>
    %260 = vector.broadcast %259 : vector<64x1xf32> to vector<64x64xf32>
    %261 = arith.mulf %256, %260 : vector<64x64xf32>
    %cst_157 = arith.constant dense<0.000000e+00> : vector<64x16xf32>
    %262 = tpu.matmul %261, %247, %cst_157 {dimension_numbers = #tpu.dot_dimension_numbers<[1], [0], [0], [1], [0, 0, 1, 1], [], []>} : vector<64x64xf32>, vector<64x16xf32>, vector<64x16xf32> -> vector<64x16xf32>
    %c2_158 = arith.constant 2 : index
    %c0_159 = arith.constant 0 : index
    %c0_160 = arith.constant 0 : index
    %263 = vector.load %arg7[%c2_158, %c0_159, %c0_160] : memref<4x16x32xf32, #tpu.memory_space<vmem>>, vector<1x16x32xf32>
    %264 = vector.shape_cast %263 : vector<1x16x32xf32> to vector<16x32xf32>
    %cst_161 = arith.constant dense<0.000000e+00> : vector<64x32xf32>
    %265 = tpu.matmul %262, %264, %cst_161 {dimension_numbers = #tpu.dot_dimension_numbers<[1], [0], [0], [1], [0, 0, 1, 1], [], []>} : vector<64x16xf32>, vector<16x32xf32>, vector<64x32xf32> -> vector<64x32xf32>
    %c7 = arith.constant 7 : index
    %c0_162 = arith.constant 0 : index
    %c0_163 = arith.constant 0 : index
    %266 = vector.load %arg5[%c7, %c0_162, %c0_163] : memref<12x32x16xf32, #tpu.memory_space<vmem>>, vector<1x32x16xf32>
    %267 = vector.shape_cast %266 : vector<1x32x16xf32> to vector<32x16xf32>
    %cst_164 = arith.constant dense<0.000000e+00> : vector<64x16xf32>
    %268 = tpu.matmul %226, %267, %cst_164 {dimension_numbers = #tpu.dot_dimension_numbers<[1], [0], [0], [1], [0, 0, 1, 1], [], []>} : vector<64x32xf32>, vector<32x16xf32>, vector<64x16xf32> -> vector<64x16xf32>
    %c7_165 = arith.constant 7 : index
    %c0_166 = arith.constant 0 : index
    %c0_167 = arith.constant 0 : index
    %269 = vector.load %arg6[%c7_165, %c0_166, %c0_167] : memref<12x1x16xf32, #tpu.memory_space<vmem>>, vector<1x1x16xf32>
    %270 = vector.shape_cast %269 : vector<1x1x16xf32> to vector<1x16xf32>
    %271 = vector.broadcast %270 : vector<1x16xf32> to vector<64x16xf32>
    %272 = arith.addf %268, %271 : vector<64x16xf32>
    %c9 = arith.constant 9 : index
    %c0_168 = arith.constant 0 : index
    %c0_169 = arith.constant 0 : index
    %273 = vector.load %arg5[%c9, %c0_168, %c0_169] : memref<12x32x16xf32, #tpu.memory_space<vmem>>, vector<1x32x16xf32>
    %274 = vector.shape_cast %273 : vector<1x32x16xf32> to vector<32x16xf32>
    %cst_170 = arith.constant dense<0.000000e+00> : vector<64x16xf32>
    %275 = tpu.matmul %226, %274, %cst_170 {dimension_numbers = #tpu.dot_dimension_numbers<[1], [0], [0], [1], [0, 0, 1, 1], [], []>} : vector<64x32xf32>, vector<32x16xf32>, vector<64x16xf32> -> vector<64x16xf32>
    %c9_171 = arith.constant 9 : index
    %c0_172 = arith.constant 0 : index
    %c0_173 = arith.constant 0 : index
    %276 = vector.load %arg6[%c9_171, %c0_172, %c0_173] : memref<12x1x16xf32, #tpu.memory_space<vmem>>, vector<1x1x16xf32>
    %277 = vector.shape_cast %276 : vector<1x1x16xf32> to vector<1x16xf32>
    %278 = vector.broadcast %277 : vector<1x16xf32> to vector<64x16xf32>
    %279 = arith.addf %275, %278 : vector<64x16xf32>
    %c11 = arith.constant 11 : index
    %c0_174 = arith.constant 0 : index
    %c0_175 = arith.constant 0 : index
    %280 = vector.load %arg5[%c11, %c0_174, %c0_175] : memref<12x32x16xf32, #tpu.memory_space<vmem>>, vector<1x32x16xf32>
    %281 = vector.shape_cast %280 : vector<1x32x16xf32> to vector<32x16xf32>
    %cst_176 = arith.constant dense<0.000000e+00> : vector<64x16xf32>
    %282 = tpu.matmul %226, %281, %cst_176 {dimension_numbers = #tpu.dot_dimension_numbers<[1], [0], [0], [1], [0, 0, 1, 1], [], []>} : vector<64x32xf32>, vector<32x16xf32>, vector<64x16xf32> -> vector<64x16xf32>
    %c11_177 = arith.constant 11 : index
    %c0_178 = arith.constant 0 : index
    %c0_179 = arith.constant 0 : index
    %283 = vector.load %arg6[%c11_177, %c0_178, %c0_179] : memref<12x1x16xf32, #tpu.memory_space<vmem>>, vector<1x1x16xf32>
    %284 = vector.shape_cast %283 : vector<1x1x16xf32> to vector<1x16xf32>
    %285 = vector.broadcast %284 : vector<1x16xf32> to vector<64x16xf32>
    %286 = arith.addf %282, %285 : vector<64x16xf32>
    %cst_180 = arith.constant dense<0.000000e+00> : vector<64x64xf32>
    %287 = tpu.matmul %272, %279, %cst_180 {dimension_numbers = #tpu.dot_dimension_numbers<[1], [1], [0], [0], [0, 0, 1, 0], [], []>} : vector<64x16xf32>, vector<64x16xf32>, vector<64x64xf32> -> vector<64x64xf32>
    %cst_181 = arith.constant 2.500000e-01 : f32
    %288 = vector.broadcast %cst_181 : f32 to vector<64x64xf32>
    %289 = arith.mulf %287, %288 : vector<64x64xf32>
    %290 = arith.addf %289, %31 : vector<64x64xf32>
    %cst_182 = arith.constant dense<0xFF800000> : vector<64xf32>
    %291 = vector.multi_reduction <maximumf>, %290, %cst_182 [1] : vector<64x64xf32> to vector<64xf32>
    %292 = vector.shape_cast %291 : vector<64xf32> to vector<64x1xf32>
    %293 = vector.broadcast %292 : vector<64x1xf32> to vector<64x64xf32>
    %294 = arith.subf %290, %293 : vector<64x64xf32>
    %295 = math.exp %294 : vector<64x64xf32>
    %cst_183 = arith.constant dense<0.000000e+00> : vector<64xf32>
    %296 = vector.multi_reduction <add>, %295, %cst_183 [1] : vector<64x64xf32> to vector<64xf32>
    %297 = vector.shape_cast %296 : vector<64xf32> to vector<64x1xf32>
    %298 = tpu.reciprocal %297 {approx = true} : vector<64x1xf32> -> vector<64x1xf32>
    %299 = vector.broadcast %298 : vector<64x1xf32> to vector<64x64xf32>
    %300 = arith.mulf %295, %299 : vector<64x64xf32>
    %cst_184 = arith.constant dense<0.000000e+00> : vector<64x16xf32>
    %301 = tpu.matmul %300, %286, %cst_184 {dimension_numbers = #tpu.dot_dimension_numbers<[1], [0], [0], [1], [0, 0, 1, 1], [], []>} : vector<64x64xf32>, vector<64x16xf32>, vector<64x16xf32> -> vector<64x16xf32>
    %c3_185 = arith.constant 3 : index
    %c0_186 = arith.constant 0 : index
    %c0_187 = arith.constant 0 : index
    %302 = vector.load %arg7[%c3_185, %c0_186, %c0_187] : memref<4x16x32xf32, #tpu.memory_space<vmem>>, vector<1x16x32xf32>
    %303 = vector.shape_cast %302 : vector<1x16x32xf32> to vector<16x32xf32>
    %cst_188 = arith.constant dense<0.000000e+00> : vector<64x32xf32>
    %304 = tpu.matmul %301, %303, %cst_188 {dimension_numbers = #tpu.dot_dimension_numbers<[1], [0], [0], [1], [0, 0, 1, 1], [], []>} : vector<64x16xf32>, vector<16x32xf32>, vector<64x32xf32> -> vector<64x32xf32>
    %305 = arith.addf %265, %304 : vector<64x32xf32>
    %c1_189 = arith.constant 1 : index
    %c0_190 = arith.constant 0 : index
    %c0_191 = arith.constant 0 : index
    %306 = vector.load %arg8[%c1_189, %c0_190, %c0_191] : memref<2x1x32xf32, #tpu.memory_space<vmem>>, vector<1x1x32xf32>
    %307 = vector.shape_cast %306 : vector<1x1x32xf32> to vector<1x32xf32>
    %308 = vector.broadcast %307 : vector<1x32xf32> to vector<64x32xf32>
    %309 = arith.addf %305, %308 : vector<64x32xf32>
    %310 = arith.addf %226, %309 : vector<64x32xf32>
    %c4_192 = arith.constant 4 : index
    %c0_193 = arith.constant 0 : index
    %c0_194 = arith.constant 0 : index
    %311 = vector.load %arg9[%c4_192, %c0_193, %c0_194] : memref<8x1x32xf32, #tpu.memory_space<vmem>>, vector<1x1x32xf32>
    %312 = vector.shape_cast %311 : vector<1x1x32xf32> to vector<1x32xf32>
    %c5_195 = arith.constant 5 : index
    %c0_196 = arith.constant 0 : index
    %c0_197 = arith.constant 0 : index
    %313 = vector.load %arg9[%c5_195, %c0_196, %c0_197] : memref<8x1x32xf32, #tpu.memory_space<vmem>>, vector<1x1x32xf32>
    %314 = vector.shape_cast %313 : vector<1x1x32xf32> to vector<1x32xf32>
    %cst_198 = arith.constant dense<0.000000e+00> : vector<64xf32>
    %315 = vector.multi_reduction <add>, %310, %cst_198 [1] : vector<64x32xf32> to vector<64xf32>
    %316 = vector.shape_cast %315 : vector<64xf32> to vector<64x1xf32>
    %cst_199 = arith.constant 3.200000e+01 : f32
    %317 = vector.broadcast %cst_199 : f32 to vector<64x1xf32>
    %318 = arith.divf %316, %317 : vector<64x1xf32>
    %319 = vector.broadcast %318 : vector<64x1xf32> to vector<64x32xf32>
    %320 = arith.subf %310, %319 : vector<64x32xf32>
    %321 = arith.mulf %320, %320 : vector<64x32xf32>
    %cst_200 = arith.constant dense<0.000000e+00> : vector<64xf32>
    %322 = vector.multi_reduction <add>, %321, %cst_200 [1] : vector<64x32xf32> to vector<64xf32>
    %323 = vector.shape_cast %322 : vector<64xf32> to vector<64x1xf32>
    %cst_201 = arith.constant 3.200000e+01 : f32
    %324 = vector.broadcast %cst_201 : f32 to vector<64x1xf32>
    %325 = arith.divf %323, %324 : vector<64x1xf32>
    %326 = vector.broadcast %318 : vector<64x1xf32> to vector<64x32xf32>
    %327 = arith.subf %310, %326 : vector<64x32xf32>
    %cst_202 = arith.constant 9.99999974E-6 : f32
    %328 = vector.broadcast %cst_202 : f32 to vector<64x1xf32>
    %329 = arith.addf %325, %328 : vector<64x1xf32>
    %330 = math.rsqrt %329 : vector<64x1xf32>
    %331 = vector.broadcast %330 : vector<64x1xf32> to vector<64x32xf32>
    %332 = arith.mulf %327, %331 : vector<64x32xf32>
    %333 = vector.broadcast %312 : vector<1x32xf32> to vector<64x32xf32>
    %334 = arith.mulf %332, %333 : vector<64x32xf32>
    %335 = vector.broadcast %314 : vector<1x32xf32> to vector<64x32xf32>
    %336 = arith.addf %334, %335 : vector<64x32xf32>
    %c1_203 = arith.constant 1 : index
    %c0_204 = arith.constant 0 : index
    %c0_205 = arith.constant 0 : index
    %337 = vector.load %arg10[%c1_203, %c0_204, %c0_205] : memref<2x32x64xf32, #tpu.memory_space<vmem>>, vector<1x32x64xf32>
    %338 = vector.shape_cast %337 : vector<1x32x64xf32> to vector<32x64xf32>
    %cst_206 = arith.constant dense<0.000000e+00> : vector<64x64xf32>
    %339 = tpu.matmul %336, %338, %cst_206 {dimension_numbers = #tpu.dot_dimension_numbers<[1], [0], [0], [1], [0, 0, 1, 1], [], []>} : vector<64x32xf32>, vector<32x64xf32>, vector<64x64xf32> -> vector<64x64xf32>
    %c1_207 = arith.constant 1 : index
    %c0_208 = arith.constant 0 : index
    %c0_209 = arith.constant 0 : index
    %340 = vector.load %arg11[%c1_207, %c0_208, %c0_209] : memref<2x1x64xf32, #tpu.memory_space<vmem>>, vector<1x1x64xf32>
    %341 = vector.shape_cast %340 : vector<1x1x64xf32> to vector<1x64xf32>
    %342 = vector.broadcast %341 : vector<1x64xf32> to vector<64x64xf32>
    %343 = arith.addf %339, %342 : vector<64x64xf32>
    %cst_210 = arith.constant 0.000000e+00 : f32
    %344 = vector.broadcast %cst_210 : f32 to vector<64x64xf32>
    %345 = arith.maximumf %343, %344 : vector<64x64xf32>
    %c1_211 = arith.constant 1 : index
    %c0_212 = arith.constant 0 : index
    %c0_213 = arith.constant 0 : index
    %346 = vector.load %arg12[%c1_211, %c0_212, %c0_213] : memref<2x64x32xf32, #tpu.memory_space<vmem>>, vector<1x64x32xf32>
    %347 = vector.shape_cast %346 : vector<1x64x32xf32> to vector<64x32xf32>
    %cst_214 = arith.constant dense<0.000000e+00> : vector<64x32xf32>
    %348 = tpu.matmul %345, %347, %cst_214 {dimension_numbers = #tpu.dot_dimension_numbers<[1], [0], [0], [1], [0, 0, 1, 1], [], []>} : vector<64x64xf32>, vector<64x32xf32>, vector<64x32xf32> -> vector<64x32xf32>
    %c1_215 = arith.constant 1 : index
    %c0_216 = arith.constant 0 : index
    %c0_217 = arith.constant 0 : index
    %349 = vector.load %arg13[%c1_215, %c0_216, %c0_217] : memref<2x1x32xf32, #tpu.memory_space<vmem>>, vector<1x1x32xf32>
    %350 = vector.shape_cast %349 : vector<1x1x32xf32> to vector<1x32xf32>
    %351 = vector.broadcast %350 : vector<1x32xf32> to vector<64x32xf32>
    %352 = arith.addf %348, %351 : vector<64x32xf32>
    %353 = arith.addf %336, %352 : vector<64x32xf32>
    %c6_218 = arith.constant 6 : index
    %c0_219 = arith.constant 0 : index
    %c0_220 = arith.constant 0 : index
    %354 = vector.load %arg9[%c6_218, %c0_219, %c0_220] : memref<8x1x32xf32, #tpu.memory_space<vmem>>, vector<1x1x32xf32>
    %355 = vector.shape_cast %354 : vector<1x1x32xf32> to vector<1x32xf32>
    %c7_221 = arith.constant 7 : index
    %c0_222 = arith.constant 0 : index
    %c0_223 = arith.constant 0 : index
    %356 = vector.load %arg9[%c7_221, %c0_222, %c0_223] : memref<8x1x32xf32, #tpu.memory_space<vmem>>, vector<1x1x32xf32>
    %357 = vector.shape_cast %356 : vector<1x1x32xf32> to vector<1x32xf32>
    %cst_224 = arith.constant dense<0.000000e+00> : vector<64xf32>
    %358 = vector.multi_reduction <add>, %353, %cst_224 [1] : vector<64x32xf32> to vector<64xf32>
    %359 = vector.shape_cast %358 : vector<64xf32> to vector<64x1xf32>
    %cst_225 = arith.constant 3.200000e+01 : f32
    %360 = vector.broadcast %cst_225 : f32 to vector<64x1xf32>
    %361 = arith.divf %359, %360 : vector<64x1xf32>
    %362 = vector.broadcast %361 : vector<64x1xf32> to vector<64x32xf32>
    %363 = arith.subf %353, %362 : vector<64x32xf32>
    %364 = arith.mulf %363, %363 : vector<64x32xf32>
    %cst_226 = arith.constant dense<0.000000e+00> : vector<64xf32>
    %365 = vector.multi_reduction <add>, %364, %cst_226 [1] : vector<64x32xf32> to vector<64xf32>
    %366 = vector.shape_cast %365 : vector<64xf32> to vector<64x1xf32>
    %cst_227 = arith.constant 3.200000e+01 : f32
    %367 = vector.broadcast %cst_227 : f32 to vector<64x1xf32>
    %368 = arith.divf %366, %367 : vector<64x1xf32>
    %369 = vector.broadcast %361 : vector<64x1xf32> to vector<64x32xf32>
    %370 = arith.subf %353, %369 : vector<64x32xf32>
    %cst_228 = arith.constant 9.99999974E-6 : f32
    %371 = vector.broadcast %cst_228 : f32 to vector<64x1xf32>
    %372 = arith.addf %368, %371 : vector<64x1xf32>
    %373 = math.rsqrt %372 : vector<64x1xf32>
    %374 = vector.broadcast %373 : vector<64x1xf32> to vector<64x32xf32>
    %375 = arith.mulf %370, %374 : vector<64x32xf32>
    %376 = vector.broadcast %355 : vector<1x32xf32> to vector<64x32xf32>
    %377 = arith.mulf %375, %376 : vector<64x32xf32>
    %378 = vector.broadcast %357 : vector<1x32xf32> to vector<64x32xf32>
    %379 = arith.addf %377, %378 : vector<64x32xf32>
    %c0_229 = arith.constant 0 : index
    %c0_230 = arith.constant 0 : index
    %c0_231 = arith.constant 0 : index
    %380 = vector.load %arg14[%c0_229, %c0_230, %c0_231] : memref<2x1x32xf32, #tpu.memory_space<vmem>>, vector<1x1x32xf32>
    %381 = vector.shape_cast %380 : vector<1x1x32xf32> to vector<1x32xf32>
    %c1_232 = arith.constant 1 : index
    %c0_233 = arith.constant 0 : index
    %c0_234 = arith.constant 0 : index
    %382 = vector.load %arg14[%c1_232, %c0_233, %c0_234] : memref<2x1x32xf32, #tpu.memory_space<vmem>>, vector<1x1x32xf32>
    %383 = vector.shape_cast %382 : vector<1x1x32xf32> to vector<1x32xf32>
    %cst_235 = arith.constant dense<0.000000e+00> : vector<64xf32>
    %384 = vector.multi_reduction <add>, %379, %cst_235 [1] : vector<64x32xf32> to vector<64xf32>
    %385 = vector.shape_cast %384 : vector<64xf32> to vector<64x1xf32>
    %cst_236 = arith.constant 3.200000e+01 : f32
    %386 = vector.broadcast %cst_236 : f32 to vector<64x1xf32>
    %387 = arith.divf %385, %386 : vector<64x1xf32>
    %388 = vector.broadcast %387 : vector<64x1xf32> to vector<64x32xf32>
    %389 = arith.subf %379, %388 : vector<64x32xf32>
    %390 = arith.mulf %389, %389 : vector<64x32xf32>
    %cst_237 = arith.constant dense<0.000000e+00> : vector<64xf32>
    %391 = vector.multi_reduction <add>, %390, %cst_237 [1] : vector<64x32xf32> to vector<64xf32>
    %392 = vector.shape_cast %391 : vector<64xf32> to vector<64x1xf32>
    %cst_238 = arith.constant 3.200000e+01 : f32
    %393 = vector.broadcast %cst_238 : f32 to vector<64x1xf32>
    %394 = arith.divf %392, %393 : vector<64x1xf32>
    %395 = vector.broadcast %387 : vector<64x1xf32> to vector<64x32xf32>
    %396 = arith.subf %379, %395 : vector<64x32xf32>
    %cst_239 = arith.constant 9.99999974E-6 : f32
    %397 = vector.broadcast %cst_239 : f32 to vector<64x1xf32>
    %398 = arith.addf %394, %397 : vector<64x1xf32>
    %399 = math.rsqrt %398 : vector<64x1xf32>
    %400 = vector.broadcast %399 : vector<64x1xf32> to vector<64x32xf32>
    %401 = arith.mulf %396, %400 : vector<64x32xf32>
    %402 = vector.broadcast %381 : vector<1x32xf32> to vector<64x32xf32>
    %403 = arith.mulf %401, %402 : vector<64x32xf32>
    %404 = vector.broadcast %383 : vector<1x32xf32> to vector<64x32xf32>
    %405 = arith.addf %403, %404 : vector<64x32xf32>
    %cst_240 = arith.constant dense<0.000000e+00> : vector<8x32xf32>
    %406 = tpu.matmul %39, %405, %cst_240 {dimension_numbers = #tpu.dot_dimension_numbers<[1], [0], [0], [1], [0, 0, 1, 1], [], []>} : vector<8x64xf32>, vector<64x32xf32>, vector<8x32xf32> -> vector<8x32xf32>
    %c0_241 = arith.constant 0 : index
    %c0_242 = arith.constant 0 : index
    %407 = vector.load %arg15[%c0_241, %c0_242] : memref<8x32xf32, #tpu.memory_space<vmem>>, vector<8x32xf32>
    tpu.vector_store %arg15[%c0_241, %c0_242], %406 {strides = array<i32>} : memref<8x32xf32, #tpu.memory_space<vmem>>, vector<8x32xf32>,
    return
  }
}

</mosaic_0001>

<llo_original>
// kernel: transformer_encoder.1
$region0: #{transformer_encoder.1}
  #allocation0 [shape = 'u32[]', space=smem, size = 0x4, offset = 0x4, fixed_abs, tag = 'smem constant byte address 0x4 - core index']
  #allocation1 [shape = 'u32[72,128]{1,0:T(1,128)}', space=vmem, size = 0x9000, scoped, tag = 'internal scratch']
  %s0 = inlined_call_operand.vmem [shape: f32[64,4], index: 0, kind: input, shape index: {}]
  %s1 = inlined_call_operand.vmem [shape: f32[16,4], index: 1, kind: input, shape index: {}]
  %s2 = inlined_call_operand.vmem [shape: f32[16,32], index: 2, kind: input, shape index: {}]
  %s3 = inlined_call_operand.vmem [shape: f32[3,4,32], index: 3, kind: input, shape index: {}]
  %s4 = inlined_call_operand.vmem [shape: f32[4,32], index: 4, kind: input, shape index: {}]
  %s5 = inlined_call_operand.vmem [shape: f32[12,32,16], index: 5, kind: input, shape index: {}]
  %s6 = inlined_call_operand.vmem [shape: f32[12,1,16], index: 6, kind: input, shape index: {}]
  %s7 = inlined_call_operand.vmem [shape: f32[4,16,32], index: 7, kind: input, shape index: {}]
  %s8 = inlined_call_operand.vmem [shape: f32[2,1,32], index: 8, kind: input, shape index: {}]
  %s9 = inlined_call_operand.vmem [shape: f32[8,1,32], index: 9, kind: input, shape index: {}]
  %s10 = inlined_call_operand.vmem [shape: f32[2,32,64], index: 10, kind: input, shape index: {}]
  %s11 = inlined_call_operand.vmem [shape: f32[2,1,64], index: 11, kind: input, shape index: {}]
  %s12 = inlined_call_operand.vmem [shape: f32[2,64,32], index: 12, kind: input, shape index: {}]
  %s13 = inlined_call_operand.vmem [shape: f32[2,1,32], index: 13, kind: input, shape index: {}]
  %s14 = inlined_call_operand.vmem [shape: f32[2,1,32], index: 14, kind: input, shape index: {}]
  %s15 = inlined_call_operand.hbm [shape: f32[8,32], index: 15, kind: output, shape index: {}]
  %s16 = sld [smem:[#allocation0]]
  $region70: #{transformer_encoder.1} parent=0
    _
  %s18 = ssub.s32 1, %s16
  %s19 = scalar_select 0, %s18, %s16
  $region1: #{transformer_encoder.1} parent=0
    #allocation2 [shape = 'u8[4096]{0}', space=vmem, size = 0x1000, scoped, tag = 'output window, operand 0, single buffered']
    #allocation3 [shape = 's32[1]{0}', space=sflag, size = 0x4, scoped, tag = 'scoped memory for transformer_encoder.1']
    %20 = vsyncpa [#allocation3], 0
    // Predicated region
    $region2: #{transformer_encoder.1} parent=1 // pred_check
      _
    $region3: #{transformer_encoder.1} parent=1 // pred_check_branch
      %22 = sbr.rel (0) target = $region5
    $region4: #{transformer_encoder.1} parent=1 // pred_region
      _
    $region5: #{transformer_encoder.1} parent=1 // pred_fallthru
      _
    // Predicated region
    $region6: #{transformer_encoder.1} parent=1 // pred_check
      _
    $region7: #{transformer_encoder.1} parent=1 // pred_check_branch
      %24 = sbr.rel (0) target = $region9
    $region8: #{transformer_encoder.1} parent=1 // pred_region
      _
    $region9: #{transformer_encoder.1} parent=1 // pred_fallthru
      _
    // Predicated region
    $region10: #{transformer_encoder.1} parent=1 // pred_check
      _
    $region11: #{transformer_encoder.1} parent=1 // pred_check_branch
      %26 = sbr.rel (0) target = $region13
    $region12: #{transformer_encoder.1} parent=1 // pred_region
      _
    $region13: #{transformer_encoder.1} parent=1 // pred_fallthru
      _
    // Predicated region
    $region14: #{transformer_encoder.1} parent=1 // pred_check
      _
    $region15: #{transformer_encoder.1} parent=1 // pred_check_branch
      %28 = sbr.rel (0) target = $region17
    $region16: #{transformer_encoder.1} parent=1 // pred_region
      _
    $region17: #{transformer_encoder.1} parent=1 // pred_fallthru
      _
    // Predicated region
    $region18: #{transformer_encoder.1} parent=1 // pred_check
      _
    $region19: #{transformer_encoder.1} parent=1 // pred_check_branch
      %30 = sbr.rel (0) target = $region21
    $region20: #{transformer_encoder.1} parent=1 // pred_region
      _
    $region21: #{transformer_encoder.1} parent=1 // pred_fallthru
      _
    // Predicated region
    $region22: #{transformer_encoder.1} parent=1 // pred_check
      _
    $region23: #{transformer_encoder.1} parent=1 // pred_check_branch
      %32 = sbr.rel (0) target = $region25
    $region24: #{transformer_encoder.1} parent=1 // pred_region
      _
    $region25: #{transformer_encoder.1} parent=1 // pred_fallthru
      _
    // Predicated region
    $region26: #{transformer_encoder.1} parent=1 // pred_check
      _
    $region27: #{transformer_encoder.1} parent=1 // pred_check_branch
      %34 = sbr.rel (0) target = $region29
    $region28: #{transformer_encoder.1} parent=1 // pred_region
      _
    $region29: #{transformer_encoder.1} parent=1 // pred_fallthru
      _
    // Predicated region
    $region30: #{transformer_encoder.1} parent=1 // pred_check
      _
    $region31: #{transformer_encoder.1} parent=1 // pred_check_branch
      %36 = sbr.rel (0) target = $region33
    $region32: #{transformer_encoder.1} parent=1 // pred_region
      _
    $region33: #{transformer_encoder.1} parent=1 // pred_fallthru
      _
    // Predicated region
    $region34: #{transformer_encoder.1} parent=1 // pred_check
      _
    $region35: #{transformer_encoder.1} parent=1 // pred_check_branch
      %38 = sbr.rel (0) target = $region37
    $region36: #{transformer_encoder.1} parent=1 // pred_region
      _
    $region37: #{transformer_encoder.1} parent=1 // pred_fallthru
      _
    // Predicated region
    $region38: #{transformer_encoder.1} parent=1 // pred_check
      _
    $region39: #{transformer_encoder.1} parent=1 // pred_check_branch
      %40 = sbr.rel (0) target = $region41
    $region40: #{transformer_encoder.1} parent=1 // pred_region
      _
    $region41: #{transformer_encoder.1} parent=1 // pred_fallthru
      _
    // Predicated region
    $region42: #{transformer_encoder.1} parent=1 // pred_check
      _
    $region43: #{transformer_encoder.1} parent=1 // pred_check_branch
      %42 = sbr.rel (0) target = $region45
    $region44: #{transformer_encoder.1} parent=1 // pred_region
      _
    $region45: #{transformer_encoder.1} parent=1 // pred_fallthru
      _
    // Predicated region
    $region46: #{transformer_encoder.1} parent=1 // pred_check
      _
    $region47: #{transformer_encoder.1} parent=1 // pred_check_branch
      %44 = sbr.rel (0) target = $region49
    $region48: #{transformer_encoder.1} parent=1 // pred_region
      _
    $region49: #{transformer_encoder.1} parent=1 // pred_fallthru
      _
    // Predicated region
    $region50: #{transformer_encoder.1} parent=1 // pred_check
      _
    $region51: #{transformer_encoder.1} parent=1 // pred_check_branch
      %46 = sbr.rel (0) target = $region53
    $region52: #{transformer_encoder.1} parent=1 // pred_region
      _
    $region53: #{transformer_encoder.1} parent=1 // pred_fallthru
      _
    // Predicated region
    $region54: #{transformer_encoder.1} parent=1 // pred_check
      _
    $region55: #{transformer_encoder.1} parent=1 // pred_check_branch
      %48 = sbr.rel (0) target = $region57
    $region56: #{transformer_encoder.1} parent=1 // pred_region
      _
    $region57: #{transformer_encoder.1} parent=1 // pred_fallthru
      _
    // Predicated region
    $region58: #{transformer_encoder.1} parent=1 // pred_check
      _
    $region59: #{transformer_encoder.1} parent=1 // pred_check_branch
      %50 = sbr.rel (0) target = $region61
    $region60: #{transformer_encoder.1} parent=1 // pred_region
      _
    $region61: #{transformer_encoder.1} parent=1 // pred_fallthru
      _
    %v51 = vlaneseq
    %v52 = vshrl.u32 %v51, 7
    %v53 = vadd.s32 %v52, 8
    %v54 = vadd.s32 %v52, 16
    %v55 = vadd.s32 %v52, 24
    %v56 = vadd.s32 %v52, 32
    %v57 = vadd.s32 %v52, 40
    %v58 = vadd.s32 %v52, 48
    %v59 = vadd.s32 %v52, 56
    %v60 = vlaneseq
    %v61 = vand.u32 %v60, 127
    %v62 = vshra.s32 %v52, 3
    %v63 = vshra.s32 %v53, 3
    %v64 = vshra.s32 %v54, 3
    %v65 = vshra.s32 %v55, 3
    %v66 = vshra.s32 %v56, 3
    %v67 = vshra.s32 %v57, 3
    %v68 = vshra.s32 %v58, 3
    %v69 = vshra.s32 %v59, 3
    %v70 = vshra.s32 %v61, 3
    %vm71 = vcmp.eq.s32.totalorder %v62, %v70
    %vm72 = vcmp.eq.s32.totalorder %v63, %v70
    %vm73 = vcmp.eq.s32.totalorder %v64, %v70
    %vm74 = vcmp.eq.s32.totalorder %v65, %v70
    %vm75 = vcmp.eq.s32.totalorder %v66, %v70
    %vm76 = vcmp.eq.s32.totalorder %v67, %v70
    %vm77 = vcmp.eq.s32.totalorder %v68, %v70
    %vm78 = vcmp.eq.s32.totalorder %v69, %v70
    %v79 = vand.u32 %v52, 7
    %v80 = vand.u32 %v53, 7
    %v81 = vand.u32 %v54, 7
    %v82 = vand.u32 %v55, 7
    %v83 = vand.u32 %v56, 7
    %v84 = vand.u32 %v57, 7
    %v85 = vand.u32 %v58, 7
    %v86 = vand.u32 %v59, 7
    %v87 = vand.u32 %v61, 7
    %v88 = vadd.s32 %v79, 7
    %v89 = vadd.s32 %v80, 7
    %v90 = vadd.s32 %v81, 7
    %v91 = vadd.s32 %v82, 7
    %v92 = vadd.s32 %v83, 7
    %v93 = vadd.s32 %v84, 7
    %v94 = vadd.s32 %v85, 7
    %v95 = vadd.s32 %v86, 7
    %v96 = vand.u32 %v88, 7
    %v97 = vand.u32 %v89, 7
    %v98 = vand.u32 %v90, 7
    %v99 = vand.u32 %v91, 7
    %v100 = vand.u32 %v92, 7
    %v101 = vand.u32 %v93, 7
    %v102 = vand.u32 %v94, 7
    %v103 = vand.u32 %v95, 7
    %v104 = vadd.s32 %v79, 1
    %v105 = vadd.s32 %v80, 1
    %v106 = vadd.s32 %v81, 1
    %v107 = vadd.s32 %v82, 1
    %v108 = vadd.s32 %v83, 1
    %v109 = vadd.s32 %v84, 1
    %v110 = vadd.s32 %v85, 1
    %v111 = vadd.s32 %v86, 1
    %v112 = vand.u32 %v104, 7
    %v113 = vand.u32 %v105, 7
    %v114 = vand.u32 %v106, 7
    %v115 = vand.u32 %v107, 7
    %v116 = vand.u32 %v108, 7
    %v117 = vand.u32 %v109, 7
    %v118 = vand.u32 %v110, 7
    %v119 = vand.u32 %v111, 7
    %vm120 = vcmp.eq.s32.totalorder %v87, %v96
    %vm121 = vcmp.eq.s32.totalorder %v87, %v97
    %vm122 = vcmp.eq.s32.totalorder %v87, %v98
    %vm123 = vcmp.eq.s32.totalorder %v87, %v99
    %vm124 = vcmp.eq.s32.totalorder %v87, %v100
    %vm125 = vcmp.eq.s32.totalorder %v87, %v101
    %vm126 = vcmp.eq.s32.totalorder %v87, %v102
    %vm127 = vcmp.eq.s32.totalorder %v87, %v103
    %vm128 = vmand %vm71, %vm120
    %vm129 = vmand %vm72, %vm121
    %vm130 = vmand %vm73, %vm122
    %vm131 = vmand %vm74, %vm123
    %vm132 = vmand %vm75, %vm124
    %vm133 = vmand %vm76, %vm125
    %vm134 = vmand %vm77, %vm126
    %vm135 = vmand %vm78, %vm127
    %v136 = vsel %vm128, 1.0, 0.0
    %v137 = vsel %vm129, 1.0, 0.0
    %v138 = vsel %vm130, 1.0, 0.0
    %v139 = vsel %vm131, 1.0, 0.0
    %v140 = vsel %vm132, 1.0, 0.0
    %v141 = vsel %vm133, 1.0, 0.0
    %v142 = vsel %vm134, 1.0, 0.0
    %v143 = vsel %vm135, 1.0, 0.0
    %vm144 = vcmp.eq.s32.totalorder %v87, %v112
    %vm145 = vcmp.eq.s32.totalorder %v87, %v113
    %vm146 = vcmp.eq.s32.totalorder %v87, %v114
    %vm147 = vcmp.eq.s32.totalorder %v87, %v115
    %vm148 = vcmp.eq.s32.totalorder %v87, %v116
    %vm149 = vcmp.eq.s32.totalorder %v87, %v117
    %vm150 = vcmp.eq.s32.totalorder %v87, %v118
    %vm151 = vcmp.eq.s32.totalorder %v87, %v119
    %vm152 = vmand %vm71, %vm144
    %vm153 = vmand %vm72, %vm145
    %vm154 = vmand %vm73, %vm146
    %vm155 = vmand %vm74, %vm147
    %vm156 = vmand %vm75, %vm148
    %vm157 = vmand %vm76, %vm149
    %vm158 = vmand %vm77, %vm150
    %vm159 = vmand %vm78, %vm151
    %v160 = vsel %vm152, 1.0, 0.0
    %v161 = vsel %vm153, 1.0, 0.0
    %v162 = vsel %vm154, 1.0, 0.0
    %v163 = vsel %vm155, 1.0, 0.0
    %v164 = vsel %vm156, 1.0, 0.0
    %v165 = vsel %vm157, 1.0, 0.0
    %v166 = vsel %vm158, 1.0, 0.0
    %v167 = vsel %vm159, 1.0, 0.0
    %v168 = vsel %vm71, 0.0, -1e+09
    %v169 = vsel %vm72, 0.0, -1e+09
    %v170 = vsel %vm73, 0.0, -1e+09
    %v171 = vsel %vm74, 0.0, -1e+09
    %v172 = vsel %vm75, 0.0, -1e+09
    %v173 = vsel %vm76, 0.0, -1e+09
    %v174 = vsel %vm77, 0.0, -1e+09
    %v175 = vsel %vm78, 0.0, -1e+09
    %vm176 = vcmp.eq.s32.totalorder %v70, %v52
    %v177 = vsel %vm176, 0.125, 0.0
    %v178 = vshra.s32 %v52, 5
    %v179 = vshra.s32 %v53, 5
    %v180 = vshra.s32 %v54, 5
    %v181 = vshra.s32 %v55, 5
    %v182 = vshra.s32 %v56, 5
    %v183 = vshra.s32 %v57, 5
    %v184 = vshra.s32 %v58, 5
    %v185 = vshra.s32 %v59, 5
    %v186 = vshll.u32 %v178, 3
    %v187 = vshll.u32 %v179, 3
    %v188 = vshll.u32 %v180, 3
    %v189 = vshll.u32 %v181, 3
    %v190 = vshll.u32 %v182, 3
    %v191 = vshll.u32 %v183, 3
    %v192 = vshll.u32 %v184, 3
    %v193 = vshll.u32 %v185, 3
    %v194 = vor.u32 %v186, %v79
    %v195 = vor.u32 %v187, %v80
    %v196 = vor.u32 %v188, %v81
    %v197 = vor.u32 %v189, %v82
    %v198 = vor.u32 %v190, %v83
    %v199 = vor.u32 %v191, %v84
    %v200 = vor.u32 %v192, %v85
    %v201 = vor.u32 %v193, %v86
    %vm202 = vcmp.eq.s32.totalorder %v61, %v194
    %vm203 = vcmp.eq.s32.totalorder %v61, %v195
    %vm204 = vcmp.eq.s32.totalorder %v61, %v196
    %vm205 = vcmp.eq.s32.totalorder %v61, %v197
    %vm206 = vcmp.eq.s32.totalorder %v61, %v198
    %vm207 = vcmp.eq.s32.totalorder %v61, %v199
    %vm208 = vcmp.eq.s32.totalorder %v61, %v200
    %vm209 = vcmp.eq.s32.totalorder %v61, %v201
    %v210 = vsel %vm202, 1.0, 0.0
    %v211 = vsel %vm203, 1.0, 0.0
    %v212 = vsel %vm204, 1.0, 0.0
    %v213 = vsel %vm205, 1.0, 0.0
    %v214 = vsel %vm206, 1.0, 0.0
    %v215 = vsel %vm207, 1.0, 0.0
    %v216 = vsel %vm208, 1.0, 0.0
    %v217 = vsel %vm209, 1.0, 0.0
    %v218 = vld [vmem:[%s0] sm:$0xff]
    %v219 = vld [vmem:[%s0 + $0x8] sm:$0xff]
    %v220 = vld [vmem:[%s0 + $0x10] sm:$0xff]
    %v221 = vld [vmem:[%s0 + $0x18] sm:$0xff]
    %v222 = vld [vmem:[%s0 + $0x20] sm:$0xff]
    %v223 = vld [vmem:[%s0 + $0x28] sm:$0xff]
    %v224 = vld [vmem:[%s0 + $0x30] sm:$0xff]
    %v225 = vld [vmem:[%s0 + $0x38] sm:$0xff]
    %v226 = vld [vmem:[%s3] sm:$0xf]
    %vm227 = vcmask 31744
    %v229 = vsel %vm227, %v218, 0
    %v232 = vsel %vm227, %v219, 0
    %v235 = vsel %vm227, %v220, 0
    %v238 = vsel %vm227, %v221, 0
    %v241 = vsel %vm227, %v222, 0
    %v244 = vsel %vm227, %v223, 0
    %v247 = vsel %vm227, %v224, 0
    %v250 = vsel %vm227, %v225, 0
    %vm252 = vcmask 1043456
    %v254 = vsel %vm252, %v226, 0
    %256 = vmatpush.msra.mxu0 0.0
    %257 = vmatpush.msra.mxu0 0.0
    %258 = vmatpush.msra.mxu0 0.0
    %259 = vmatpush.msra.mxu0 0.0
    %260 = vmatpush.msra.mxu0 0.0
    %261 = vmatpush.msra.mxu0 0.0
    %262 = vmatpush.msra.mxu0 0.0
    %263 = vmatpush.msra.mxu0 0.0
    %264 = vmatpush.msra.mxu0 0.0
    %265 = vmatpush.msra.mxu0 0.0
    %266 = vmatpush.msra.mxu0 0.0
    %267 = vmatpush.msra.mxu0 0.0
    %268 = vmatpush.msra.mxu0 0.0
    %269 = vmatpush.msra.mxu0 0.0
    %270 = vmatpush.msra.mxu0 0.0
    %271 = vmatpush.msra.mxu0 %v254
    %272 = vmatmul.f32.gmra.mxu0 %v229
    %v273 = vpop.f32.mrf.mxu0
    %v274 = vadd.f32 0.0, %v273
    %275 = vmatmul.f32.gmra.mxu0 %v232
    %v276 = vpop.f32.mrf.mxu0
    %v277 = vadd.f32 0.0, %v276
    %278 = vmatmul.f32.gmra.mxu0 %v235
    %v279 = vpop.f32.mrf.mxu0
    %v280 = vadd.f32 0.0, %v279
    %281 = vmatmul.f32.gmra.mxu0 %v238
    %v282 = vpop.f32.mrf.mxu0
    %v283 = vadd.f32 0.0, %v282
    %284 = vmatmul.f32.gmra.mxu0 %v241
    %v285 = vpop.f32.mrf.mxu0
    %v286 = vadd.f32 0.0, %v285
    %287 = vmatmul.f32.gmra.mxu0 %v244
    %v288 = vpop.f32.mrf.mxu0
    %v289 = vadd.f32 0.0, %v288
    %290 = vmatmul.f32.gmra.mxu0 %v247
    %v291 = vpop.f32.mrf.mxu0
    %v292 = vadd.f32 0.0, %v291
    %293 = vmatmul.f32.gmra.mxu0 %v250
    %v294 = vpop.f32.mrf.mxu0
    %v295 = vadd.f32 0.0, %v294
    %296 = vdwg.mxu0
    %s297 = scalar_lea.vmem %s3, 4
    %v298 = vld [vmem:[%s297] sm:$0xf]
    %v300 = vsel %vm252, %v298, 0
    %302 = vmatpush.msra.mxu0 0.0
    %303 = vmatpush.msra.mxu0 0.0
    %304 = vmatpush.msra.mxu0 0.0
    %305 = vmatpush.msra.mxu0 0.0
    %306 = vmatpush.msra.mxu0 0.0
    %307 = vmatpush.msra.mxu0 0.0
    %308 = vmatpush.msra.mxu0 0.0
    %309 = vmatpush.msra.mxu0 0.0
    %310 = vmatpush.msra.mxu0 0.0
    %311 = vmatpush.msra.mxu0 0.0
    %312 = vmatpush.msra.mxu0 0.0
    %313 = vmatpush.msra.mxu0 0.0
    %314 = vmatpush.msra.mxu0 0.0
    %315 = vmatpush.msra.mxu0 0.0
    %316 = vmatpush.msra.mxu0 0.0
    %317 = vmatpush.msra.mxu0 %v300
    %318 = vmatmul.f32.gmra.mxu0 %v229
    %v319 = vpop.f32.mrf.mxu0
    %v320 = vadd.f32 0.0, %v319
    %321 = vmatmul.f32.gmra.mxu0 %v232
    %v322 = vpop.f32.mrf.mxu0
    %v323 = vadd.f32 0.0, %v322
    %324 = vmatmul.f32.gmra.mxu0 %v235
    %v325 = vpop.f32.mrf.mxu0
    %v326 = vadd.f32 0.0, %v325
    %327 = vmatmul.f32.gmra.mxu0 %v238
    %v328 = vpop.f32.mrf.mxu0
    %v329 = vadd.f32 0.0, %v328
    %330 = vmatmul.f32.gmra.mxu0 %v241
    %v331 = vpop.f32.mrf.mxu0
    %v332 = vadd.f32 0.0, %v331
    %333 = vmatmul.f32.gmra.mxu0 %v244
    %v334 = vpop.f32.mrf.mxu0
    %v335 = vadd.f32 0.0, %v334
    %336 = vmatmul.f32.gmra.mxu0 %v247
    %v337 = vpop.f32.mrf.mxu0
    %v338 = vadd.f32 0.0, %v337
    %339 = vmatmul.f32.gmra.mxu0 %v250
    %v340 = vpop.f32.mrf.mxu0
    %v341 = vadd.f32 0.0, %v340
    %342 = vdwg.mxu0
    %vm343 = vcmask 523264
    %v345 = vsel %vm343, %v136, 0
    %v348 = vsel %vm343, %v137, 0
    %v351 = vsel %vm343, %v138, 0
    %v354 = vsel %vm343, %v139, 0
    %v357 = vsel %vm343, %v140, 0
    %v360 = vsel %vm343, %v141, 0
    %v363 = vsel %vm343, %v142, 0
    %v366 = vsel %vm343, %v143, 0
    %368 = vmatpush.msra.mxu0 0.0
    %369 = vmatpush.msra.mxu0 0.0
    %370 = vmatpush.msra.mxu0 0.0
    %371 = vmatpush.msra.mxu0 0.0
    %372 = vmatpush.msra.mxu0 0.0
    %373 = vmatpush.msra.mxu0 0.0
    %374 = vmatpush.msra.mxu0 0.0
    %375 = vmatpush.msra.mxu0 0.0
    %376 = vmatpush.msra.mxu0 %v295
    %377 = vmatpush.msra.mxu0 %v292
    %378 = vmatpush.msra.mxu0 %v289
    %379 = vmatpush.msra.mxu0 %v286
    %380 = vmatpush.msra.mxu0 %v283
    %381 = vmatpush.msra.mxu0 %v280
    %382 = vmatpush.msra.mxu0 %v277
    %383 = vmatpush.msra.mxu0 %v274
    %384 = vmatmul.f32.gmra.mxu0 %v345
    %v385 = vpop.f32.mrf.mxu0
    %v386 = vadd.f32 %v320, %v385
    %387 = vmatmul.f32.gmra.mxu0 %v348
    %v388 = vpop.f32.mrf.mxu0
    %v389 = vadd.f32 %v323, %v388
    %390 = vmatmul.f32.gmra.mxu0 %v351
    %v391 = vpop.f32.mrf.mxu0
    %v392 = vadd.f32 %v326, %v391
    %393 = vmatmul.f32.gmra.mxu0 %v354
    %v394 = vpop.f32.mrf.mxu0
    %v395 = vadd.f32 %v329, %v394
    %396 = vmatmul.f32.gmra.mxu0 %v357
    %v397 = vpop.f32.mrf.mxu0
    %v398 = vadd.f32 %v332, %v397
    %399 = vmatmul.f32.gmra.mxu0 %v360
    %v400 = vpop.f32.mrf.mxu0
    %v401 = vadd.f32 %v335, %v400
    %402 = vmatmul.f32.gmra.mxu0 %v363
    %v403 = vpop.f32.mrf.mxu0
    %v404 = vadd.f32 %v338, %v403
    %405 = vmatmul.f32.gmra.mxu0 %v366
    %v406 = vpop.f32.mrf.mxu0
    %v407 = vadd.f32 %v341, %v406
    %408 = vdwg.mxu0
    %s409 = scalar_lea.vmem %s3, 8
    %v410 = vld [vmem:[%s409] sm:$0xf]
    %v412 = vsel %vm252, %v410, 0
    %414 = vmatpush.msra.mxu0 0.0
    %415 = vmatpush.msra.mxu0 0.0
    %416 = vmatpush.msra.mxu0 0.0
    %417 = vmatpush.msra.mxu0 0.0
    %418 = vmatpush.msra.mxu0 0.0
    %419 = vmatpush.msra.mxu0 0.0
    %420 = vmatpush.msra.mxu0 0.0
    %421 = vmatpush.msra.mxu0 0.0
    %422 = vmatpush.msra.mxu0 0.0
    %423 = vmatpush.msra.mxu0 0.0
    %424 = vmatpush.msra.mxu0 0.0
    %425 = vmatpush.msra.mxu0 0.0
    %426 = vmatpush.msra.mxu0 0.0
    %427 = vmatpush.msra.mxu0 0.0
    %428 = vmatpush.msra.mxu0 0.0
    %429 = vmatpush.msra.mxu0 %v412
    %430 = vmatmul.f32.gmra.mxu0 %v229
    %v431 = vpop.f32.mrf.mxu0
    %v432 = vadd.f32 0.0, %v431
    %433 = vmatmul.f32.gmra.mxu0 %v232
    %v434 = vpop.f32.mrf.mxu0
    %v435 = vadd.f32 0.0, %v434
    %436 = vmatmul.f32.gmra.mxu0 %v235
    %v437 = vpop.f32.mrf.mxu0
    %v438 = vadd.f32 0.0, %v437
    %439 = vmatmul.f32.gmra.mxu0 %v238
    %v440 = vpop.f32.mrf.mxu0
    %v441 = vadd.f32 0.0, %v440
    %442 = vmatmul.f32.gmra.mxu0 %v241
    %v443 = vpop.f32.mrf.mxu0
    %v444 = vadd.f32 0.0, %v443
    %445 = vmatmul.f32.gmra.mxu0 %v244
    %v446 = vpop.f32.mrf.mxu0
    %v447 = vadd.f32 0.0, %v446
    %448 = vmatmul.f32.gmra.mxu0 %v247
    %v449 = vpop.f32.mrf.mxu0
    %v450 = vadd.f32 0.0, %v449
    %451 = vmatmul.f32.gmra.mxu0 %v250
    %v452 = vpop.f32.mrf.mxu0
    %v453 = vadd.f32 0.0, %v452
    %454 = vdwg.mxu0
    %v456 = vsel %vm343, %v160, 0
    %v459 = vsel %vm343, %v161, 0
    %v462 = vsel %vm343, %v162, 0
    %v465 = vsel %vm343, %v163, 0
    %v468 = vsel %vm343, %v164, 0
    %v471 = vsel %vm343, %v165, 0
    %v474 = vsel %vm343, %v166, 0
    %v477 = vsel %vm343, %v167, 0
    %479 = vmatpush.msra.mxu0 0.0
    %480 = vmatpush.msra.mxu0 0.0
    %481 = vmatpush.msra.mxu0 0.0
    %482 = vmatpush.msra.mxu0 0.0
    %483 = vmatpush.msra.mxu0 0.0
    %484 = vmatpush.msra.mxu0 0.0
    %485 = vmatpush.msra.mxu0 0.0
    %486 = vmatpush.msra.mxu0 0.0
    %487 = vmatpush.msra.mxu0 %v453
    %488 = vmatpush.msra.mxu0 %v450
    %489 = vmatpush.msra.mxu0 %v447
    %490 = vmatpush.msra.mxu0 %v444
    %491 = vmatpush.msra.mxu0 %v441
    %492 = vmatpush.msra.mxu0 %v438
    %493 = vmatpush.msra.mxu0 %v435
    %494 = vmatpush.msra.mxu0 %v432
    %495 = vmatmul.f32.gmra.mxu0 %v456
    %v496 = vpop.f32.mrf.mxu0
    %v497 = vadd.f32 0.0, %v496
    %498 = vmatmul.f32.gmra.mxu0 %v459
    %v499 = vpop.f32.mrf.mxu0
    %v500 = vadd.f32 0.0, %v499
    %501 = vmatmul.f32.gmra.mxu0 %v462
    %v502 = vpop.f32.mrf.mxu0
    %v503 = vadd.f32 0.0, %v502
    %504 = vmatmul.f32.gmra.mxu0 %v465
    %v505 = vpop.f32.mrf.mxu0
    %v506 = vadd.f32 0.0, %v505
    %507 = vmatmul.f32.gmra.mxu0 %v468
    %v508 = vpop.f32.mrf.mxu0
    %v509 = vadd.f32 0.0, %v508
    %510 = vmatmul.f32.gmra.mxu0 %v471
    %v511 = vpop.f32.mrf.mxu0
    %v512 = vadd.f32 0.0, %v511
    %513 = vmatmul.f32.gmra.mxu0 %v474
    %v514 = vpop.f32.mrf.mxu0
    %v515 = vadd.f32 0.0, %v514
    %516 = vmatmul.f32.gmra.mxu0 %v477
    %v517 = vpop.f32.mrf.mxu0
    %v518 = vadd.f32 0.0, %v517
    %519 = vdwg.mxu0
    %v520 = vadd.f32 %v386, %v497
    %v521 = vadd.f32 %v389, %v500
    %v522 = vadd.f32 %v392, %v503
    %v523 = vadd.f32 %v395, %v506
    %v524 = vadd.f32 %v398, %v509
    %v525 = vadd.f32 %v401, %v512
    %v526 = vadd.f32 %v404, %v515
    %v527 = vadd.f32 %v407, %v518
    %v528 = vld [vmem:[%s1] sm:$0xff]
    %v529 = vld [vmem:[%s1 + $0x8] sm:$0xff]
    %v530 = vld [vmem:[%s4] sm:$0xf]
    %v531 = vld [vmem:[%s2] sm:$0xff]
    %v532 = vld [vmem:[%s2 + $0x8] sm:$0xff]
    %v534 = vsel %vm227, %v528, 0
    %v537 = vsel %vm227, %v529, 0
    %v540 = vsel %vm252, %v530, 0
    %542 = vmatpush.msra.mxu0 0.0
    %543 = vmatpush.msra.mxu0 0.0
    %544 = vmatpush.msra.mxu0 0.0
    %545 = vmatpush.msra.mxu0 0.0
    %546 = vmatpush.msra.mxu0 0.0
    %547 = vmatpush.msra.mxu0 0.0
    %548 = vmatpush.msra.mxu0 0.0
    %549 = vmatpush.msra.mxu0 0.0
    %550 = vmatpush.msra.mxu0 0.0
    %551 = vmatpush.msra.mxu0 0.0
    %552 = vmatpush.msra.mxu0 0.0
    %553 = vmatpush.msra.mxu0 0.0
    %554 = vmatpush.msra.mxu0 0.0
    %555 = vmatpush.msra.mxu0 0.0
    %556 = vmatpush.msra.mxu0 0.0
    %557 = vmatpush.msra.mxu0 %v540
    %558 = vmatmul.f32.gmra.mxu0 %v534
    %v559 = vpop.f32.mrf.mxu0
    %v560 = vadd.f32 %v531, %v559
    %561 = vmatmul.f32.gmra.mxu0 %v537
    %v562 = vpop.f32.mrf.mxu0
    %v563 = vadd.f32 %v532, %v562
    %564 = vdwg.mxu0
    %vm565 = vcmask 130048
    %v567 = vsel %vm565, %v210, 0
    %v570 = vsel %vm565, %v211, 0
    %v573 = vsel %vm565, %v212, 0
    %v576 = vsel %vm565, %v213, 0
    %v579 = vsel %vm565, %v214, 0
    %v582 = vsel %vm565, %v215, 0
    %v585 = vsel %vm565, %v216, 0
    %v588 = vsel %vm565, %v217, 0
    %590 = vmatpush.msra.mxu0 0.0
    %591 = vmatpush.msra.mxu0 0.0
    %592 = vmatpush.msra.mxu0 0.0
    %593 = vmatpush.msra.mxu0 0.0
    %594 = vmatpush.msra.mxu0 0.0
    %595 = vmatpush.msra.mxu0 0.0
    %596 = vmatpush.msra.mxu0 0.0
    %597 = vmatpush.msra.mxu0 0.0
    %598 = vmatpush.msra.mxu0 0.0
    %599 = vmatpush.msra.mxu0 0.0
    %600 = vmatpush.msra.mxu0 0.0
    %601 = vmatpush.msra.mxu0 0.0
    %602 = vmatpush.msra.mxu0 0.0
    %603 = vmatpush.msra.mxu0 0.0
    %604 = vmatpush.msra.mxu0 %v563
    %605 = vmatpush.msra.mxu0 %v560
    %606 = vmatmul.f32.gmra.mxu0 %v567
    %v607 = vpop.f32.mrf.mxu0
    %v608 = vadd.f32 0.0, %v607
    %609 = vmatmul.f32.gmra.mxu0 %v570
    %v610 = vpop.f32.mrf.mxu0
    %v611 = vadd.f32 0.0, %v610
    %612 = vmatmul.f32.gmra.mxu0 %v573
    %v613 = vpop.f32.mrf.mxu0
    %v614 = vadd.f32 0.0, %v613
    %615 = vmatmul.f32.gmra.mxu0 %v576
    %v616 = vpop.f32.mrf.mxu0
    %v617 = vadd.f32 0.0, %v616
    %618 = vmatmul.f32.gmra.mxu0 %v579
    %v619 = vpop.f32.mrf.mxu0
    %v620 = vadd.f32 0.0, %v619
    %621 = vmatmul.f32.gmra.mxu0 %v582
    %v622 = vpop.f32.mrf.mxu0
    %v623 = vadd.f32 0.0, %v622
    %624 = vmatmul.f32.gmra.mxu0 %v585
    %v625 = vpop.f32.mrf.mxu0
    %v626 = vadd.f32 0.0, %v625
    %627 = vmatmul.f32.gmra.mxu0 %v588
    %v628 = vpop.f32.mrf.mxu0
    %v629 = vadd.f32 0.0, %v628
    %630 = vdwg.mxu0
    %v631 = vadd.f32 %v520, %v608
    %v632 = vadd.f32 %v521, %v611
    %v633 = vadd.f32 %v522, %v614
    %v634 = vadd.f32 %v523, %v617
    %v635 = vadd.f32 %v524, %v620
    %v636 = vadd.f32 %v525, %v623
    %v637 = vadd.f32 %v526, %v626
    %v638 = vadd.f32 %v527, %v629
    %v639 = vld [vmem:[%s5] sm:$0xff]
    %v640 = vld [vmem:[%s5 + $0x8] sm:$0xff]
    %v641 = vld [vmem:[%s5 + $0x10] sm:$0xff]
    %v642 = vld [vmem:[%s5 + $0x18] sm:$0xff]
    %v643 = vld [vmem:[%s6] sm:$0x1]
    %v645 = vperm.slane %v643, 0
    %vm647 = vcmask 261120
    %v649 = vsel %vm647, %v631, 0
    %v652 = vsel %vm647, %v632, 0
    %v655 = vsel %vm647, %v633, 0
    %v658 = vsel %vm647, %v634, 0
    %v661 = vsel %vm647, %v635, 0
    %v664 = vsel %vm647, %v636, 0
    %v667 = vsel %vm647, %v637, 0
    %v670 = vsel %vm647, %v638, 0
    %672 = vmatpush.msra.mxu0 0.0
    %673 = vmatpush.msra.mxu0 0.0
    %674 = vmatpush.msra.mxu0 0.0
    %675 = vmatpush.msra.mxu0 0.0
    %676 = vmatpush.msra.mxu0 0.0
    %677 = vmatpush.msra.mxu0 0.0
    %678 = vmatpush.msra.mxu0 0.0
    %679 = vmatpush.msra.mxu0 0.0
    %680 = vmatpush.msra.mxu0 0.0
    %681 = vmatpush.msra.mxu0 0.0
    %682 = vmatpush.msra.mxu0 0.0
    %683 = vmatpush.msra.mxu0 0.0
    %684 = vmatpush.msra.mxu0 %v642
    %685 = vmatpush.msra.mxu0 %v641
    %686 = vmatpush.msra.mxu0 %v640
    %687 = vmatpush.msra.mxu0 %v639
    %688 = vmatmul.f32.gmra.mxu0 %v649
    %v689 = vpop.f32.mrf.mxu0
    %v690 = vadd.f32 %v645, %v689
    %691 = vmatmul.f32.gmra.mxu0 %v652
    %v692 = vpop.f32.mrf.mxu0
    %v693 = vadd.f32 %v645, %v692
    %694 = vmatmul.f32.gmra.mxu0 %v655
    %v695 = vpop.f32.mrf.mxu0
    %v696 = vadd.f32 %v645, %v695
    %697 = vmatmul.f32.gmra.mxu0 %v658
    %v698 = vpop.f32.mrf.mxu0
    %v699 = vadd.f32 %v645, %v698
    %700 = vmatmul.f32.gmra.mxu0 %v661
    %v701 = vpop.f32.mrf.mxu0
    %v702 = vadd.f32 %v645, %v701
    %703 = vmatmul.f32.gmra.mxu0 %v664
    %v704 = vpop.f32.mrf.mxu0
    %v705 = vadd.f32 %v645, %v704
    %706 = vmatmul.f32.gmra.mxu0 %v667
    %v707 = vpop.f32.mrf.mxu0
    %v708 = vadd.f32 %v645, %v707
    %709 = vmatmul.f32.gmra.mxu0 %v670
    %v710 = vpop.f32.mrf.mxu0
    %v711 = vadd.f32 %v645, %v710
    %712 = vdwg.mxu0
    %s713 = scalar_lea.vmem %s5, 64
    %v714 = vld [vmem:[%s713] sm:$0xff]
    %v715 = vld [vmem:[%s713 + $0x8] sm:$0xff]
    %v716 = vld [vmem:[%s713 + $0x10] sm:$0xff]
    %v717 = vld [vmem:[%s713 + $0x18] sm:$0xff]
    %s718 = scalar_lea.vmem %s6, 2
    %v719 = vld [vmem:[%s718] sm:$0x1]
    %v721 = vperm.slane %v719, 0
    %723 = vmatpush.msra.mxu0 0.0
    %724 = vmatpush.msra.mxu0 0.0
    %725 = vmatpush.msra.mxu0 0.0
    %726 = vmatpush.msra.mxu0 0.0
    %727 = vmatpush.msra.mxu0 0.0
    %728 = vmatpush.msra.mxu0 0.0
    %729 = vmatpush.msra.mxu0 0.0
    %730 = vmatpush.msra.mxu0 0.0
    %731 = vmatpush.msra.mxu0 0.0
    %732 = vmatpush.msra.mxu0 0.0
    %733 = vmatpush.msra.mxu0 0.0
    %734 = vmatpush.msra.mxu0 0.0
    %735 = vmatpush.msra.mxu0 %v717
    %736 = vmatpush.msra.mxu0 %v716
    %737 = vmatpush.msra.mxu0 %v715
    %738 = vmatpush.msra.mxu0 %v714
    %739 = vmatmul.f32.gmra.mxu0 %v649
    %v740 = vpop.f32.mrf.mxu0
    %v741 = vadd.f32 %v721, %v740
    %742 = vmatmul.f32.gmra.mxu0 %v652
    %v743 = vpop.f32.mrf.mxu0
    %v744 = vadd.f32 %v721, %v743
    %745 = vmatmul.f32.gmra.mxu0 %v655
    %v746 = vpop.f32.mrf.mxu0
    %v747 = vadd.f32 %v721, %v746
    %748 = vmatmul.f32.gmra.mxu0 %v658
    %v749 = vpop.f32.mrf.mxu0
    %v750 = vadd.f32 %v721, %v749
    %751 = vmatmul.f32.gmra.mxu0 %v661
    %v752 = vpop.f32.mrf.mxu0
    %v753 = vadd.f32 %v721, %v752
    %754 = vmatmul.f32.gmra.mxu0 %v664
    %v755 = vpop.f32.mrf.mxu0
    %v756 = vadd.f32 %v721, %v755
    %757 = vmatmul.f32.gmra.mxu0 %v667
    %v758 = vpop.f32.mrf.mxu0
    %v759 = vadd.f32 %v721, %v758
    %760 = vmatmul.f32.gmra.mxu0 %v670
    %v761 = vpop.f32.mrf.mxu0
    %v762 = vadd.f32 %v721, %v761
    %763 = vdwg.mxu0
    %s764 = scalar_lea.vmem %s5, 128
    %v765 = vld [vmem:[%s764] sm:$0xff]
    %v766 = vld [vmem:[%s764 + $0x8] sm:$0xff]
    %v767 = vld [vmem:[%s764 + $0x10] sm:$0xff]
    %v768 = vld [vmem:[%s764 + $0x18] sm:$0xff]
    %s769 = scalar_lea.vmem %s6, 4
    %v770 = vld [vmem:[%s769] sm:$0x1]
    %v772 = vperm.slane %v770, 0
    %774 = vmatpush.msra.mxu0 0.0
    %775 = vmatpush.msra.mxu0 0.0
    %776 = vmatpush.msra.mxu0 0.0
    %777 = vmatpush.msra.mxu0 0.0
    %778 = vmatpush.msra.mxu0 0.0
    %779 = vmatpush.msra.mxu0 0.0
    %780 = vmatpush.msra.mxu0 0.0
    %781 = vmatpush.msra.mxu0 0.0
    %782 = vmatpush.msra.mxu0 0.0
    %783 = vmatpush.msra.mxu0 0.0
    %784 = vmatpush.msra.mxu0 0.0
    %785 = vmatpush.msra.mxu0 0.0
    %786 = vmatpush.msra.mxu0 %v768
    %787 = vmatpush.msra.mxu0 %v767
    %788 = vmatpush.msra.mxu0 %v766
    %789 = vmatpush.msra.mxu0 %v765
    %790 = vmatmul.f32.gmra.mxu0 %v649
    %v791 = vpop.f32.mrf.mxu0
    %v792 = vadd.f32 %v772, %v791
    %793 = vmatmul.f32.gmra.mxu0 %v652
    %v794 = vpop.f32.mrf.mxu0
    %v795 = vadd.f32 %v772, %v794
    %796 = vmatmul.f32.gmra.mxu0 %v655
    %v797 = vpop.f32.mrf.mxu0
    %v798 = vadd.f32 %v772, %v797
    %799 = vmatmul.f32.gmra.mxu0 %v658
    %v800 = vpop.f32.mrf.mxu0
    %v801 = vadd.f32 %v772, %v800
    %802 = vmatmul.f32.gmra.mxu0 %v661
    %v803 = vpop.f32.mrf.mxu0
    %v804 = vadd.f32 %v772, %v803
    %805 = vmatmul.f32.gmra.mxu0 %v664
    %v806 = vpop.f32.mrf.mxu0
    %v807 = vadd.f32 %v772, %v806
    %808 = vmatmul.f32.gmra.mxu0 %v667
    %v809 = vpop.f32.mrf.mxu0
    %v810 = vadd.f32 %v772, %v809
    %811 = vmatmul.f32.gmra.mxu0 %v670
    %v812 = vpop.f32.mrf.mxu0
    %v813 = vadd.f32 %v772, %v812
    %814 = vdwg.mxu0
    %v816 = vsel %vm565, %v690, 0
    %v819 = vsel %vm565, %v693, 0
    %v822 = vsel %vm565, %v696, 0
    %v825 = vsel %vm565, %v699, 0
    %v828 = vsel %vm565, %v702, 0
    %v831 = vsel %vm565, %v705, 0
    %v834 = vsel %vm565, %v708, 0
    %v837 = vsel %vm565, %v711, 0
    %v840 = vsel %vm565, %v741, 0
    %v843 = vsel %vm565, %v744, 0
    %v846 = vsel %vm565, %v747, 0
    %v849 = vsel %vm565, %v750, 0
    %v852 = vsel %vm565, %v753, 0
    %v855 = vsel %vm565, %v756, 0
    %v858 = vsel %vm565, %v759, 0
    %v861 = vsel %vm565, %v762, 0
    %863 = vmatpush.xpose.msra.mxu0 0.0
    %864 = vmatpush.xpose.msra.mxu0 0.0
    %865 = vmatpush.xpose.msra.mxu0 0.0
    %866 = vmatpush.xpose.msra.mxu0 0.0
    %867 = vmatpush.xpose.msra.mxu0 0.0
    %868 = vmatpush.xpose.msra.mxu0 0.0
    %869 = vmatpush.xpose.msra.mxu0 0.0
    %870 = vmatpush.xpose.msra.mxu0 0.0
    %871 = vmatpush.xpose.msra.mxu0 %v861
    %872 = vmatpush.xpose.msra.mxu0 %v858
    %873 = vmatpush.xpose.msra.mxu0 %v855
    %874 = vmatpush.xpose.msra.mxu0 %v852
    %875 = vmatpush.xpose.msra.mxu0 %v849
    %876 = vmatpush.xpose.msra.mxu0 %v846
    %877 = vmatpush.xpose.msra.mxu0 %v843
    %878 = vmatpush.xpose.msra.mxu0 %v840
    %879 = vmatmul.f32.gmra.mxu0 %v816
    %v880 = vpop.f32.mrf.mxu0
    %v881 = vadd.f32 0.0, %v880
    %882 = vmatmul.f32.gmra.mxu0 %v819
    %v883 = vpop.f32.mrf.mxu0
    %v884 = vadd.f32 0.0, %v883
    %885 = vmatmul.f32.gmra.mxu0 %v822
    %v886 = vpop.f32.mrf.mxu0
    %v887 = vadd.f32 0.0, %v886
    %888 = vmatmul.f32.gmra.mxu0 %v825
    %v889 = vpop.f32.mrf.mxu0
    %v890 = vadd.f32 0.0, %v889
    %891 = vmatmul.f32.gmra.mxu0 %v828
    %v892 = vpop.f32.mrf.mxu0
    %v893 = vadd.f32 0.0, %v892
    %894 = vmatmul.f32.gmra.mxu0 %v831
    %v895 = vpop.f32.mrf.mxu0
    %v896 = vadd.f32 0.0, %v895
    %897 = vmatmul.f32.gmra.mxu0 %v834
    %v898 = vpop.f32.mrf.mxu0
    %v899 = vadd.f32 0.0, %v898
    %900 = vmatmul.f32.gmra.mxu0 %v837
    %v901 = vpop.f32.mrf.mxu0
    %v902 = vadd.f32 0.0, %v901
    %903 = vdwg.mxu0
    %v904 = vmul.f32 %v881, 0.25
    %v905 = vmul.f32 %v884, 0.25
    %v906 = vmul.f32 %v887, 0.25
    %v907 = vmul.f32 %v890, 0.25
    %v908 = vmul.f32 %v893, 0.25
    %v909 = vmul.f32 %v896, 0.25
    %v910 = vmul.f32 %v899, 0.25
    %v911 = vmul.f32 %v902, 0.25
    %v912 = vadd.f32 %v904, %v168
    %v913 = vadd.f32 %v905, %v169
    %v914 = vadd.f32 %v906, %v170
    %v915 = vadd.f32 %v907, %v171
    %v916 = vadd.f32 %v908, %v172
    %v917 = vadd.f32 %v909, %v173
    %v918 = vadd.f32 %v910, %v174
    %v919 = vadd.f32 %v911, %v175
    %v920 = vsel %vm343, %v912, -inf
    %921 = vmax.xlane.f32.xlu0 %v920
    %v922 = vpop.xlane.xlu0 %921
    %v923 = vsel %vm343, %v913, -inf
    %924 = vmax.xlane.f32.xlu0 %v923
    %v925 = vpop.xlane.xlu0 %924
    %v926 = vsel %vm343, %v914, -inf
    %927 = vmax.xlane.f32.xlu0 %v926
    %v928 = vpop.xlane.xlu0 %927
    %v929 = vsel %vm343, %v915, -inf
    %930 = vmax.xlane.f32.xlu0 %v929
    %v931 = vpop.xlane.xlu0 %930
    %v932 = vsel %vm343, %v916, -inf
    %933 = vmax.xlane.f32.xlu0 %v932
    %v934 = vpop.xlane.xlu0 %933
    %v935 = vsel %vm343, %v917, -inf
    %936 = vmax.xlane.f32.xlu0 %v935
    %v937 = vpop.xlane.xlu0 %936
    %v938 = vsel %vm343, %v918, -inf
    %939 = vmax.xlane.f32.xlu0 %v938
    %v940 = vpop.xlane.xlu0 %939
    %v941 = vsel %vm343, %v919, -inf
    %942 = vmax.xlane.f32.xlu0 %v941
    %v943 = vpop.xlane.xlu0 %942
    %v944 = vsub.f32 %v912, %v922
    %v945 = vsub.f32 %v913, %v925
    %v946 = vsub.f32 %v914, %v928
    %v947 = vsub.f32 %v915, %v931
    %v948 = vsub.f32 %v916, %v934
    %v949 = vsub.f32 %v917, %v937
    %v950 = vsub.f32 %v918, %v940
    %v951 = vsub.f32 %v919, %v943
    %v952 = vmul.f32 %v944, 1.442695
    %v953 = vpow.pop %v952
    %v954 = vmul.f32 %v945, 1.442695
    %v955 = vpow.pop %v954
    %v956 = vmul.f32 %v946, 1.442695
    %v957 = vpow.pop %v956
    %v958 = vmul.f32 %v947, 1.442695
    %v959 = vpow.pop %v958
    %v960 = vmul.f32 %v948, 1.442695
    %v961 = vpow.pop %v960
    %v962 = vmul.f32 %v949, 1.442695
    %v963 = vpow.pop %v962
    %v964 = vmul.f32 %v950, 1.442695
    %v965 = vpow.pop %v964
    %v966 = vmul.f32 %v951, 1.442695
    %v967 = vpow.pop %v966
    %v968 = vsel %vm343, %v953, 0.0
    %969 = vadd.xlane.f32.xlu0 %v968
    %v970 = vpop.xlane.xlu0 %969
    %v971 = vsel %vm343, %v955, 0.0
    %972 = vadd.xlane.f32.xlu0 %v971
    %v973 = vpop.xlane.xlu0 %972
    %v974 = vsel %vm343, %v957, 0.0
    %975 = vadd.xlane.f32.xlu0 %v974
    %v976 = vpop.xlane.xlu0 %975
    %v977 = vsel %vm343, %v959, 0.0
    %978 = vadd.xlane.f32.xlu0 %v977
    %v979 = vpop.xlane.xlu0 %978
    %v980 = vsel %vm343, %v961, 0.0
    %981 = vadd.xlane.f32.xlu0 %v980
    %v982 = vpop.xlane.xlu0 %981
    %v983 = vsel %vm343, %v963, 0.0
    %984 = vadd.xlane.f32.xlu0 %v983
    %v985 = vpop.xlane.xlu0 %984
    %v986 = vsel %vm343, %v965, 0.0
    %987 = vadd.xlane.f32.xlu0 %v986
    %v988 = vpop.xlane.xlu0 %987
    %v989 = vsel %vm343, %v967, 0.0
    %990 = vadd.xlane.f32.xlu0 %v989
    %v991 = vpop.xlane.xlu0 %990
    %v992 = vrcp.pop %v970
    %v993 = vrcp.pop %v973
    %v994 = vrcp.pop %v976
    %v995 = vrcp.pop %v979
    %v996 = vrcp.pop %v982
    %v997 = vrcp.pop %v985
    %v998 = vrcp.pop %v988
    %v999 = vrcp.pop %v991
    %v1000 = vmul.f32 %v953, %v992
    %v1001 = vmul.f32 %v955, %v993
    %v1002 = vmul.f32 %v957, %v994
    %v1003 = vmul.f32 %v959, %v995
    %v1004 = vmul.f32 %v961, %v996
    %v1005 = vmul.f32 %v963, %v997
    %v1006 = vmul.f32 %v965, %v998
    %v1007 = vmul.f32 %v967, %v999
    %v1009 = vsel %vm343, %v1000, 0
    %v1012 = vsel %vm343, %v1001, 0
    %v1015 = vsel %vm343, %v1002, 0
    %v1018 = vsel %vm343, %v1003, 0
    %v1021 = vsel %vm343, %v1004, 0
    %v1024 = vsel %vm343, %v1005, 0
    %v1027 = vsel %vm343, %v1006, 0
    %v1030 = vsel %vm343, %v1007, 0
    %1032 = vmatpush.msra.mxu0 0.0
    %1033 = vmatpush.msra.mxu0 0.0
    %1034 = vmatpush.msra.mxu0 0.0
    %1035 = vmatpush.msra.mxu0 0.0
    %1036 = vmatpush.msra.mxu0 0.0
    %1037 = vmatpush.msra.mxu0 0.0
    %1038 = vmatpush.msra.mxu0 0.0
    %1039 = vmatpush.msra.mxu0 0.0
    %1040 = vmatpush.msra.mxu0 %v813
    %1041 = vmatpush.msra.mxu0 %v810
    %1042 = vmatpush.msra.mxu0 %v807
    %1043 = vmatpush.msra.mxu0 %v804
    %1044 = vmatpush.msra.mxu0 %v801
    %1045 = vmatpush.msra.mxu0 %v798
    %1046 = vmatpush.msra.mxu0 %v795
    %1047 = vmatpush.msra.mxu0 %v792
    %1048 = vmatmul.f32.gmra.mxu0 %v1009
    %v1049 = vpop.f32.mrf.mxu0
    %v1050 = vadd.f32 0.0, %v1049
    %1051 = vmatmul.f32.gmra.mxu0 %v1012
    %v1052 = vpop.f32.mrf.mxu0
    %v1053 = vadd.f32 0.0, %v1052
    %1054 = vmatmul.f32.gmra.mxu0 %v1015
    %v1055 = vpop.f32.mrf.mxu0
    %v1056 = vadd.f32 0.0, %v1055
    %1057 = vmatmul.f32.gmra.mxu0 %v1018
    %v1058 = vpop.f32.mrf.mxu0
    %v1059 = vadd.f32 0.0, %v1058
    %1060 = vmatmul.f32.gmra.mxu0 %v1021
    %v1061 = vpop.f32.mrf.mxu0
    %v1062 = vadd.f32 0.0, %v1061
    %1063 = vmatmul.f32.gmra.mxu0 %v1024
    %v1064 = vpop.f32.mrf.mxu0
    %v1065 = vadd.f32 0.0, %v1064
    %1066 = vmatmul.f32.gmra.mxu0 %v1027
    %v1067 = vpop.f32.mrf.mxu0
    %v1068 = vadd.f32 0.0, %v1067
    %1069 = vmatmul.f32.gmra.mxu0 %v1030
    %v1070 = vpop.f32.mrf.mxu0
    %v1071 = vadd.f32 0.0, %v1070
    %1072 = vdwg.mxu0
    %v1073 = vld [vmem:[%s7] sm:$0xff]
    %v1074 = vld [vmem:[%s7 + $0x8] sm:$0xff]
    %s1075 = scalar_lea.vmem %s5, 32
    %v1076 = vld [vmem:[%s1075] sm:$0xff]
    %v1077 = vld [vmem:[%s1075 + $0x8] sm:$0xff]
    %v1078 = vld [vmem:[%s1075 + $0x10] sm:$0xff]
    %v1079 = vld [vmem:[%s1075 + $0x18] sm:$0xff]
    %s1080 = scalar_lea.vmem %s6, 1
    %v1081 = vld [vmem:[%s1080] sm:$0x1]
    %v1083 = vperm.slane %v1081, 0
    %1085 = vmatpush.msra.mxu0 0.0
    %1086 = vmatpush.msra.mxu0 0.0
    %1087 = vmatpush.msra.mxu0 0.0
    %1088 = vmatpush.msra.mxu0 0.0
    %1089 = vmatpush.msra.mxu0 0.0
    %1090 = vmatpush.msra.mxu0 0.0
    %1091 = vmatpush.msra.mxu0 0.0
    %1092 = vmatpush.msra.mxu0 0.0
    %1093 = vmatpush.msra.mxu0 0.0
    %1094 = vmatpush.msra.mxu0 0.0
    %1095 = vmatpush.msra.mxu0 0.0
    %1096 = vmatpush.msra.mxu0 0.0
    %1097 = vmatpush.msra.mxu0 %v1079
    %1098 = vmatpush.msra.mxu0 %v1078
    %1099 = vmatpush.msra.mxu0 %v1077
    %1100 = vmatpush.msra.mxu0 %v1076
    %1101 = vmatmul.f32.gmra.mxu0 %v649
    %v1102 = vpop.f32.mrf.mxu0
    %v1103 = vadd.f32 %v1083, %v1102
    %1104 = vmatmul.f32.gmra.mxu0 %v652
    %v1105 = vpop.f32.mrf.mxu0
    %v1106 = vadd.f32 %v1083, %v1105
    %1107 = vmatmul.f32.gmra.mxu0 %v655
    %v1108 = vpop.f32.mrf.mxu0
    %v1109 = vadd.f32 %v1083, %v1108
    %1110 = vmatmul.f32.gmra.mxu0 %v658
    %v1111 = vpop.f32.mrf.mxu0
    %v1112 = vadd.f32 %v1083, %v1111
    %1113 = vmatmul.f32.gmra.mxu0 %v661
    %v1114 = vpop.f32.mrf.mxu0
    %v1115 = vadd.f32 %v1083, %v1114
    %1116 = vmatmul.f32.gmra.mxu0 %v664
    %v1117 = vpop.f32.mrf.mxu0
    %v1118 = vadd.f32 %v1083, %v1117
    %1119 = vmatmul.f32.gmra.mxu0 %v667
    %v1120 = vpop.f32.mrf.mxu0
    %v1121 = vadd.f32 %v1083, %v1120
    %1122 = vmatmul.f32.gmra.mxu0 %v670
    %v1123 = vpop.f32.mrf.mxu0
    %v1124 = vadd.f32 %v1083, %v1123
    %1125 = vdwg.mxu0
    %s1126 = scalar_lea.vmem %s5, 96
    %v1127 = vld [vmem:[%s1126] sm:$0xff]
    %v1128 = vld [vmem:[%s1126 + $0x8] sm:$0xff]
    %v1129 = vld [vmem:[%s1126 + $0x10] sm:$0xff]
    %v1130 = vld [vmem:[%s1126 + $0x18] sm:$0xff]
    %s1131 = scalar_lea.vmem %s6, 3
    %v1132 = vld [vmem:[%s1131] sm:$0x1]
    %v1134 = vperm.slane %v1132, 0
    %1136 = vmatpush.msra.mxu0 0.0
    %1137 = vmatpush.msra.mxu0 0.0
    %1138 = vmatpush.msra.mxu0 0.0
    %1139 = vmatpush.msra.mxu0 0.0
    %1140 = vmatpush.msra.mxu0 0.0
    %1141 = vmatpush.msra.mxu0 0.0
    %1142 = vmatpush.msra.mxu0 0.0
    %1143 = vmatpush.msra.mxu0 0.0
    %1144 = vmatpush.msra.mxu0 0.0
    %1145 = vmatpush.msra.mxu0 0.0
    %1146 = vmatpush.msra.mxu0 0.0
    %1147 = vmatpush.msra.mxu0 0.0
    %1148 = vmatpush.msra.mxu0 %v1130
    %1149 = vmatpush.msra.mxu0 %v1129
    %1150 = vmatpush.msra.mxu0 %v1128
    %1151 = vmatpush.msra.mxu0 %v1127
    %1152 = vmatmul.f32.gmra.mxu0 %v649
    %v1153 = vpop.f32.mrf.mxu0
    %v1154 = vadd.f32 %v1134, %v1153
    %1155 = vmatmul.f32.gmra.mxu0 %v652
    %v1156 = vpop.f32.mrf.mxu0
    %v1157 = vadd.f32 %v1134, %v1156
    %1158 = vmatmul.f32.gmra.mxu0 %v655
    %v1159 = vpop.f32.mrf.mxu0
    %v1160 = vadd.f32 %v1134, %v1159
    %1161 = vmatmul.f32.gmra.mxu0 %v658
    %v1162 = vpop.f32.mrf.mxu0
    %v1163 = vadd.f32 %v1134, %v1162
    %1164 = vmatmul.f32.gmra.mxu0 %v661
    %v1165 = vpop.f32.mrf.mxu0
    %v1166 = vadd.f32 %v1134, %v1165
    %1167 = vmatmul.f32.gmra.mxu0 %v664
    %v1168 = vpop.f32.mrf.mxu0
    %v1169 = vadd.f32 %v1134, %v1168
    %1170 = vmatmul.f32.gmra.mxu0 %v667
    %v1171 = vpop.f32.mrf.mxu0
    %v1172 = vadd.f32 %v1134, %v1171
    %1173 = vmatmul.f32.gmra.mxu0 %v670
    %v1174 = vpop.f32.mrf.mxu0
    %v1175 = vadd.f32 %v1134, %v1174
    %1176 = vdwg.mxu0
    %s1177 = scalar_lea.vmem %s5, 160
    %v1178 = vld [vmem:[%s1177] sm:$0xff]
    %v1179 = vld [vmem:[%s1177 + $0x8] sm:$0xff]
    %v1180 = vld [vmem:[%s1177 + $0x10] sm:$0xff]
    %v1181 = vld [vmem:[%s1177 + $0x18] sm:$0xff]
    %s1182 = scalar_lea.vmem %s6, 5
    %v1183 = vld [vmem:[%s1182] sm:$0x1]
    %v1185 = vperm.slane %v1183, 0
    %1187 = vmatpush.msra.mxu0 0.0
    %1188 = vmatpush.msra.mxu0 0.0
    %1189 = vmatpush.msra.mxu0 0.0
    %1190 = vmatpush.msra.mxu0 0.0
    %1191 = vmatpush.msra.mxu0 0.0
    %1192 = vmatpush.msra.mxu0 0.0
    %1193 = vmatpush.msra.mxu0 0.0
    %1194 = vmatpush.msra.mxu0 0.0
    %1195 = vmatpush.msra.mxu0 0.0
    %1196 = vmatpush.msra.mxu0 0.0
    %1197 = vmatpush.msra.mxu0 0.0
    %1198 = vmatpush.msra.mxu0 0.0
    %1199 = vmatpush.msra.mxu0 %v1181
    %1200 = vmatpush.msra.mxu0 %v1180
    %1201 = vmatpush.msra.mxu0 %v1179
    %1202 = vmatpush.msra.mxu0 %v1178
    %1203 = vmatmul.f32.gmra.mxu0 %v649
    %v1204 = vpop.f32.mrf.mxu0
    %v1205 = vadd.f32 %v1185, %v1204
    %1206 = vmatmul.f32.gmra.mxu0 %v652
    %v1207 = vpop.f32.mrf.mxu0
    %v1208 = vadd.f32 %v1185, %v1207
    %1209 = vmatmul.f32.gmra.mxu0 %v655
    %v1210 = vpop.f32.mrf.mxu0
    %v1211 = vadd.f32 %v1185, %v1210
    %1212 = vmatmul.f32.gmra.mxu0 %v658
    %v1213 = vpop.f32.mrf.mxu0
    %v1214 = vadd.f32 %v1185, %v1213
    %1215 = vmatmul.f32.gmra.mxu0 %v661
    %v1216 = vpop.f32.mrf.mxu0
    %v1217 = vadd.f32 %v1185, %v1216
    %1218 = vmatmul.f32.gmra.mxu0 %v664
    %v1219 = vpop.f32.mrf.mxu0
    %v1220 = vadd.f32 %v1185, %v1219
    %1221 = vmatmul.f32.gmra.mxu0 %v667
    %v1222 = vpop.f32.mrf.mxu0
    %v1223 = vadd.f32 %v1185, %v1222
    %1224 = vmatmul.f32.gmra.mxu0 %v670
    %v1225 = vpop.f32.mrf.mxu0
    %v1226 = vadd.f32 %v1185, %v1225
    %1227 = vdwg.mxu0
    %v1229 = vsel %vm565, %v1103, 0
    %v1232 = vsel %vm565, %v1106, 0
    %v1235 = vsel %vm565, %v1109, 0
    %v1238 = vsel %vm565, %v1112, 0
    %v1241 = vsel %vm565, %v1115, 0
    %v1244 = vsel %vm565, %v1118, 0
    %v1247 = vsel %vm565, %v1121, 0
    %v1250 = vsel %vm565, %v1124, 0
    %v1253 = vsel %vm565, %v1154, 0
    %v1256 = vsel %vm565, %v1157, 0
    %v1259 = vsel %vm565, %v1160, 0
    %v1262 = vsel %vm565, %v1163, 0
    %v1265 = vsel %vm565, %v1166, 0
    %v1268 = vsel %vm565, %v1169, 0
    %v1271 = vsel %vm565, %v1172, 0
    %v1274 = vsel %vm565, %v1175, 0
    %1276 = vmatpush.xpose.msra.mxu0 0.0
    %1277 = vmatpush.xpose.msra.mxu0 0.0
    %1278 = vmatpush.xpose.msra.mxu0 0.0
    %1279 = vmatpush.xpose.msra.mxu0 0.0
    %1280 = vmatpush.xpose.msra.mxu0 0.0
    %1281 = vmatpush.xpose.msra.mxu0 0.0
    %1282 = vmatpush.xpose.msra.mxu0 0.0
    %1283 = vmatpush.xpose.msra.mxu0 0.0
    %1284 = vmatpush.xpose.msra.mxu0 %v1274
    %1285 = vmatpush.xpose.msra.mxu0 %v1271
    %1286 = vmatpush.xpose.msra.mxu0 %v1268
    %1287 = vmatpush.xpose.msra.mxu0 %v1265
    %1288 = vmatpush.xpose.msra.mxu0 %v1262
    %1289 = vmatpush.xpose.msra.mxu0 %v1259
    %1290 = vmatpush.xpose.msra.mxu0 %v1256
    %1291 = vmatpush.xpose.msra.mxu0 %v1253
    %1292 = vmatmul.f32.gmra.mxu0 %v1229
    %v1293 = vpop.f32.mrf.mxu0
    %v1294 = vadd.f32 0.0, %v1293
    %1295 = vmatmul.f32.gmra.mxu0 %v1232
    %v1296 = vpop.f32.mrf.mxu0
    %v1297 = vadd.f32 0.0, %v1296
    %1298 = vmatmul.f32.gmra.mxu0 %v1235
    %v1299 = vpop.f32.mrf.mxu0
    %v1300 = vadd.f32 0.0, %v1299
    %1301 = vmatmul.f32.gmra.mxu0 %v1238
    %v1302 = vpop.f32.mrf.mxu0
    %v1303 = vadd.f32 0.0, %v1302
    %1304 = vmatmul.f32.gmra.mxu0 %v1241
    %v1305 = vpop.f32.mrf.mxu0
    %v1306 = vadd.f32 0.0, %v1305
    %1307 = vmatmul.f32.gmra.mxu0 %v1244
    %v1308 = vpop.f32.mrf.mxu0
    %v1309 = vadd.f32 0.0, %v1308
    %1310 = vmatmul.f32.gmra.mxu0 %v1247
    %v1311 = vpop.f32.mrf.mxu0
    %v1312 = vadd.f32 0.0, %v1311
    %1313 = vmatmul.f32.gmra.mxu0 %v1250
    %v1314 = vpop.f32.mrf.mxu0
    %v1315 = vadd.f32 0.0, %v1314
    %1316 = vdwg.mxu0
    %v1317 = vmul.f32 %v1294, 0.25
    %v1318 = vmul.f32 %v1297, 0.25
    %v1319 = vmul.f32 %v1300, 0.25
    %v1320 = vmul.f32 %v1303, 0.25
    %v1321 = vmul.f32 %v1306, 0.25
    %v1322 = vmul.f32 %v1309, 0.25
    %v1323 = vmul.f32 %v1312, 0.25
    %v1324 = vmul.f32 %v1315, 0.25
    %v1325 = vadd.f32 %v1317, %v168
    %v1326 = vadd.f32 %v1318, %v169
    %v1327 = vadd.f32 %v1319, %v170
    %v1328 = vadd.f32 %v1320, %v171
    %v1329 = vadd.f32 %v1321, %v172
    %v1330 = vadd.f32 %v1322, %v173
    %v1331 = vadd.f32 %v1323, %v174
    %v1332 = vadd.f32 %v1324, %v175
    %v1333 = vsel %vm343, %v1325, -inf
    %1334 = vmax.xlane.f32.xlu0 %v1333
    %v1335 = vpop.xlane.xlu0 %1334
    %v1336 = vsel %vm343, %v1326, -inf
    %1337 = vmax.xlane.f32.xlu0 %v1336
    %v1338 = vpop.xlane.xlu0 %1337
    %v1339 = vsel %vm343, %v1327, -inf
    %1340 = vmax.xlane.f32.xlu0 %v1339
    %v1341 = vpop.xlane.xlu0 %1340
    %v1342 = vsel %vm343, %v1328, -inf
    %1343 = vmax.xlane.f32.xlu0 %v1342
    %v1344 = vpop.xlane.xlu0 %1343
    %v1345 = vsel %vm343, %v1329, -inf
    %1346 = vmax.xlane.f32.xlu0 %v1345
    %v1347 = vpop.xlane.xlu0 %1346
    %v1348 = vsel %vm343, %v1330, -inf
    %1349 = vmax.xlane.f32.xlu0 %v1348
    %v1350 = vpop.xlane.xlu0 %1349
    %v1351 = vsel %vm343, %v1331, -inf
    %1352 = vmax.xlane.f32.xlu0 %v1351
    %v1353 = vpop.xlane.xlu0 %1352
    %v1354 = vsel %vm343, %v1332, -inf
    %1355 = vmax.xlane.f32.xlu0 %v1354
    %v1356 = vpop.xlane.xlu0 %1355
    %v1357 = vsub.f32 %v1325, %v1335
    %v1358 = vsub.f32 %v1326, %v1338
    %v1359 = vsub.f32 %v1327, %v1341
    %v1360 = vsub.f32 %v1328, %v1344
    %v1361 = vsub.f32 %v1329, %v1347
    %v1362 = vsub.f32 %v1330, %v1350
    %v1363 = vsub.f32 %v1331, %v1353
    %v1364 = vsub.f32 %v1332, %v1356
    %v1365 = vmul.f32 %v1357, 1.442695
    %v1366 = vpow.pop %v1365
    %v1367 = vmul.f32 %v1358, 1.442695
    %v1368 = vpow.pop %v1367
    %v1369 = vmul.f32 %v1359, 1.442695
    %v1370 = vpow.pop %v1369
    %v1371 = vmul.f32 %v1360, 1.442695
    %v1372 = vpow.pop %v1371
    %v1373 = vmul.f32 %v1361, 1.442695
    %v1374 = vpow.pop %v1373
    %v1375 = vmul.f32 %v1362, 1.442695
    %v1376 = vpow.pop %v1375
    %v1377 = vmul.f32 %v1363, 1.442695
    %v1378 = vpow.pop %v1377
    %v1379 = vmul.f32 %v1364, 1.442695
    %v1380 = vpow.pop %v1379
    %v1381 = vsel %vm343, %v1366, 0.0
    %1382 = vadd.xlane.f32.xlu0 %v1381
    %v1383 = vpop.xlane.xlu0 %1382
    %v1384 = vsel %vm343, %v1368, 0.0
    %1385 = vadd.xlane.f32.xlu0 %v1384
    %v1386 = vpop.xlane.xlu0 %1385
    %v1387 = vsel %vm343, %v1370, 0.0
    %1388 = vadd.xlane.f32.xlu0 %v1387
    %v1389 = vpop.xlane.xlu0 %1388
    %v1390 = vsel %vm343, %v1372, 0.0
    %1391 = vadd.xlane.f32.xlu0 %v1390
    %v1392 = vpop.xlane.xlu0 %1391
    %v1393 = vsel %vm343, %v1374, 0.0
    %1394 = vadd.xlane.f32.xlu0 %v1393
    %v1395 = vpop.xlane.xlu0 %1394
    %v1396 = vsel %vm343, %v1376, 0.0
    %1397 = vadd.xlane.f32.xlu0 %v1396
    %v1398 = vpop.xlane.xlu0 %1397
    %v1399 = vsel %vm343, %v1378, 0.0
    %1400 = vadd.xlane.f32.xlu0 %v1399
    %v1401 = vpop.xlane.xlu0 %1400
    %v1402 = vsel %vm343, %v1380, 0.0
    %1403 = vadd.xlane.f32.xlu0 %v1402
    %v1404 = vpop.xlane.xlu0 %1403
    %v1405 = vrcp.pop %v1383
    %v1406 = vrcp.pop %v1386
    %v1407 = vrcp.pop %v1389
    %v1408 = vrcp.pop %v1392
    %v1409 = vrcp.pop %v1395
    %v1410 = vrcp.pop %v1398
    %v1411 = vrcp.pop %v1401
    %v1412 = vrcp.pop %v1404
    %v1413 = vmul.f32 %v1366, %v1405
    %v1414 = vmul.f32 %v1368, %v1406
    %v1415 = vmul.f32 %v1370, %v1407
    %v1416 = vmul.f32 %v1372, %v1408
    %v1417 = vmul.f32 %v1374, %v1409
    %v1418 = vmul.f32 %v1376, %v1410
    %v1419 = vmul.f32 %v1378, %v1411
    %v1420 = vmul.f32 %v1380, %v1412
    %v1422 = vsel %vm343, %v1413, 0
    %v1425 = vsel %vm343, %v1414, 0
    %v1428 = vsel %vm343, %v1415, 0
    %v1431 = vsel %vm343, %v1416, 0
    %v1434 = vsel %vm343, %v1417, 0
    %v1437 = vsel %vm343, %v1418, 0
    %v1440 = vsel %vm343, %v1419, 0
    %v1443 = vsel %vm343, %v1420, 0
    %1445 = vmatpush.msra.mxu0 0.0
    %1446 = vmatpush.msra.mxu0 0.0
    %1447 = vmatpush.msra.mxu0 0.0
    %1448 = vmatpush.msra.mxu0 0.0
    %1449 = vmatpush.msra.mxu0 0.0
    %1450 = vmatpush.msra.mxu0 0.0
    %1451 = vmatpush.msra.mxu0 0.0
    %1452 = vmatpush.msra.mxu0 0.0
    %1453 = vmatpush.msra.mxu0 %v1226
    %1454 = vmatpush.msra.mxu0 %v1223
    %1455 = vmatpush.msra.mxu0 %v1220
    %1456 = vmatpush.msra.mxu0 %v1217
    %1457 = vmatpush.msra.mxu0 %v1214
    %1458 = vmatpush.msra.mxu0 %v1211
    %1459 = vmatpush.msra.mxu0 %v1208
    %1460 = vmatpush.msra.mxu0 %v1205
    %1461 = vmatmul.f32.gmra.mxu0 %v1422
    %v1462 = vpop.f32.mrf.mxu0
    %v1463 = vadd.f32 0.0, %v1462
    %1464 = vmatmul.f32.gmra.mxu0 %v1425
    %v1465 = vpop.f32.mrf.mxu0
    %v1466 = vadd.f32 0.0, %v1465
    %1467 = vmatmul.f32.gmra.mxu0 %v1428
    %v1468 = vpop.f32.mrf.mxu0
    %v1469 = vadd.f32 0.0, %v1468
    %1470 = vmatmul.f32.gmra.mxu0 %v1431
    %v1471 = vpop.f32.mrf.mxu0
    %v1472 = vadd.f32 0.0, %v1471
    %1473 = vmatmul.f32.gmra.mxu0 %v1434
    %v1474 = vpop.f32.mrf.mxu0
    %v1475 = vadd.f32 0.0, %v1474
    %1476 = vmatmul.f32.gmra.mxu0 %v1437
    %v1477 = vpop.f32.mrf.mxu0
    %v1478 = vadd.f32 0.0, %v1477
    %1479 = vmatmul.f32.gmra.mxu0 %v1440
    %v1480 = vpop.f32.mrf.mxu0
    %v1481 = vadd.f32 0.0, %v1480
    %1482 = vmatmul.f32.gmra.mxu0 %v1443
    %v1483 = vpop.f32.mrf.mxu0
    %v1484 = vadd.f32 0.0, %v1483
    %1485 = vdwg.mxu0
    %s1486 = scalar_lea.vmem %s7, 16
    %v1487 = vld [vmem:[%s1486] sm:$0xff]
    %v1488 = vld [vmem:[%s1486 + $0x8] sm:$0xff]
    %v1490 = vsel %vm565, %v1463, 0
    %v1493 = vsel %vm565, %v1466, 0
    %v1496 = vsel %vm565, %v1469, 0
    %v1499 = vsel %vm565, %v1472, 0
    %v1502 = vsel %vm565, %v1475, 0
    %v1505 = vsel %vm565, %v1478, 0
    %v1508 = vsel %vm565, %v1481, 0
    %v1511 = vsel %vm565, %v1484, 0
    %1513 = vmatpush.msra.mxu0 0.0
    %1514 = vmatpush.msra.mxu0 0.0
    %1515 = vmatpush.msra.mxu0 0.0
    %1516 = vmatpush.msra.mxu0 0.0
    %1517 = vmatpush.msra.mxu0 0.0
    %1518 = vmatpush.msra.mxu0 0.0
    %1519 = vmatpush.msra.mxu0 0.0
    %1520 = vmatpush.msra.mxu0 0.0
    %1521 = vmatpush.msra.mxu0 0.0
    %1522 = vmatpush.msra.mxu0 0.0
    %1523 = vmatpush.msra.mxu0 0.0
    %1524 = vmatpush.msra.mxu0 0.0
    %1525 = vmatpush.msra.mxu0 0.0
    %1526 = vmatpush.msra.mxu0 0.0
    %1527 = vmatpush.msra.mxu0 %v1488
    %1528 = vmatpush.msra.mxu0 %v1487
    %1529 = vmatmul.f32.gmra.mxu0 %v1490
    %v1530 = vpop.f32.mrf.mxu0
    %v1531 = vadd.f32 0.0, %v1530
    %1532 = vmatmul.f32.gmra.mxu0 %v1493
    %v1533 = vpop.f32.mrf.mxu0
    %v1534 = vadd.f32 0.0, %v1533
    %1535 = vmatmul.f32.gmra.mxu0 %v1496
    %v1536 = vpop.f32.mrf.mxu0
    %v1537 = vadd.f32 0.0, %v1536
    %1538 = vmatmul.f32.gmra.mxu0 %v1499
    %v1539 = vpop.f32.mrf.mxu0
    %v1540 = vadd.f32 0.0, %v1539
    %1541 = vmatmul.f32.gmra.mxu0 %v1502
    %v1542 = vpop.f32.mrf.mxu0
    %v1543 = vadd.f32 0.0, %v1542
    %1544 = vmatmul.f32.gmra.mxu0 %v1505
    %v1545 = vpop.f32.mrf.mxu0
    %v1546 = vadd.f32 0.0, %v1545
    %1547 = vmatmul.f32.gmra.mxu0 %v1508
    %v1548 = vpop.f32.mrf.mxu0
    %v1549 = vadd.f32 0.0, %v1548
    %1550 = vmatmul.f32.gmra.mxu0 %v1511
    %v1551 = vpop.f32.mrf.mxu0
    %v1552 = vadd.f32 0.0, %v1551
    %1553 = vdwg.mxu0
    %v1555 = vsel %vm565, %v1050, 0
    %v1558 = vsel %vm565, %v1053, 0
    %v1561 = vsel %vm565, %v1056, 0
    %v1564 = vsel %vm565, %v1059, 0
    %v1567 = vsel %vm565, %v1062, 0
    %v1570 = vsel %vm565, %v1065, 0
    %v1573 = vsel %vm565, %v1068, 0
    %v1576 = vsel %vm565, %v1071, 0
    %1578 = vmatpush.msra.mxu0 0.0
    %1579 = vmatpush.msra.mxu0 0.0
    %1580 = vmatpush.msra.mxu0 0.0
    %1581 = vmatpush.msra.mxu0 0.0
    %1582 = vmatpush.msra.mxu0 0.0
    %1583 = vmatpush.msra.mxu0 0.0
    %1584 = vmatpush.msra.mxu0 0.0
    %1585 = vmatpush.msra.mxu0 0.0
    %1586 = vmatpush.msra.mxu0 0.0
    %1587 = vmatpush.msra.mxu0 0.0
    %1588 = vmatpush.msra.mxu0 0.0
    %1589 = vmatpush.msra.mxu0 0.0
    %1590 = vmatpush.msra.mxu0 0.0
    %1591 = vmatpush.msra.mxu0 0.0
    %1592 = vmatpush.msra.mxu0 %v1074
    %1593 = vmatpush.msra.mxu0 %v1073
    %1594 = vmatmul.f32.gmra.mxu0 %v1555
    %v1595 = vpop.f32.mrf.mxu0
    %v1596 = vadd.f32 %v1531, %v1595
    %1597 = vmatmul.f32.gmra.mxu0 %v1558
    %v1598 = vpop.f32.mrf.mxu0
    %v1599 = vadd.f32 %v1534, %v1598
    %1600 = vmatmul.f32.gmra.mxu0 %v1561
    %v1601 = vpop.f32.mrf.mxu0
    %v1602 = vadd.f32 %v1537, %v1601
    %1603 = vmatmul.f32.gmra.mxu0 %v1564
    %v1604 = vpop.f32.mrf.mxu0
    %v1605 = vadd.f32 %v1540, %v1604
    %1606 = vmatmul.f32.gmra.mxu0 %v1567
    %v1607 = vpop.f32.mrf.mxu0
    %v1608 = vadd.f32 %v1543, %v1607
    %1609 = vmatmul.f32.gmra.mxu0 %v1570
    %v1610 = vpop.f32.mrf.mxu0
    %v1611 = vadd.f32 %v1546, %v1610
    %1612 = vmatmul.f32.gmra.mxu0 %v1573
    %v1613 = vpop.f32.mrf.mxu0
    %v1614 = vadd.f32 %v1549, %v1613
    %1615 = vmatmul.f32.gmra.mxu0 %v1576
    %v1616 = vpop.f32.mrf.mxu0
    %v1617 = vadd.f32 %v1552, %v1616
    %1618 = vdwg.mxu0
    %v1619 = vld [vmem:[%s8] sm:$0x1]
    %v1621 = vperm.slane %v1619, 0
    %v1623 = vadd.f32 %v1596, %v1621
    %v1624 = vadd.f32 %v1599, %v1621
    %v1625 = vadd.f32 %v1602, %v1621
    %v1626 = vadd.f32 %v1605, %v1621
    %v1627 = vadd.f32 %v1608, %v1621
    %v1628 = vadd.f32 %v1611, %v1621
    %v1629 = vadd.f32 %v1614, %v1621
    %v1630 = vadd.f32 %v1617, %v1621
    %v1631 = vadd.f32 %v631, %v1623
    %v1632 = vadd.f32 %v632, %v1624
    %v1633 = vadd.f32 %v633, %v1625
    %v1634 = vadd.f32 %v634, %v1626
    %v1635 = vadd.f32 %v635, %v1627
    %v1636 = vadd.f32 %v636, %v1628
    %v1637 = vadd.f32 %v637, %v1629
    %v1638 = vadd.f32 %v638, %v1630
    %v1639 = vld [vmem:[%s9] sm:$0x1]
    %s1640 = scalar_lea.vmem %s9, 1
    %v1641 = vld [vmem:[%s1640] sm:$0x1]
    %v1642 = vsel %vm647, %v1631, 0.0
    %1643 = vadd.xlane.f32.xlu0 %v1642
    %v1644 = vpop.xlane.xlu0 %1643
    %v1645 = vsel %vm647, %v1632, 0.0
    %1646 = vadd.xlane.f32.xlu0 %v1645
    %v1647 = vpop.xlane.xlu0 %1646
    %v1648 = vsel %vm647, %v1633, 0.0
    %1649 = vadd.xlane.f32.xlu0 %v1648
    %v1650 = vpop.xlane.xlu0 %1649
    %v1651 = vsel %vm647, %v1634, 0.0
    %1652 = vadd.xlane.f32.xlu0 %v1651
    %v1653 = vpop.xlane.xlu0 %1652
    %v1654 = vsel %vm647, %v1635, 0.0
    %1655 = vadd.xlane.f32.xlu0 %v1654
    %v1656 = vpop.xlane.xlu0 %1655
    %v1657 = vsel %vm647, %v1636, 0.0
    %1658 = vadd.xlane.f32.xlu0 %v1657
    %v1659 = vpop.xlane.xlu0 %1658
    %v1660 = vsel %vm647, %v1637, 0.0
    %1661 = vadd.xlane.f32.xlu0 %v1660
    %v1662 = vpop.xlane.xlu0 %1661
    %v1663 = vsel %vm647, %v1638, 0.0
    %1664 = vadd.xlane.f32.xlu0 %v1663
    %v1665 = vpop.xlane.xlu0 %1664
    %v1666 = vrcp.pop 32.0
    %v1667 = vmul.f32 32.0, %v1666
    %v1668 = vsub.f32 1.0, %v1667
    %v1669 = vmul.f32 %v1666, %v1668
    %v1670 = vadd.f32 %v1666, %v1669
    %vm1671 = vweird.f32 %v1666
    %v1672 = vsel %vm1671, %v1666, %v1670
    %v1673 = vmul.f32 %v1644, %v1672
    %v1674 = vmul.f32 %v1647, %v1672
    %v1675 = vmul.f32 %v1650, %v1672
    %v1676 = vmul.f32 %v1653, %v1672
    %v1677 = vmul.f32 %v1656, %v1672
    %v1678 = vmul.f32 %v1659, %v1672
    %v1679 = vmul.f32 %v1662, %v1672
    %v1680 = vmul.f32 %v1665, %v1672
    %v1681 = vsub.f32 %v1631, %v1673
    %v1682 = vsub.f32 %v1632, %v1674
    %v1683 = vsub.f32 %v1633, %v1675
    %v1684 = vsub.f32 %v1634, %v1676
    %v1685 = vsub.f32 %v1635, %v1677
    %v1686 = vsub.f32 %v1636, %v1678
    %v1687 = vsub.f32 %v1637, %v1679
    %v1688 = vsub.f32 %v1638, %v1680
    %v1689 = vmul.f32 %v1681, %v1681
    %v1690 = vmul.f32 %v1682, %v1682
    %v1691 = vmul.f32 %v1683, %v1683
    %v1692 = vmul.f32 %v1684, %v1684
    %v1693 = vmul.f32 %v1685, %v1685
    %v1694 = vmul.f32 %v1686, %v1686
    %v1695 = vmul.f32 %v1687, %v1687
    %v1696 = vmul.f32 %v1688, %v1688
    %v1697 = vsel %vm647, %v1689, 0.0
    %1698 = vadd.xlane.f32.xlu0 %v1697
    %v1699 = vpop.xlane.xlu0 %1698
    %v1700 = vsel %vm647, %v1690, 0.0
    %1701 = vadd.xlane.f32.xlu0 %v1700
    %v1702 = vpop.xlane.xlu0 %1701
    %v1703 = vsel %vm647, %v1691, 0.0
    %1704 = vadd.xlane.f32.xlu0 %v1703
    %v1705 = vpop.xlane.xlu0 %1704
    %v1706 = vsel %vm647, %v1692, 0.0
    %1707 = vadd.xlane.f32.xlu0 %v1706
    %v1708 = vpop.xlane.xlu0 %1707
    %v1709 = vsel %vm647, %v1693, 0.0
    %1710 = vadd.xlane.f32.xlu0 %v1709
    %v1711 = vpop.xlane.xlu0 %1710
    %v1712 = vsel %vm647, %v1694, 0.0
    %1713 = vadd.xlane.f32.xlu0 %v1712
    %v1714 = vpop.xlane.xlu0 %1713
    %v1715 = vsel %vm647, %v1695, 0.0
    %1716 = vadd.xlane.f32.xlu0 %v1715
    %v1717 = vpop.xlane.xlu0 %1716
    %v1718 = vsel %vm647, %v1696, 0.0
    %1719 = vadd.xlane.f32.xlu0 %v1718
    %v1720 = vpop.xlane.xlu0 %1719
    %v1721 = vmul.f32 %v1699, %v1672
    %v1722 = vmul.f32 %v1702, %v1672
    %v1723 = vmul.f32 %v1705, %v1672
    %v1724 = vmul.f32 %v1708, %v1672
    %v1725 = vmul.f32 %v1711, %v1672
    %v1726 = vmul.f32 %v1714, %v1672
    %v1727 = vmul.f32 %v1717, %v1672
    %v1728 = vmul.f32 %v1720, %v1672
    %v1729 = vadd.f32 %v1721, 1e-05
    %v1730 = vadd.f32 %v1722, 1e-05
    %v1731 = vadd.f32 %v1723, 1e-05
    %v1732 = vadd.f32 %v1724, 1e-05
    %v1733 = vadd.f32 %v1725, 1e-05
    %v1734 = vadd.f32 %v1726, 1e-05
    %v1735 = vadd.f32 %v1727, 1e-05
    %v1736 = vadd.f32 %v1728, 1e-05
    %v1737 = vrsqrt.pop %v1729
    %v1738 = vmul.f32 %v1737, %v1729
    %v1739 = vmul.f32 %v1738, %v1737
    %v1740 = vmul.f32 0.5, %v1739
    %v1741 = vsub.f32 1.5, %v1740
    %v1742 = vmul.f32 %v1737, %v1741
    %vm1743 = vweird.f32 %v1729
    %vm1744 = vweird.f32 %v1737
    %vm1745 = vmor %vm1743, %vm1744
    %v1746 = vsel %vm1745, %v1737, %v1742
    %v1747 = vrsqrt.pop %v1730
    %v1748 = vmul.f32 %v1747, %v1730
    %v1749 = vmul.f32 %v1748, %v1747
    %v1750 = vmul.f32 0.5, %v1749
    %v1751 = vsub.f32 1.5, %v1750
    %v1752 = vmul.f32 %v1747, %v1751
    %vm1753 = vweird.f32 %v1730
    %vm1754 = vweird.f32 %v1747
    %vm1755 = vmor %vm1753, %vm1754
    %v1756 = vsel %vm1755, %v1747, %v1752
    %v1757 = vrsqrt.pop %v1731
    %v1758 = vmul.f32 %v1757, %v1731
    %v1759 = vmul.f32 %v1758, %v1757
    %v1760 = vmul.f32 0.5, %v1759
    %v1761 = vsub.f32 1.5, %v1760
    %v1762 = vmul.f32 %v1757, %v1761
    %vm1763 = vweird.f32 %v1731
    %vm1764 = vweird.f32 %v1757
    %vm1765 = vmor %vm1763, %vm1764
    %v1766 = vsel %vm1765, %v1757, %v1762
    %v1767 = vrsqrt.pop %v1732
    %v1768 = vmul.f32 %v1767, %v1732
    %v1769 = vmul.f32 %v1768, %v1767
    %v1770 = vmul.f32 0.5, %v1769
    %v1771 = vsub.f32 1.5, %v1770
    %v1772 = vmul.f32 %v1767, %v1771
    %vm1773 = vweird.f32 %v1732
    %vm1774 = vweird.f32 %v1767
    %vm1775 = vmor %vm1773, %vm1774
    %v1776 = vsel %vm1775, %v1767, %v1772
    %v1777 = vrsqrt.pop %v1733
    %v1778 = vmul.f32 %v1777, %v1733
    %v1779 = vmul.f32 %v1778, %v1777
    %v1780 = vmul.f32 0.5, %v1779
    %v1781 = vsub.f32 1.5, %v1780
    %v1782 = vmul.f32 %v1777, %v1781
    %vm1783 = vweird.f32 %v1733
    %vm1784 = vweird.f32 %v1777
    %vm1785 = vmor %vm1783, %vm1784
    %v1786 = vsel %vm1785, %v1777, %v1782
    %v1787 = vrsqrt.pop %v1734
    %v1788 = vmul.f32 %v1787, %v1734
    %v1789 = vmul.f32 %v1788, %v1787
    %v1790 = vmul.f32 0.5, %v1789
    %v1791 = vsub.f32 1.5, %v1790
    %v1792 = vmul.f32 %v1787, %v1791
    %vm1793 = vweird.f32 %v1734
    %vm1794 = vweird.f32 %v1787
    %vm1795 = vmor %vm1793, %vm1794
    %v1796 = vsel %vm1795, %v1787, %v1792
    %v1797 = vrsqrt.pop %v1735
    %v1798 = vmul.f32 %v1797, %v1735
    %v1799 = vmul.f32 %v1798, %v1797
    %v1800 = vmul.f32 0.5, %v1799
    %v1801 = vsub.f32 1.5, %v1800
    %v1802 = vmul.f32 %v1797, %v1801
    %vm1803 = vweird.f32 %v1735
    %vm1804 = vweird.f32 %v1797
    %vm1805 = vmor %vm1803, %vm1804
    %v1806 = vsel %vm1805, %v1797, %v1802
    %v1807 = vrsqrt.pop %v1736
    %v1808 = vmul.f32 %v1807, %v1736
    %v1809 = vmul.f32 %v1808, %v1807
    %v1810 = vmul.f32 0.5, %v1809
    %v1811 = vsub.f32 1.5, %v1810
    %v1812 = vmul.f32 %v1807, %v1811
    %vm1813 = vweird.f32 %v1736
    %vm1814 = vweird.f32 %v1807
    %vm1815 = vmor %vm1813, %vm1814
    %v1816 = vsel %vm1815, %v1807, %v1812
    %v1817 = vmul.f32 %v1681, %v1746
    %v1818 = vmul.f32 %v1682, %v1756
    %v1819 = vmul.f32 %v1683, %v1766
    %v1820 = vmul.f32 %v1684, %v1776
    %v1821 = vmul.f32 %v1685, %v1786
    %v1822 = vmul.f32 %v1686, %v1796
    %v1823 = vmul.f32 %v1687, %v1806
    %v1824 = vmul.f32 %v1688, %v1816
    %v1826 = vperm.slane %v1639, 0
    %v1828 = vmul.f32 %v1817, %v1826
    %v1829 = vmul.f32 %v1818, %v1826
    %v1830 = vmul.f32 %v1819, %v1826
    %v1831 = vmul.f32 %v1820, %v1826
    %v1832 = vmul.f32 %v1821, %v1826
    %v1833 = vmul.f32 %v1822, %v1826
    %v1834 = vmul.f32 %v1823, %v1826
    %v1835 = vmul.f32 %v1824, %v1826
    %v1837 = vperm.slane %v1641, 0
    %v1839 = vadd.f32 %v1828, %v1837
    %v1840 = vadd.f32 %v1829, %v1837
    %v1841 = vadd.f32 %v1830, %v1837
    %v1842 = vadd.f32 %v1831, %v1837
    %v1843 = vadd.f32 %v1832, %v1837
    %v1844 = vadd.f32 %v1833, %v1837
    %v1845 = vadd.f32 %v1834, %v1837
    %v1846 = vadd.f32 %v1835, %v1837
    %v1847 = vld [vmem:[%s10] sm:$0xff]
    %v1848 = vld [vmem:[%s10 + $0x8] sm:$0xff]
    %v1849 = vld [vmem:[%s10 + $0x10] sm:$0xff]
    %v1850 = vld [vmem:[%s10 + $0x18] sm:$0xff]
    %v1851 = vld [vmem:[%s11] sm:$0x1]
    %v1853 = vperm.slane %v1851, 0
    %v1856 = vsel %vm647, %v1839, 0
    %v1859 = vsel %vm647, %v1840, 0
    %v1862 = vsel %vm647, %v1841, 0
    %v1865 = vsel %vm647, %v1842, 0
    %v1868 = vsel %vm647, %v1843, 0
    %v1871 = vsel %vm647, %v1844, 0
    %v1874 = vsel %vm647, %v1845, 0
    %v1877 = vsel %vm647, %v1846, 0
    %1879 = vmatpush.msra.mxu0 0.0
    %1880 = vmatpush.msra.mxu0 0.0
    %1881 = vmatpush.msra.mxu0 0.0
    %1882 = vmatpush.msra.mxu0 0.0
    %1883 = vmatpush.msra.mxu0 0.0
    %1884 = vmatpush.msra.mxu0 0.0
    %1885 = vmatpush.msra.mxu0 0.0
    %1886 = vmatpush.msra.mxu0 0.0
    %1887 = vmatpush.msra.mxu0 0.0
    %1888 = vmatpush.msra.mxu0 0.0
    %1889 = vmatpush.msra.mxu0 0.0
    %1890 = vmatpush.msra.mxu0 0.0
    %1891 = vmatpush.msra.mxu0 %v1850
    %1892 = vmatpush.msra.mxu0 %v1849
    %1893 = vmatpush.msra.mxu0 %v1848
    %1894 = vmatpush.msra.mxu0 %v1847
    %1895 = vmatmul.f32.gmra.mxu0 %v1856
    %v1896 = vpop.f32.mrf.mxu0
    %v1897 = vadd.f32 %v1853, %v1896
    %1898 = vmatmul.f32.gmra.mxu0 %v1859
    %v1899 = vpop.f32.mrf.mxu0
    %v1900 = vadd.f32 %v1853, %v1899
    %1901 = vmatmul.f32.gmra.mxu0 %v1862
    %v1902 = vpop.f32.mrf.mxu0
    %v1903 = vadd.f32 %v1853, %v1902
    %1904 = vmatmul.f32.gmra.mxu0 %v1865
    %v1905 = vpop.f32.mrf.mxu0
    %v1906 = vadd.f32 %v1853, %v1905
    %1907 = vmatmul.f32.gmra.mxu0 %v1868
    %v1908 = vpop.f32.mrf.mxu0
    %v1909 = vadd.f32 %v1853, %v1908
    %1910 = vmatmul.f32.gmra.mxu0 %v1871
    %v1911 = vpop.f32.mrf.mxu0
    %v1912 = vadd.f32 %v1853, %v1911
    %1913 = vmatmul.f32.gmra.mxu0 %v1874
    %v1914 = vpop.f32.mrf.mxu0
    %v1915 = vadd.f32 %v1853, %v1914
    %1916 = vmatmul.f32.gmra.mxu0 %v1877
    %v1917 = vpop.f32.mrf.mxu0
    %v1918 = vadd.f32 %v1853, %v1917
    %1919 = vdwg.mxu0
    %v1920 = vmax.f32 %v1897, 0.0
    %v1921 = vmax.f32 %v1900, 0.0
    %v1922 = vmax.f32 %v1903, 0.0
    %v1923 = vmax.f32 %v1906, 0.0
    %v1924 = vmax.f32 %v1909, 0.0
    %v1925 = vmax.f32 %v1912, 0.0
    %v1926 = vmax.f32 %v1915, 0.0
    %v1927 = vmax.f32 %v1918, 0.0
    %v1928 = vld [vmem:[%s12] sm:$0xff]
    %v1929 = vld [vmem:[%s12 + $0x8] sm:$0xff]
    %v1930 = vld [vmem:[%s12 + $0x10] sm:$0xff]
    %v1931 = vld [vmem:[%s12 + $0x18] sm:$0xff]
    %v1932 = vld [vmem:[%s12 + $0x20] sm:$0xff]
    %v1933 = vld [vmem:[%s12 + $0x28] sm:$0xff]
    %v1934 = vld [vmem:[%s12 + $0x30] sm:$0xff]
    %v1935 = vld [vmem:[%s12 + $0x38] sm:$0xff]
    %v1936 = vld [vmem:[%s13] sm:$0x1]
    %v1938 = vperm.slane %v1936, 0
    %v1941 = vsel %vm343, %v1920, 0
    %v1944 = vsel %vm343, %v1921, 0
    %v1947 = vsel %vm343, %v1922, 0
    %v1950 = vsel %vm343, %v1923, 0
    %v1953 = vsel %vm343, %v1924, 0
    %v1956 = vsel %vm343, %v1925, 0
    %v1959 = vsel %vm343, %v1926, 0
    %v1962 = vsel %vm343, %v1927, 0
    %1964 = vmatpush.msra.mxu0 0.0
    %1965 = vmatpush.msra.mxu0 0.0
    %1966 = vmatpush.msra.mxu0 0.0
    %1967 = vmatpush.msra.mxu0 0.0
    %1968 = vmatpush.msra.mxu0 0.0
    %1969 = vmatpush.msra.mxu0 0.0
    %1970 = vmatpush.msra.mxu0 0.0
    %1971 = vmatpush.msra.mxu0 0.0
    %1972 = vmatpush.msra.mxu0 %v1935
    %1973 = vmatpush.msra.mxu0 %v1934
    %1974 = vmatpush.msra.mxu0 %v1933
    %1975 = vmatpush.msra.mxu0 %v1932
    %1976 = vmatpush.msra.mxu0 %v1931
    %1977 = vmatpush.msra.mxu0 %v1930
    %1978 = vmatpush.msra.mxu0 %v1929
    %1979 = vmatpush.msra.mxu0 %v1928
    %1980 = vmatmul.f32.gmra.mxu0 %v1941
    %v1981 = vpop.f32.mrf.mxu0
    %v1982 = vadd.f32 %v1938, %v1981
    %1983 = vmatmul.f32.gmra.mxu0 %v1944
    %v1984 = vpop.f32.mrf.mxu0
    %v1985 = vadd.f32 %v1938, %v1984
    %1986 = vmatmul.f32.gmra.mxu0 %v1947
    %v1987 = vpop.f32.mrf.mxu0
    %v1988 = vadd.f32 %v1938, %v1987
    %1989 = vmatmul.f32.gmra.mxu0 %v1950
    %v1990 = vpop.f32.mrf.mxu0
    %v1991 = vadd.f32 %v1938, %v1990
    %1992 = vmatmul.f32.gmra.mxu0 %v1953
    %v1993 = vpop.f32.mrf.mxu0
    %v1994 = vadd.f32 %v1938, %v1993
    %1995 = vmatmul.f32.gmra.mxu0 %v1956
    %v1996 = vpop.f32.mrf.mxu0
    %v1997 = vadd.f32 %v1938, %v1996
    %1998 = vmatmul.f32.gmra.mxu0 %v1959
    %v1999 = vpop.f32.mrf.mxu0
    %v2000 = vadd.f32 %v1938, %v1999
    %2001 = vmatmul.f32.gmra.mxu0 %v1962
    %v2002 = vpop.f32.mrf.mxu0
    %v2003 = vadd.f32 %v1938, %v2002
    %2004 = vdwg.mxu0
    %v2005 = vadd.f32 %v1839, %v1982
    %v2006 = vadd.f32 %v1840, %v1985
    %v2007 = vadd.f32 %v1841, %v1988
    %v2008 = vadd.f32 %v1842, %v1991
    %v2009 = vadd.f32 %v1843, %v1994
    %v2010 = vadd.f32 %v1844, %v1997
    %v2011 = vadd.f32 %v1845, %v2000
    %v2012 = vadd.f32 %v1846, %v2003
    %s2013 = scalar_lea.vmem %s9, 2
    %v2014 = vld [vmem:[%s2013] sm:$0x1]
    %s2015 = scalar_lea.vmem %s9, 3
    %v2016 = vld [vmem:[%s2015] sm:$0x1]
    %v2017 = vsel %vm647, %v2005, 0.0
    %2018 = vadd.xlane.f32.xlu0 %v2017
    %v2019 = vpop.xlane.xlu0 %2018
    %v2020 = vsel %vm647, %v2006, 0.0
    %2021 = vadd.xlane.f32.xlu0 %v2020
    %v2022 = vpop.xlane.xlu0 %2021
    %v2023 = vsel %vm647, %v2007, 0.0
    %2024 = vadd.xlane.f32.xlu0 %v2023
    %v2025 = vpop.xlane.xlu0 %2024
    %v2026 = vsel %vm647, %v2008, 0.0
    %2027 = vadd.xlane.f32.xlu0 %v2026
    %v2028 = vpop.xlane.xlu0 %2027
    %v2029 = vsel %vm647, %v2009, 0.0
    %2030 = vadd.xlane.f32.xlu0 %v2029
    %v2031 = vpop.xlane.xlu0 %2030
    %v2032 = vsel %vm647, %v2010, 0.0
    %2033 = vadd.xlane.f32.xlu0 %v2032
    %v2034 = vpop.xlane.xlu0 %2033
    %v2035 = vsel %vm647, %v2011, 0.0
    %2036 = vadd.xlane.f32.xlu0 %v2035
    %v2037 = vpop.xlane.xlu0 %2036
    %v2038 = vsel %vm647, %v2012, 0.0
    %2039 = vadd.xlane.f32.xlu0 %v2038
    %v2040 = vpop.xlane.xlu0 %2039
    %v2041 = vmul.f32 %v2019, %v1672
    %v2042 = vmul.f32 %v2022, %v1672
    %v2043 = vmul.f32 %v2025, %v1672
    %v2044 = vmul.f32 %v2028, %v1672
    %v2045 = vmul.f32 %v2031, %v1672
    %v2046 = vmul.f32 %v2034, %v1672
    %v2047 = vmul.f32 %v2037, %v1672
    %v2048 = vmul.f32 %v2040, %v1672
    %v2049 = vsub.f32 %v2005, %v2041
    %v2050 = vsub.f32 %v2006, %v2042
    %v2051 = vsub.f32 %v2007, %v2043
    %v2052 = vsub.f32 %v2008, %v2044
    %v2053 = vsub.f32 %v2009, %v2045
    %v2054 = vsub.f32 %v2010, %v2046
    %v2055 = vsub.f32 %v2011, %v2047
    %v2056 = vsub.f32 %v2012, %v2048
    %v2057 = vmul.f32 %v2049, %v2049
    %v2058 = vmul.f32 %v2050, %v2050
    %v2059 = vmul.f32 %v2051, %v2051
    %v2060 = vmul.f32 %v2052, %v2052
    %v2061 = vmul.f32 %v2053, %v2053
    %v2062 = vmul.f32 %v2054, %v2054
    %v2063 = vmul.f32 %v2055, %v2055
    %v2064 = vmul.f32 %v2056, %v2056
    %v2065 = vsel %vm647, %v2057, 0.0
    %2066 = vadd.xlane.f32.xlu0 %v2065
    %v2067 = vpop.xlane.xlu0 %2066
    %v2068 = vsel %vm647, %v2058, 0.0
    %2069 = vadd.xlane.f32.xlu0 %v2068
    %v2070 = vpop.xlane.xlu0 %2069
    %v2071 = vsel %vm647, %v2059, 0.0
    %2072 = vadd.xlane.f32.xlu0 %v2071
    %v2073 = vpop.xlane.xlu0 %2072
    %v2074 = vsel %vm647, %v2060, 0.0
    %2075 = vadd.xlane.f32.xlu0 %v2074
    %v2076 = vpop.xlane.xlu0 %2075
    %v2077 = vsel %vm647, %v2061, 0.0
    %2078 = vadd.xlane.f32.xlu0 %v2077
    %v2079 = vpop.xlane.xlu0 %2078
    %v2080 = vsel %vm647, %v2062, 0.0
    %2081 = vadd.xlane.f32.xlu0 %v2080
    %v2082 = vpop.xlane.xlu0 %2081
    %v2083 = vsel %vm647, %v2063, 0.0
    %2084 = vadd.xlane.f32.xlu0 %v2083
    %v2085 = vpop.xlane.xlu0 %2084
    %v2086 = vsel %vm647, %v2064, 0.0
    %2087 = vadd.xlane.f32.xlu0 %v2086
    %v2088 = vpop.xlane.xlu0 %2087
    %v2089 = vmul.f32 %v2067, %v1672
    %v2090 = vmul.f32 %v2070, %v1672
    %v2091 = vmul.f32 %v2073, %v1672
    %v2092 = vmul.f32 %v2076, %v1672
    %v2093 = vmul.f32 %v2079, %v1672
    %v2094 = vmul.f32 %v2082, %v1672
    %v2095 = vmul.f32 %v2085, %v1672
    %v2096 = vmul.f32 %v2088, %v1672
    %v2097 = vadd.f32 %v2089, 1e-05
    %v2098 = vadd.f32 %v2090, 1e-05
    %v2099 = vadd.f32 %v2091, 1e-05
    %v2100 = vadd.f32 %v2092, 1e-05
    %v2101 = vadd.f32 %v2093, 1e-05
    %v2102 = vadd.f32 %v2094, 1e-05
    %v2103 = vadd.f32 %v2095, 1e-05
    %v2104 = vadd.f32 %v2096, 1e-05
    %v2105 = vrsqrt.pop %v2097
    %v2106 = vmul.f32 %v2105, %v2097
    %v2107 = vmul.f32 %v2106, %v2105
    %v2108 = vmul.f32 0.5, %v2107
    %v2109 = vsub.f32 1.5, %v2108
    %v2110 = vmul.f32 %v2105, %v2109
    %vm2111 = vweird.f32 %v2097
    %vm2112 = vweird.f32 %v2105
    %vm2113 = vmor %vm2111, %vm2112
    %v2114 = vsel %vm2113, %v2105, %v2110
    %v2115 = vrsqrt.pop %v2098
    %v2116 = vmul.f32 %v2115, %v2098
    %v2117 = vmul.f32 %v2116, %v2115
    %v2118 = vmul.f32 0.5, %v2117
    %v2119 = vsub.f32 1.5, %v2118
    %v2120 = vmul.f32 %v2115, %v2119
    %vm2121 = vweird.f32 %v2098
    %vm2122 = vweird.f32 %v2115
    %vm2123 = vmor %vm2121, %vm2122
    %v2124 = vsel %vm2123, %v2115, %v2120
    %v2125 = vrsqrt.pop %v2099
    %v2126 = vmul.f32 %v2125, %v2099
    %v2127 = vmul.f32 %v2126, %v2125
    %v2128 = vmul.f32 0.5, %v2127
    %v2129 = vsub.f32 1.5, %v2128
    %v2130 = vmul.f32 %v2125, %v2129
    %vm2131 = vweird.f32 %v2099
    %vm2132 = vweird.f32 %v2125
    %vm2133 = vmor %vm2131, %vm2132
    %v2134 = vsel %vm2133, %v2125, %v2130
    %v2135 = vrsqrt.pop %v2100
    %v2136 = vmul.f32 %v2135, %v2100
    %v2137 = vmul.f32 %v2136, %v2135
    %v2138 = vmul.f32 0.5, %v2137
    %v2139 = vsub.f32 1.5, %v2138
    %v2140 = vmul.f32 %v2135, %v2139
    %vm2141 = vweird.f32 %v2100
    %vm2142 = vweird.f32 %v2135
    %vm2143 = vmor %vm2141, %vm2142
    %v2144 = vsel %vm2143, %v2135, %v2140
    %v2145 = vrsqrt.pop %v2101
    %v2146 = vmul.f32 %v2145, %v2101
    %v2147 = vmul.f32 %v2146, %v2145
    %v2148 = vmul.f32 0.5, %v2147
    %v2149 = vsub.f32 1.5, %v2148
    %v2150 = vmul.f32 %v2145, %v2149
    %vm2151 = vweird.f32 %v2101
    %vm2152 = vweird.f32 %v2145
    %vm2153 = vmor %vm2151, %vm2152
    %v2154 = vsel %vm2153, %v2145, %v2150
    %v2155 = vrsqrt.pop %v2102
    %v2156 = vmul.f32 %v2155, %v2102
    %v2157 = vmul.f32 %v2156, %v2155
    %v2158 = vmul.f32 0.5, %v2157
    %v2159 = vsub.f32 1.5, %v2158
    %v2160 = vmul.f32 %v2155, %v2159
    %vm2161 = vweird.f32 %v2102
    %vm2162 = vweird.f32 %v2155
    %vm2163 = vmor %vm2161, %vm2162
    %v2164 = vsel %vm2163, %v2155, %v2160
    %v2165 = vrsqrt.pop %v2103
    %v2166 = vmul.f32 %v2165, %v2103
    %v2167 = vmul.f32 %v2166, %v2165
    %v2168 = vmul.f32 0.5, %v2167
    %v2169 = vsub.f32 1.5, %v2168
    %v2170 = vmul.f32 %v2165, %v2169
    %vm2171 = vweird.f32 %v2103
    %vm2172 = vweird.f32 %v2165
    %vm2173 = vmor %vm2171, %vm2172
    %v2174 = vsel %vm2173, %v2165, %v2170
    %v2175 = vrsqrt.pop %v2104
    %v2176 = vmul.f32 %v2175, %v2104
    %v2177 = vmul.f32 %v2176, %v2175
    %v2178 = vmul.f32 0.5, %v2177
    %v2179 = vsub.f32 1.5, %v2178
    %v2180 = vmul.f32 %v2175, %v2179
    %vm2181 = vweird.f32 %v2104
    %vm2182 = vweird.f32 %v2175
    %vm2183 = vmor %vm2181, %vm2182
    %v2184 = vsel %vm2183, %v2175, %v2180
    %v2185 = vmul.f32 %v2049, %v2114
    %v2186 = vmul.f32 %v2050, %v2124
    %v2187 = vmul.f32 %v2051, %v2134
    %v2188 = vmul.f32 %v2052, %v2144
    %v2189 = vmul.f32 %v2053, %v2154
    %v2190 = vmul.f32 %v2054, %v2164
    %v2191 = vmul.f32 %v2055, %v2174
    %v2192 = vmul.f32 %v2056, %v2184
    %v2194 = vperm.slane %v2014, 0
    %v2196 = vmul.f32 %v2185, %v2194
    %v2197 = vmul.f32 %v2186, %v2194
    %v2198 = vmul.f32 %v2187, %v2194
    %v2199 = vmul.f32 %v2188, %v2194
    %v2200 = vmul.f32 %v2189, %v2194
    %v2201 = vmul.f32 %v2190, %v2194
    %v2202 = vmul.f32 %v2191, %v2194
    %v2203 = vmul.f32 %v2192, %v2194
    %v2205 = vperm.slane %v2016, 0
    %v2207 = vadd.f32 %v2196, %v2205
    %v2208 = vadd.f32 %v2197, %v2205
    %v2209 = vadd.f32 %v2198, %v2205
    %v2210 = vadd.f32 %v2199, %v2205
    %v2211 = vadd.f32 %v2200, %v2205
    %v2212 = vadd.f32 %v2201, %v2205
    %v2213 = vadd.f32 %v2202, %v2205
    %v2214 = vadd.f32 %v2203, %v2205
    %s2215 = scalar_lea.vmem %s5, 192
    %v2216 = vld [vmem:[%s2215] sm:$0xff]
    %v2217 = vld [vmem:[%s2215 + $0x8] sm:$0xff]
    %v2218 = vld [vmem:[%s2215 + $0x10] sm:$0xff]
    %v2219 = vld [vmem:[%s2215 + $0x18] sm:$0xff]
    %s2220 = scalar_lea.vmem %s6, 6
    %v2221 = vld [vmem:[%s2220] sm:$0x1]
    %v2223 = vperm.slane %v2221, 0
    %v2226 = vsel %vm647, %v2207, 0
    %v2229 = vsel %vm647, %v2208, 0
    %v2232 = vsel %vm647, %v2209, 0
    %v2235 = vsel %vm647, %v2210, 0
    %v2238 = vsel %vm647, %v2211, 0
    %v2241 = vsel %vm647, %v2212, 0
    %v2244 = vsel %vm647, %v2213, 0
    %v2247 = vsel %vm647, %v2214, 0
    %2249 = vmatpush.msra.mxu0 0.0
    %2250 = vmatpush.msra.mxu0 0.0
    %2251 = vmatpush.msra.mxu0 0.0
    %2252 = vmatpush.msra.mxu0 0.0
    %2253 = vmatpush.msra.mxu0 0.0
    %2254 = vmatpush.msra.mxu0 0.0
    %2255 = vmatpush.msra.mxu0 0.0
    %2256 = vmatpush.msra.mxu0 0.0
    %2257 = vmatpush.msra.mxu0 0.0
    %2258 = vmatpush.msra.mxu0 0.0
    %2259 = vmatpush.msra.mxu0 0.0
    %2260 = vmatpush.msra.mxu0 0.0
    %2261 = vmatpush.msra.mxu0 %v2219
    %2262 = vmatpush.msra.mxu0 %v2218
    %2263 = vmatpush.msra.mxu0 %v2217
    %2264 = vmatpush.msra.mxu0 %v2216
    %2265 = vmatmul.f32.gmra.mxu0 %v2226
    %v2266 = vpop.f32.mrf.mxu0
    %v2267 = vadd.f32 %v2223, %v2266
    %2268 = vmatmul.f32.gmra.mxu0 %v2229
    %v2269 = vpop.f32.mrf.mxu0
    %v2270 = vadd.f32 %v2223, %v2269
    %2271 = vmatmul.f32.gmra.mxu0 %v2232
    %v2272 = vpop.f32.mrf.mxu0
    %v2273 = vadd.f32 %v2223, %v2272
    %2274 = vmatmul.f32.gmra.mxu0 %v2235
    %v2275 = vpop.f32.mrf.mxu0
    %v2276 = vadd.f32 %v2223, %v2275
    %2277 = vmatmul.f32.gmra.mxu0 %v2238
    %v2278 = vpop.f32.mrf.mxu0
    %v2279 = vadd.f32 %v2223, %v2278
    %2280 = vmatmul.f32.gmra.mxu0 %v2241
    %v2281 = vpop.f32.mrf.mxu0
    %v2282 = vadd.f32 %v2223, %v2281
    %2283 = vmatmul.f32.gmra.mxu0 %v2244
    %v2284 = vpop.f32.mrf.mxu0
    %v2285 = vadd.f32 %v2223, %v2284
    %2286 = vmatmul.f32.gmra.mxu0 %v2247
    %v2287 = vpop.f32.mrf.mxu0
    %v2288 = vadd.f32 %v2223, %v2287
    %2289 = vdwg.mxu0
    %s2290 = scalar_lea.vmem %s5, 256
    %v2291 = vld [vmem:[%s2290] sm:$0xff]
    %v2292 = vld [vmem:[%s2290 + $0x8] sm:$0xff]
    %v2293 = vld [vmem:[%s2290 + $0x10] sm:$0xff]
    %v2294 = vld [vmem:[%s2290 + $0x18] sm:$0xff]
    %s2295 = scalar_lea.vmem %s6, 8
    %v2296 = vld [vmem:[%s2295] sm:$0x1]
    %v2298 = vperm.slane %v2296, 0
    %2300 = vmatpush.msra.mxu0 0.0
    %2301 = vmatpush.msra.mxu0 0.0
    %2302 = vmatpush.msra.mxu0 0.0
    %2303 = vmatpush.msra.mxu0 0.0
    %2304 = vmatpush.msra.mxu0 0.0
    %2305 = vmatpush.msra.mxu0 0.0
    %2306 = vmatpush.msra.mxu0 0.0
    %2307 = vmatpush.msra.mxu0 0.0
    %2308 = vmatpush.msra.mxu0 0.0
    %2309 = vmatpush.msra.mxu0 0.0
    %2310 = vmatpush.msra.mxu0 0.0
    %2311 = vmatpush.msra.mxu0 0.0
    %2312 = vmatpush.msra.mxu0 %v2294
    %2313 = vmatpush.msra.mxu0 %v2293
    %2314 = vmatpush.msra.mxu0 %v2292
    %2315 = vmatpush.msra.mxu0 %v2291
    %2316 = vmatmul.f32.gmra.mxu0 %v2226
    %v2317 = vpop.f32.mrf.mxu0
    %v2318 = vadd.f32 %v2298, %v2317
    %2319 = vmatmul.f32.gmra.mxu0 %v2229
    %v2320 = vpop.f32.mrf.mxu0
    %v2321 = vadd.f32 %v2298, %v2320
    %2322 = vmatmul.f32.gmra.mxu0 %v2232
    %v2323 = vpop.f32.mrf.mxu0
    %v2324 = vadd.f32 %v2298, %v2323
    %2325 = vmatmul.f32.gmra.mxu0 %v2235
    %v2326 = vpop.f32.mrf.mxu0
    %v2327 = vadd.f32 %v2298, %v2326
    %2328 = vmatmul.f32.gmra.mxu0 %v2238
    %v2329 = vpop.f32.mrf.mxu0
    %v2330 = vadd.f32 %v2298, %v2329
    %2331 = vmatmul.f32.gmra.mxu0 %v2241
    %v2332 = vpop.f32.mrf.mxu0
    %v2333 = vadd.f32 %v2298, %v2332
    %2334 = vmatmul.f32.gmra.mxu0 %v2244
    %v2335 = vpop.f32.mrf.mxu0
    %v2336 = vadd.f32 %v2298, %v2335
    %2337 = vmatmul.f32.gmra.mxu0 %v2247
    %v2338 = vpop.f32.mrf.mxu0
    %v2339 = vadd.f32 %v2298, %v2338
    %2340 = vdwg.mxu0
    %s2341 = scalar_lea.vmem %s5, 320
    %v2342 = vld [vmem:[%s2341] sm:$0xff]
    %v2343 = vld [vmem:[%s2341 + $0x8] sm:$0xff]
    %v2344 = vld [vmem:[%s2341 + $0x10] sm:$0xff]
    %v2345 = vld [vmem:[%s2341 + $0x18] sm:$0xff]
    %s2346 = scalar_lea.vmem %s6, 10
    %v2347 = vld [vmem:[%s2346] sm:$0x1]
    %v2349 = vperm.slane %v2347, 0
    %2351 = vmatpush.msra.mxu0 0.0
    %2352 = vmatpush.msra.mxu0 0.0
    %2353 = vmatpush.msra.mxu0 0.0
    %2354 = vmatpush.msra.mxu0 0.0
    %2355 = vmatpush.msra.mxu0 0.0
    %2356 = vmatpush.msra.mxu0 0.0
    %2357 = vmatpush.msra.mxu0 0.0
    %2358 = vmatpush.msra.mxu0 0.0
    %2359 = vmatpush.msra.mxu0 0.0
    %2360 = vmatpush.msra.mxu0 0.0
    %2361 = vmatpush.msra.mxu0 0.0
    %2362 = vmatpush.msra.mxu0 0.0
    %2363 = vmatpush.msra.mxu0 %v2345
    %2364 = vmatpush.msra.mxu0 %v2344
    %2365 = vmatpush.msra.mxu0 %v2343
    %2366 = vmatpush.msra.mxu0 %v2342
    %2367 = vmatmul.f32.gmra.mxu0 %v2226
    %v2368 = vpop.f32.mrf.mxu0
    %v2369 = vadd.f32 %v2349, %v2368
    %2370 = vmatmul.f32.gmra.mxu0 %v2229
    %v2371 = vpop.f32.mrf.mxu0
    %v2372 = vadd.f32 %v2349, %v2371
    %2373 = vmatmul.f32.gmra.mxu0 %v2232
    %v2374 = vpop.f32.mrf.mxu0
    %v2375 = vadd.f32 %v2349, %v2374
    %2376 = vmatmul.f32.gmra.mxu0 %v2235
    %v2377 = vpop.f32.mrf.mxu0
    %v2378 = vadd.f32 %v2349, %v2377
    %2379 = vmatmul.f32.gmra.mxu0 %v2238
    %v2380 = vpop.f32.mrf.mxu0
    %v2381 = vadd.f32 %v2349, %v2380
    %2382 = vmatmul.f32.gmra.mxu0 %v2241
    %v2383 = vpop.f32.mrf.mxu0
    %v2384 = vadd.f32 %v2349, %v2383
    %2385 = vmatmul.f32.gmra.mxu0 %v2244
    %v2386 = vpop.f32.mrf.mxu0
    %v2387 = vadd.f32 %v2349, %v2386
    %2388 = vmatmul.f32.gmra.mxu0 %v2247
    %v2389 = vpop.f32.mrf.mxu0
    %v2390 = vadd.f32 %v2349, %v2389
    %2391 = vdwg.mxu0
    %v2393 = vsel %vm565, %v2267, 0
    %v2396 = vsel %vm565, %v2270, 0
    %v2399 = vsel %vm565, %v2273, 0
    %v2402 = vsel %vm565, %v2276, 0
    %v2405 = vsel %vm565, %v2279, 0
    %v2408 = vsel %vm565, %v2282, 0
    %v2411 = vsel %vm565, %v2285, 0
    %v2414 = vsel %vm565, %v2288, 0
    %v2417 = vsel %vm565, %v2318, 0
    %v2420 = vsel %vm565, %v2321, 0
    %v2423 = vsel %vm565, %v2324, 0
    %v2426 = vsel %vm565, %v2327, 0
    %v2429 = vsel %vm565, %v2330, 0
    %v2432 = vsel %vm565, %v2333, 0
    %v2435 = vsel %vm565, %v2336, 0
    %v2438 = vsel %vm565, %v2339, 0
    %2440 = vmatpush.xpose.msra.mxu0 0.0
    %2441 = vmatpush.xpose.msra.mxu0 0.0
    %2442 = vmatpush.xpose.msra.mxu0 0.0
    %2443 = vmatpush.xpose.msra.mxu0 0.0
    %2444 = vmatpush.xpose.msra.mxu0 0.0
    %2445 = vmatpush.xpose.msra.mxu0 0.0
    %2446 = vmatpush.xpose.msra.mxu0 0.0
    %2447 = vmatpush.xpose.msra.mxu0 0.0
    %2448 = vmatpush.xpose.msra.mxu0 %v2438
    %2449 = vmatpush.xpose.msra.mxu0 %v2435
    %2450 = vmatpush.xpose.msra.mxu0 %v2432
    %2451 = vmatpush.xpose.msra.mxu0 %v2429
    %2452 = vmatpush.xpose.msra.mxu0 %v2426
    %2453 = vmatpush.xpose.msra.mxu0 %v2423
    %2454 = vmatpush.xpose.msra.mxu0 %v2420
    %2455 = vmatpush.xpose.msra.mxu0 %v2417
    %2456 = vmatmul.f32.gmra.mxu0 %v2393
    %v2457 = vpop.f32.mrf.mxu0
    %v2458 = vadd.f32 0.0, %v2457
    %2459 = vmatmul.f32.gmra.mxu0 %v2396
    %v2460 = vpop.f32.mrf.mxu0
    %v2461 = vadd.f32 0.0, %v2460
    %2462 = vmatmul.f32.gmra.mxu0 %v2399
    %v2463 = vpop.f32.mrf.mxu0
    %v2464 = vadd.f32 0.0, %v2463
    %2465 = vmatmul.f32.gmra.mxu0 %v2402
    %v2466 = vpop.f32.mrf.mxu0
    %v2467 = vadd.f32 0.0, %v2466
    %2468 = vmatmul.f32.gmra.mxu0 %v2405
    %v2469 = vpop.f32.mrf.mxu0
    %v2470 = vadd.f32 0.0, %v2469
    %2471 = vmatmul.f32.gmra.mxu0 %v2408
    %v2472 = vpop.f32.mrf.mxu0
    %v2473 = vadd.f32 0.0, %v2472
    %2474 = vmatmul.f32.gmra.mxu0 %v2411
    %v2475 = vpop.f32.mrf.mxu0
    %v2476 = vadd.f32 0.0, %v2475
    %2477 = vmatmul.f32.gmra.mxu0 %v2414
    %v2478 = vpop.f32.mrf.mxu0
    %v2479 = vadd.f32 0.0, %v2478
    %2480 = vdwg.mxu0
    %v2481 = vmul.f32 %v2458, 0.25
    %v2482 = vmul.f32 %v2461, 0.25
    %v2483 = vmul.f32 %v2464, 0.25
    %v2484 = vmul.f32 %v2467, 0.25
    %v2485 = vmul.f32 %v2470, 0.25
    %v2486 = vmul.f32 %v2473, 0.25
    %v2487 = vmul.f32 %v2476, 0.25
    %v2488 = vmul.f32 %v2479, 0.25
    %v2489 = vadd.f32 %v2481, %v168
    %v2490 = vadd.f32 %v2482, %v169
    %v2491 = vadd.f32 %v2483, %v170
    %v2492 = vadd.f32 %v2484, %v171
    %v2493 = vadd.f32 %v2485, %v172
    %v2494 = vadd.f32 %v2486, %v173
    %v2495 = vadd.f32 %v2487, %v174
    %v2496 = vadd.f32 %v2488, %v175
    %v2497 = vsel %vm343, %v2489, -inf
    %2498 = vmax.xlane.f32.xlu0 %v2497
    %v2499 = vpop.xlane.xlu0 %2498
    %v2500 = vsel %vm343, %v2490, -inf
    %2501 = vmax.xlane.f32.xlu0 %v2500
    %v2502 = vpop.xlane.xlu0 %2501
    %v2503 = vsel %vm343, %v2491, -inf
    %2504 = vmax.xlane.f32.xlu0 %v2503
    %v2505 = vpop.xlane.xlu0 %2504
    %v2506 = vsel %vm343, %v2492, -inf
    %2507 = vmax.xlane.f32.xlu0 %v2506
    %v2508 = vpop.xlane.xlu0 %2507
    %v2509 = vsel %vm343, %v2493, -inf
    %2510 = vmax.xlane.f32.xlu0 %v2509
    %v2511 = vpop.xlane.xlu0 %2510
    %v2512 = vsel %vm343, %v2494, -inf
    %2513 = vmax.xlane.f32.xlu0 %v2512
    %v2514 = vpop.xlane.xlu0 %2513
    %v2515 = vsel %vm343, %v2495, -inf
    %2516 = vmax.xlane.f32.xlu0 %v2515
    %v2517 = vpop.xlane.xlu0 %2516
    %v2518 = vsel %vm343, %v2496, -inf
    %2519 = vmax.xlane.f32.xlu0 %v2518
    %v2520 = vpop.xlane.xlu0 %2519
    %v2521 = vsub.f32 %v2489, %v2499
    %v2522 = vsub.f32 %v2490, %v2502
    %v2523 = vsub.f32 %v2491, %v2505
    %v2524 = vsub.f32 %v2492, %v2508
    %v2525 = vsub.f32 %v2493, %v2511
    %v2526 = vsub.f32 %v2494, %v2514
    %v2527 = vsub.f32 %v2495, %v2517
    %v2528 = vsub.f32 %v2496, %v2520
    %v2529 = vmul.f32 %v2521, 1.442695
    %v2530 = vpow.pop %v2529
    %v2531 = vmul.f32 %v2522, 1.442695
    %v2532 = vpow.pop %v2531
    %v2533 = vmul.f32 %v2523, 1.442695
    %v2534 = vpow.pop %v2533
    %v2535 = vmul.f32 %v2524, 1.442695
    %v2536 = vpow.pop %v2535
    %v2537 = vmul.f32 %v2525, 1.442695
    %v2538 = vpow.pop %v2537
    %v2539 = vmul.f32 %v2526, 1.442695
    %v2540 = vpow.pop %v2539
    %v2541 = vmul.f32 %v2527, 1.442695
    %v2542 = vpow.pop %v2541
    %v2543 = vmul.f32 %v2528, 1.442695
    %v2544 = vpow.pop %v2543
    %v2545 = vsel %vm343, %v2530, 0.0
    %2546 = vadd.xlane.f32.xlu0 %v2545
    %v2547 = vpop.xlane.xlu0 %2546
    %v2548 = vsel %vm343, %v2532, 0.0
    %2549 = vadd.xlane.f32.xlu0 %v2548
    %v2550 = vpop.xlane.xlu0 %2549
    %v2551 = vsel %vm343, %v2534, 0.0
    %2552 = vadd.xlane.f32.xlu0 %v2551
    %v2553 = vpop.xlane.xlu0 %2552
    %v2554 = vsel %vm343, %v2536, 0.0
    %2555 = vadd.xlane.f32.xlu0 %v2554
    %v2556 = vpop.xlane.xlu0 %2555
    %v2557 = vsel %vm343, %v2538, 0.0
    %2558 = vadd.xlane.f32.xlu0 %v2557
    %v2559 = vpop.xlane.xlu0 %2558
    %v2560 = vsel %vm343, %v2540, 0.0
    %2561 = vadd.xlane.f32.xlu0 %v2560
    %v2562 = vpop.xlane.xlu0 %2561
    %v2563 = vsel %vm343, %v2542, 0.0
    %2564 = vadd.xlane.f32.xlu0 %v2563
    %v2565 = vpop.xlane.xlu0 %2564
    %v2566 = vsel %vm343, %v2544, 0.0
    %2567 = vadd.xlane.f32.xlu0 %v2566
    %v2568 = vpop.xlane.xlu0 %2567
    %v2569 = vrcp.pop %v2547
    %v2570 = vrcp.pop %v2550
    %v2571 = vrcp.pop %v2553
    %v2572 = vrcp.pop %v2556
    %v2573 = vrcp.pop %v2559
    %v2574 = vrcp.pop %v2562
    %v2575 = vrcp.pop %v2565
    %v2576 = vrcp.pop %v2568
    %v2577 = vmul.f32 %v2530, %v2569
    %v2578 = vmul.f32 %v2532, %v2570
    %v2579 = vmul.f32 %v2534, %v2571
    %v2580 = vmul.f32 %v2536, %v2572
    %v2581 = vmul.f32 %v2538, %v2573
    %v2582 = vmul.f32 %v2540, %v2574
    %v2583 = vmul.f32 %v2542, %v2575
    %v2584 = vmul.f32 %v2544, %v2576
    %v2586 = vsel %vm343, %v2577, 0
    %v2589 = vsel %vm343, %v2578, 0
    %v2592 = vsel %vm343, %v2579, 0
    %v2595 = vsel %vm343, %v2580, 0
    %v2598 = vsel %vm343, %v2581, 0
    %v2601 = vsel %vm343, %v2582, 0
    %v2604 = vsel %vm343, %v2583, 0
    %v2607 = vsel %vm343, %v2584, 0
    %2609 = vmatpush.msra.mxu0 0.0
    %2610 = vmatpush.msra.mxu0 0.0
    %2611 = vmatpush.msra.mxu0 0.0
    %2612 = vmatpush.msra.mxu0 0.0
    %2613 = vmatpush.msra.mxu0 0.0
    %2614 = vmatpush.msra.mxu0 0.0
    %2615 = vmatpush.msra.mxu0 0.0
    %2616 = vmatpush.msra.mxu0 0.0
    %2617 = vmatpush.msra.mxu0 %v2390
    %2618 = vmatpush.msra.mxu0 %v2387
    %2619 = vmatpush.msra.mxu0 %v2384
    %2620 = vmatpush.msra.mxu0 %v2381
    %2621 = vmatpush.msra.mxu0 %v2378
    %2622 = vmatpush.msra.mxu0 %v2375
    %2623 = vmatpush.msra.mxu0 %v2372
    %2624 = vmatpush.msra.mxu0 %v2369
    %2625 = vmatmul.f32.gmra.mxu0 %v2586
    %v2626 = vpop.f32.mrf.mxu0
    %v2627 = vadd.f32 0.0, %v2626
    %2628 = vmatmul.f32.gmra.mxu0 %v2589
    %v2629 = vpop.f32.mrf.mxu0
    %v2630 = vadd.f32 0.0, %v2629
    %2631 = vmatmul.f32.gmra.mxu0 %v2592
    %v2632 = vpop.f32.mrf.mxu0
    %v2633 = vadd.f32 0.0, %v2632
    %2634 = vmatmul.f32.gmra.mxu0 %v2595
    %v2635 = vpop.f32.mrf.mxu0
    %v2636 = vadd.f32 0.0, %v2635
    %2637 = vmatmul.f32.gmra.mxu0 %v2598
    %v2638 = vpop.f32.mrf.mxu0
    %v2639 = vadd.f32 0.0, %v2638
    %2640 = vmatmul.f32.gmra.mxu0 %v2601
    %v2641 = vpop.f32.mrf.mxu0
    %v2642 = vadd.f32 0.0, %v2641
    %2643 = vmatmul.f32.gmra.mxu0 %v2604
    %v2644 = vpop.f32.mrf.mxu0
    %v2645 = vadd.f32 0.0, %v2644
    %2646 = vmatmul.f32.gmra.mxu0 %v2607
    %v2647 = vpop.f32.mrf.mxu0
    %v2648 = vadd.f32 0.0, %v2647
    %2649 = vdwg.mxu0
    %s2650 = scalar_lea.vmem %s7, 32
    %v2651 = vld [vmem:[%s2650] sm:$0xff]
    %v2652 = vld [vmem:[%s2650 + $0x8] sm:$0xff]
    %s2653 = scalar_lea.vmem %s5, 224
    %v2654 = vld [vmem:[%s2653] sm:$0xff]
    %v2655 = vld [vmem:[%s2653 + $0x8] sm:$0xff]
    %v2656 = vld [vmem:[%s2653 + $0x10] sm:$0xff]
    %v2657 = vld [vmem:[%s2653 + $0x18] sm:$0xff]
    %s2658 = scalar_lea.vmem %s6, 7
    %v2659 = vld [vmem:[%s2658] sm:$0x1]
    %v2661 = vperm.slane %v2659, 0
    %2663 = vmatpush.msra.mxu0 0.0
    %2664 = vmatpush.msra.mxu0 0.0
    %2665 = vmatpush.msra.mxu0 0.0
    %2666 = vmatpush.msra.mxu0 0.0
    %2667 = vmatpush.msra.mxu0 0.0
    %2668 = vmatpush.msra.mxu0 0.0
    %2669 = vmatpush.msra.mxu0 0.0
    %2670 = vmatpush.msra.mxu0 0.0
    %2671 = vmatpush.msra.mxu0 0.0
    %2672 = vmatpush.msra.mxu0 0.0
    %2673 = vmatpush.msra.mxu0 0.0
    %2674 = vmatpush.msra.mxu0 0.0
    %2675 = vmatpush.msra.mxu0 %v2657
    %2676 = vmatpush.msra.mxu0 %v2656
    %2677 = vmatpush.msra.mxu0 %v2655
    %2678 = vmatpush.msra.mxu0 %v2654
    %2679 = vmatmul.f32.gmra.mxu0 %v2226
    %v2680 = vpop.f32.mrf.mxu0
    %v2681 = vadd.f32 %v2661, %v2680
    %2682 = vmatmul.f32.gmra.mxu0 %v2229
    %v2683 = vpop.f32.mrf.mxu0
    %v2684 = vadd.f32 %v2661, %v2683
    %2685 = vmatmul.f32.gmra.mxu0 %v2232
    %v2686 = vpop.f32.mrf.mxu0
    %v2687 = vadd.f32 %v2661, %v2686
    %2688 = vmatmul.f32.gmra.mxu0 %v2235
    %v2689 = vpop.f32.mrf.mxu0
    %v2690 = vadd.f32 %v2661, %v2689
    %2691 = vmatmul.f32.gmra.mxu0 %v2238
    %v2692 = vpop.f32.mrf.mxu0
    %v2693 = vadd.f32 %v2661, %v2692
    %2694 = vmatmul.f32.gmra.mxu0 %v2241
    %v2695 = vpop.f32.mrf.mxu0
    %v2696 = vadd.f32 %v2661, %v2695
    %2697 = vmatmul.f32.gmra.mxu0 %v2244
    %v2698 = vpop.f32.mrf.mxu0
    %v2699 = vadd.f32 %v2661, %v2698
    %2700 = vmatmul.f32.gmra.mxu0 %v2247
    %v2701 = vpop.f32.mrf.mxu0
    %v2702 = vadd.f32 %v2661, %v2701
    %2703 = vdwg.mxu0
    %s2704 = scalar_lea.vmem %s5, 288
    %v2705 = vld [vmem:[%s2704] sm:$0xff]
    %v2706 = vld [vmem:[%s2704 + $0x8] sm:$0xff]
    %v2707 = vld [vmem:[%s2704 + $0x10] sm:$0xff]
    %v2708 = vld [vmem:[%s2704 + $0x18] sm:$0xff]
    %s2709 = scalar_lea.vmem %s6, 9
    %v2710 = vld [vmem:[%s2709] sm:$0x1]
    %v2712 = vperm.slane %v2710, 0
    %2714 = vmatpush.msra.mxu0 0.0
    %2715 = vmatpush.msra.mxu0 0.0
    %2716 = vmatpush.msra.mxu0 0.0
    %2717 = vmatpush.msra.mxu0 0.0
    %2718 = vmatpush.msra.mxu0 0.0
    %2719 = vmatpush.msra.mxu0 0.0
    %2720 = vmatpush.msra.mxu0 0.0
    %2721 = vmatpush.msra.mxu0 0.0
    %2722 = vmatpush.msra.mxu0 0.0
    %2723 = vmatpush.msra.mxu0 0.0
    %2724 = vmatpush.msra.mxu0 0.0
    %2725 = vmatpush.msra.mxu0 0.0
    %2726 = vmatpush.msra.mxu0 %v2708
    %2727 = vmatpush.msra.mxu0 %v2707
    %2728 = vmatpush.msra.mxu0 %v2706
    %2729 = vmatpush.msra.mxu0 %v2705
    %2730 = vmatmul.f32.gmra.mxu0 %v2226
    %v2731 = vpop.f32.mrf.mxu0
    %v2732 = vadd.f32 %v2712, %v2731
    %2733 = vmatmul.f32.gmra.mxu0 %v2229
    %v2734 = vpop.f32.mrf.mxu0
    %v2735 = vadd.f32 %v2712, %v2734
    %2736 = vmatmul.f32.gmra.mxu0 %v2232
    %v2737 = vpop.f32.mrf.mxu0
    %v2738 = vadd.f32 %v2712, %v2737
    %2739 = vmatmul.f32.gmra.mxu0 %v2235
    %v2740 = vpop.f32.mrf.mxu0
    %v2741 = vadd.f32 %v2712, %v2740
    %2742 = vmatmul.f32.gmra.mxu0 %v2238
    %v2743 = vpop.f32.mrf.mxu0
    %v2744 = vadd.f32 %v2712, %v2743
    %2745 = vmatmul.f32.gmra.mxu0 %v2241
    %v2746 = vpop.f32.mrf.mxu0
    %v2747 = vadd.f32 %v2712, %v2746
    %2748 = vmatmul.f32.gmra.mxu0 %v2244
    %v2749 = vpop.f32.mrf.mxu0
    %v2750 = vadd.f32 %v2712, %v2749
    %2751 = vmatmul.f32.gmra.mxu0 %v2247
    %v2752 = vpop.f32.mrf.mxu0
    %v2753 = vadd.f32 %v2712, %v2752
    %2754 = vdwg.mxu0
    %s2755 = scalar_lea.vmem %s5, 352
    %v2756 = vld [vmem:[%s2755] sm:$0xff]
    %v2757 = vld [vmem:[%s2755 + $0x8] sm:$0xff]
    %v2758 = vld [vmem:[%s2755 + $0x10] sm:$0xff]
    %v2759 = vld [vmem:[%s2755 + $0x18] sm:$0xff]
    %s2760 = scalar_lea.vmem %s6, 11
    %v2761 = vld [vmem:[%s2760] sm:$0x1]
    %v2763 = vperm.slane %v2761, 0
    %2765 = vmatpush.msra.mxu0 0.0
    %2766 = vmatpush.msra.mxu0 0.0
    %2767 = vmatpush.msra.mxu0 0.0
    %2768 = vmatpush.msra.mxu0 0.0
    %2769 = vmatpush.msra.mxu0 0.0
    %2770 = vmatpush.msra.mxu0 0.0
    %2771 = vmatpush.msra.mxu0 0.0
    %2772 = vmatpush.msra.mxu0 0.0
    %2773 = vmatpush.msra.mxu0 0.0
    %2774 = vmatpush.msra.mxu0 0.0
    %2775 = vmatpush.msra.mxu0 0.0
    %2776 = vmatpush.msra.mxu0 0.0
    %2777 = vmatpush.msra.mxu0 %v2759
    %2778 = vmatpush.msra.mxu0 %v2758
    %2779 = vmatpush.msra.mxu0 %v2757
    %2780 = vmatpush.msra.mxu0 %v2756
    %2781 = vmatmul.f32.gmra.mxu0 %v2226
    %v2782 = vpop.f32.mrf.mxu0
    %v2783 = vadd.f32 %v2763, %v2782
    %2784 = vmatmul.f32.gmra.mxu0 %v2229
    %v2785 = vpop.f32.mrf.mxu0
    %v2786 = vadd.f32 %v2763, %v2785
    %2787 = vmatmul.f32.gmra.mxu0 %v2232
    %v2788 = vpop.f32.mrf.mxu0
    %v2789 = vadd.f32 %v2763, %v2788
    %2790 = vmatmul.f32.gmra.mxu0 %v2235
    %v2791 = vpop.f32.mrf.mxu0
    %v2792 = vadd.f32 %v2763, %v2791
    %2793 = vmatmul.f32.gmra.mxu0 %v2238
    %v2794 = vpop.f32.mrf.mxu0
    %v2795 = vadd.f32 %v2763, %v2794
    %2796 = vmatmul.f32.gmra.mxu0 %v2241
    %v2797 = vpop.f32.mrf.mxu0
    %v2798 = vadd.f32 %v2763, %v2797
    %2799 = vmatmul.f32.gmra.mxu0 %v2244
    %v2800 = vpop.f32.mrf.mxu0
    %v2801 = vadd.f32 %v2763, %v2800
    %2802 = vmatmul.f32.gmra.mxu0 %v2247
    %v2803 = vpop.f32.mrf.mxu0
    %v2804 = vadd.f32 %v2763, %v2803
    %2805 = vdwg.mxu0
    %v2807 = vsel %vm565, %v2681, 0
    %v2810 = vsel %vm565, %v2684, 0
    %v2813 = vsel %vm565, %v2687, 0
    %v2816 = vsel %vm565, %v2690, 0
    %v2819 = vsel %vm565, %v2693, 0
    %v2822 = vsel %vm565, %v2696, 0
    %v2825 = vsel %vm565, %v2699, 0
    %v2828 = vsel %vm565, %v2702, 0
    %v2831 = vsel %vm565, %v2732, 0
    %v2834 = vsel %vm565, %v2735, 0
    %v2837 = vsel %vm565, %v2738, 0
    %v2840 = vsel %vm565, %v2741, 0
    %v2843 = vsel %vm565, %v2744, 0
    %v2846 = vsel %vm565, %v2747, 0
    %v2849 = vsel %vm565, %v2750, 0
    %v2852 = vsel %vm565, %v2753, 0
    %2854 = vmatpush.xpose.msra.mxu0 0.0
    %2855 = vmatpush.xpose.msra.mxu0 0.0
    %2856 = vmatpush.xpose.msra.mxu0 0.0
    %2857 = vmatpush.xpose.msra.mxu0 0.0
    %2858 = vmatpush.xpose.msra.mxu0 0.0
    %2859 = vmatpush.xpose.msra.mxu0 0.0
    %2860 = vmatpush.xpose.msra.mxu0 0.0
    %2861 = vmatpush.xpose.msra.mxu0 0.0
    %2862 = vmatpush.xpose.msra.mxu0 %v2852
    %2863 = vmatpush.xpose.msra.mxu0 %v2849
    %2864 = vmatpush.xpose.msra.mxu0 %v2846
    %2865 = vmatpush.xpose.msra.mxu0 %v2843
    %2866 = vmatpush.xpose.msra.mxu0 %v2840
    %2867 = vmatpush.xpose.msra.mxu0 %v2837
    %2868 = vmatpush.xpose.msra.mxu0 %v2834
    %2869 = vmatpush.xpose.msra.mxu0 %v2831
    %2870 = vmatmul.f32.gmra.mxu0 %v2807
    %v2871 = vpop.f32.mrf.mxu0
    %v2872 = vadd.f32 0.0, %v2871
    %2873 = vmatmul.f32.gmra.mxu0 %v2810
    %v2874 = vpop.f32.mrf.mxu0
    %v2875 = vadd.f32 0.0, %v2874
    %2876 = vmatmul.f32.gmra.mxu0 %v2813
    %v2877 = vpop.f32.mrf.mxu0
    %v2878 = vadd.f32 0.0, %v2877
    %2879 = vmatmul.f32.gmra.mxu0 %v2816
    %v2880 = vpop.f32.mrf.mxu0
    %v2881 = vadd.f32 0.0, %v2880
    %2882 = vmatmul.f32.gmra.mxu0 %v2819
    %v2883 = vpop.f32.mrf.mxu0
    %v2884 = vadd.f32 0.0, %v2883
    %2885 = vmatmul.f32.gmra.mxu0 %v2822
    %v2886 = vpop.f32.mrf.mxu0
    %v2887 = vadd.f32 0.0, %v2886
    %2888 = vmatmul.f32.gmra.mxu0 %v2825
    %v2889 = vpop.f32.mrf.mxu0
    %v2890 = vadd.f32 0.0, %v2889
    %2891 = vmatmul.f32.gmra.mxu0 %v2828
    %v2892 = vpop.f32.mrf.mxu0
    %v2893 = vadd.f32 0.0, %v2892
    %2894 = vdwg.mxu0
    %v2895 = vmul.f32 %v2872, 0.25
    %v2896 = vmul.f32 %v2875, 0.25
    %v2897 = vmul.f32 %v2878, 0.25
    %v2898 = vmul.f32 %v2881, 0.25
    %v2899 = vmul.f32 %v2884, 0.25
    %v2900 = vmul.f32 %v2887, 0.25
    %v2901 = vmul.f32 %v2890, 0.25
    %v2902 = vmul.f32 %v2893, 0.25
    %v2903 = vadd.f32 %v2895, %v168
    %v2904 = vadd.f32 %v2896, %v169
    %v2905 = vadd.f32 %v2897, %v170
    %v2906 = vadd.f32 %v2898, %v171
    %v2907 = vadd.f32 %v2899, %v172
    %v2908 = vadd.f32 %v2900, %v173
    %v2909 = vadd.f32 %v2901, %v174
    %v2910 = vadd.f32 %v2902, %v175
    %v2911 = vsel %vm343, %v2903, -inf
    %2912 = vmax.xlane.f32.xlu0 %v2911
    %v2913 = vpop.xlane.xlu0 %2912
    %v2914 = vsel %vm343, %v2904, -inf
    %2915 = vmax.xlane.f32.xlu0 %v2914
    %v2916 = vpop.xlane.xlu0 %2915
    %v2917 = vsel %vm343, %v2905, -inf
    %2918 = vmax.xlane.f32.xlu0 %v2917
    %v2919 = vpop.xlane.xlu0 %2918
    %v2920 = vsel %vm343, %v2906, -inf
    %2921 = vmax.xlane.f32.xlu0 %v2920
    %v2922 = vpop.xlane.xlu0 %2921
    %v2923 = vsel %vm343, %v2907, -inf
    %2924 = vmax.xlane.f32.xlu0 %v2923
    %v2925 = vpop.xlane.xlu0 %2924
    %v2926 = vsel %vm343, %v2908, -inf
    %2927 = vmax.xlane.f32.xlu0 %v2926
    %v2928 = vpop.xlane.xlu0 %2927
    %v2929 = vsel %vm343, %v2909, -inf
    %2930 = vmax.xlane.f32.xlu0 %v2929
    %v2931 = vpop.xlane.xlu0 %2930
    %v2932 = vsel %vm343, %v2910, -inf
    %2933 = vmax.xlane.f32.xlu0 %v2932
    %v2934 = vpop.xlane.xlu0 %2933
    %v2935 = vsub.f32 %v2903, %v2913
    %v2936 = vsub.f32 %v2904, %v2916
    %v2937 = vsub.f32 %v2905, %v2919
    %v2938 = vsub.f32 %v2906, %v2922
    %v2939 = vsub.f32 %v2907, %v2925
    %v2940 = vsub.f32 %v2908, %v2928
    %v2941 = vsub.f32 %v2909, %v2931
    %v2942 = vsub.f32 %v2910, %v2934
    %v2943 = vmul.f32 %v2935, 1.442695
    %v2944 = vpow.pop %v2943
    %v2945 = vmul.f32 %v2936, 1.442695
    %v2946 = vpow.pop %v2945
    %v2947 = vmul.f32 %v2937, 1.442695
    %v2948 = vpow.pop %v2947
    %v2949 = vmul.f32 %v2938, 1.442695
    %v2950 = vpow.pop %v2949
    %v2951 = vmul.f32 %v2939, 1.442695
    %v2952 = vpow.pop %v2951
    %v2953 = vmul.f32 %v2940, 1.442695
    %v2954 = vpow.pop %v2953
    %v2955 = vmul.f32 %v2941, 1.442695
    %v2956 = vpow.pop %v2955
    %v2957 = vmul.f32 %v2942, 1.442695
    %v2958 = vpow.pop %v2957
    %v2959 = vsel %vm343, %v2944, 0.0
    %2960 = vadd.xlane.f32.xlu0 %v2959
    %v2961 = vpop.xlane.xlu0 %2960
    %v2962 = vsel %vm343, %v2946, 0.0
    %2963 = vadd.xlane.f32.xlu0 %v2962
    %v2964 = vpop.xlane.xlu0 %2963
    %v2965 = vsel %vm343, %v2948, 0.0
    %2966 = vadd.xlane.f32.xlu0 %v2965
    %v2967 = vpop.xlane.xlu0 %2966
    %v2968 = vsel %vm343, %v2950, 0.0
    %2969 = vadd.xlane.f32.xlu0 %v2968
    %v2970 = vpop.xlane.xlu0 %2969
    %v2971 = vsel %vm343, %v2952, 0.0
    %2972 = vadd.xlane.f32.xlu0 %v2971
    %v2973 = vpop.xlane.xlu0 %2972
    %v2974 = vsel %vm343, %v2954, 0.0
    %2975 = vadd.xlane.f32.xlu0 %v2974
    %v2976 = vpop.xlane.xlu0 %2975
    %v2977 = vsel %vm343, %v2956, 0.0
    %2978 = vadd.xlane.f32.xlu0 %v2977
    %v2979 = vpop.xlane.xlu0 %2978
    %v2980 = vsel %vm343, %v2958, 0.0
    %2981 = vadd.xlane.f32.xlu0 %v2980
    %v2982 = vpop.xlane.xlu0 %2981
    %v2983 = vrcp.pop %v2961
    %v2984 = vrcp.pop %v2964
    %v2985 = vrcp.pop %v2967
    %v2986 = vrcp.pop %v2970
    %v2987 = vrcp.pop %v2973
    %v2988 = vrcp.pop %v2976
    %v2989 = vrcp.pop %v2979
    %v2990 = vrcp.pop %v2982
    %v2991 = vmul.f32 %v2944, %v2983
    %v2992 = vmul.f32 %v2946, %v2984
    %v2993 = vmul.f32 %v2948, %v2985
    %v2994 = vmul.f32 %v2950, %v2986
    %v2995 = vmul.f32 %v2952, %v2987
    %v2996 = vmul.f32 %v2954, %v2988
    %v2997 = vmul.f32 %v2956, %v2989
    %v2998 = vmul.f32 %v2958, %v2990
    %v3000 = vsel %vm343, %v2991, 0
    %v3003 = vsel %vm343, %v2992, 0
    %v3006 = vsel %vm343, %v2993, 0
    %v3009 = vsel %vm343, %v2994, 0
    %v3012 = vsel %vm343, %v2995, 0
    %v3015 = vsel %vm343, %v2996, 0
    %v3018 = vsel %vm343, %v2997, 0
    %v3021 = vsel %vm343, %v2998, 0
    %3023 = vmatpush.msra.mxu0 0.0
    %3024 = vmatpush.msra.mxu0 0.0
    %3025 = vmatpush.msra.mxu0 0.0
    %3026 = vmatpush.msra.mxu0 0.0
    %3027 = vmatpush.msra.mxu0 0.0
    %3028 = vmatpush.msra.mxu0 0.0
    %3029 = vmatpush.msra.mxu0 0.0
    %3030 = vmatpush.msra.mxu0 0.0
    %3031 = vmatpush.msra.mxu0 %v2804
    %3032 = vmatpush.msra.mxu0 %v2801
    %3033 = vmatpush.msra.mxu0 %v2798
    %3034 = vmatpush.msra.mxu0 %v2795
    %3035 = vmatpush.msra.mxu0 %v2792
    %3036 = vmatpush.msra.mxu0 %v2789
    %3037 = vmatpush.msra.mxu0 %v2786
    %3038 = vmatpush.msra.mxu0 %v2783
    %3039 = vmatmul.f32.gmra.mxu0 %v3000
    %v3040 = vpop.f32.mrf.mxu0
    %v3041 = vadd.f32 0.0, %v3040
    %3042 = vmatmul.f32.gmra.mxu0 %v3003
    %v3043 = vpop.f32.mrf.mxu0
    %v3044 = vadd.f32 0.0, %v3043
    %3045 = vmatmul.f32.gmra.mxu0 %v3006
    %v3046 = vpop.f32.mrf.mxu0
    %v3047 = vadd.f32 0.0, %v3046
    %3048 = vmatmul.f32.gmra.mxu0 %v3009
    %v3049 = vpop.f32.mrf.mxu0
    %v3050 = vadd.f32 0.0, %v3049
    %3051 = vmatmul.f32.gmra.mxu0 %v3012
    %v3052 = vpop.f32.mrf.mxu0
    %v3053 = vadd.f32 0.0, %v3052
    %3054 = vmatmul.f32.gmra.mxu0 %v3015
    %v3055 = vpop.f32.mrf.mxu0
    %v3056 = vadd.f32 0.0, %v3055
    %3057 = vmatmul.f32.gmra.mxu0 %v3018
    %v3058 = vpop.f32.mrf.mxu0
    %v3059 = vadd.f32 0.0, %v3058
    %3060 = vmatmul.f32.gmra.mxu0 %v3021
    %v3061 = vpop.f32.mrf.mxu0
    %v3062 = vadd.f32 0.0, %v3061
    %3063 = vdwg.mxu0
    %s3064 = scalar_lea.vmem %s7, 48
    %v3065 = vld [vmem:[%s3064] sm:$0xff]
    %v3066 = vld [vmem:[%s3064 + $0x8] sm:$0xff]
    %v3068 = vsel %vm565, %v3041, 0
    %v3071 = vsel %vm565, %v3044, 0
    %v3074 = vsel %vm565, %v3047, 0
    %v3077 = vsel %vm565, %v3050, 0
    %v3080 = vsel %vm565, %v3053, 0
    %v3083 = vsel %vm565, %v3056, 0
    %v3086 = vsel %vm565, %v3059, 0
    %v3089 = vsel %vm565, %v3062, 0
    %3091 = vmatpush.msra.mxu0 0.0
    %3092 = vmatpush.msra.mxu0 0.0
    %3093 = vmatpush.msra.mxu0 0.0
    %3094 = vmatpush.msra.mxu0 0.0
    %3095 = vmatpush.msra.mxu0 0.0
    %3096 = vmatpush.msra.mxu0 0.0
    %3097 = vmatpush.msra.mxu0 0.0
    %3098 = vmatpush.msra.mxu0 0.0
    %3099 = vmatpush.msra.mxu0 0.0
    %3100 = vmatpush.msra.mxu0 0.0
    %3101 = vmatpush.msra.mxu0 0.0
    %3102 = vmatpush.msra.mxu0 0.0
    %3103 = vmatpush.msra.mxu0 0.0
    %3104 = vmatpush.msra.mxu0 0.0
    %3105 = vmatpush.msra.mxu0 %v3066
    %3106 = vmatpush.msra.mxu0 %v3065
    %3107 = vmatmul.f32.gmra.mxu0 %v3068
    %v3108 = vpop.f32.mrf.mxu0
    %v3109 = vadd.f32 0.0, %v3108
    %3110 = vmatmul.f32.gmra.mxu0 %v3071
    %v3111 = vpop.f32.mrf.mxu0
    %v3112 = vadd.f32 0.0, %v3111
    %3113 = vmatmul.f32.gmra.mxu0 %v3074
    %v3114 = vpop.f32.mrf.mxu0
    %v3115 = vadd.f32 0.0, %v3114
    %3116 = vmatmul.f32.gmra.mxu0 %v3077
    %v3117 = vpop.f32.mrf.mxu0
    %v3118 = vadd.f32 0.0, %v3117
    %3119 = vmatmul.f32.gmra.mxu0 %v3080
    %v3120 = vpop.f32.mrf.mxu0
    %v3121 = vadd.f32 0.0, %v3120
    %3122 = vmatmul.f32.gmra.mxu0 %v3083
    %v3123 = vpop.f32.mrf.mxu0
    %v3124 = vadd.f32 0.0, %v3123
    %3125 = vmatmul.f32.gmra.mxu0 %v3086
    %v3126 = vpop.f32.mrf.mxu0
    %v3127 = vadd.f32 0.0, %v3126
    %3128 = vmatmul.f32.gmra.mxu0 %v3089
    %v3129 = vpop.f32.mrf.mxu0
    %v3130 = vadd.f32 0.0, %v3129
    %3131 = vdwg.mxu0
    %v3133 = vsel %vm565, %v2627, 0
    %v3136 = vsel %vm565, %v2630, 0
    %v3139 = vsel %vm565, %v2633, 0
    %v3142 = vsel %vm565, %v2636, 0
    %v3145 = vsel %vm565, %v2639, 0
    %v3148 = vsel %vm565, %v2642, 0
    %v3151 = vsel %vm565, %v2645, 0
    %v3154 = vsel %vm565, %v2648, 0
    %3156 = vmatpush.msra.mxu0 0.0
    %3157 = vmatpush.msra.mxu0 0.0
    %3158 = vmatpush.msra.mxu0 0.0
    %3159 = vmatpush.msra.mxu0 0.0
    %3160 = vmatpush.msra.mxu0 0.0
    %3161 = vmatpush.msra.mxu0 0.0
    %3162 = vmatpush.msra.mxu0 0.0
    %3163 = vmatpush.msra.mxu0 0.0
    %3164 = vmatpush.msra.mxu0 0.0
    %3165 = vmatpush.msra.mxu0 0.0
    %3166 = vmatpush.msra.mxu0 0.0
    %3167 = vmatpush.msra.mxu0 0.0
    %3168 = vmatpush.msra.mxu0 0.0
    %3169 = vmatpush.msra.mxu0 0.0
    %3170 = vmatpush.msra.mxu0 %v2652
    %3171 = vmatpush.msra.mxu0 %v2651
    %3172 = vmatmul.f32.gmra.mxu0 %v3133
    %v3173 = vpop.f32.mrf.mxu0
    %v3174 = vadd.f32 %v3109, %v3173
    %3175 = vmatmul.f32.gmra.mxu0 %v3136
    %v3176 = vpop.f32.mrf.mxu0
    %v3177 = vadd.f32 %v3112, %v3176
    %3178 = vmatmul.f32.gmra.mxu0 %v3139
    %v3179 = vpop.f32.mrf.mxu0
    %v3180 = vadd.f32 %v3115, %v3179
    %3181 = vmatmul.f32.gmra.mxu0 %v3142
    %v3182 = vpop.f32.mrf.mxu0
    %v3183 = vadd.f32 %v3118, %v3182
    %3184 = vmatmul.f32.gmra.mxu0 %v3145
    %v3185 = vpop.f32.mrf.mxu0
    %v3186 = vadd.f32 %v3121, %v3185
    %3187 = vmatmul.f32.gmra.mxu0 %v3148
    %v3188 = vpop.f32.mrf.mxu0
    %v3189 = vadd.f32 %v3124, %v3188
    %3190 = vmatmul.f32.gmra.mxu0 %v3151
    %v3191 = vpop.f32.mrf.mxu0
    %v3192 = vadd.f32 %v3127, %v3191
    %3193 = vmatmul.f32.gmra.mxu0 %v3154
    %v3194 = vpop.f32.mrf.mxu0
    %v3195 = vadd.f32 %v3130, %v3194
    %3196 = vdwg.mxu0
    %s3197 = scalar_lea.vmem %s8, 1
    %v3198 = vld [vmem:[%s3197] sm:$0x1]
    %v3200 = vperm.slane %v3198, 0
    %v3202 = vadd.f32 %v3174, %v3200
    %v3203 = vadd.f32 %v3177, %v3200
    %v3204 = vadd.f32 %v3180, %v3200
    %v3205 = vadd.f32 %v3183, %v3200
    %v3206 = vadd.f32 %v3186, %v3200
    %v3207 = vadd.f32 %v3189, %v3200
    %v3208 = vadd.f32 %v3192, %v3200
    %v3209 = vadd.f32 %v3195, %v3200
    %v3210 = vadd.f32 %v2207, %v3202
    %v3211 = vadd.f32 %v2208, %v3203
    %v3212 = vadd.f32 %v2209, %v3204
    %v3213 = vadd.f32 %v2210, %v3205
    %v3214 = vadd.f32 %v2211, %v3206
    %v3215 = vadd.f32 %v2212, %v3207
    %v3216 = vadd.f32 %v2213, %v3208
    %v3217 = vadd.f32 %v2214, %v3209
    %s3218 = scalar_lea.vmem %s9, 4
    %v3219 = vld [vmem:[%s3218] sm:$0x1]
    %s3220 = scalar_lea.vmem %s9, 5
    %v3221 = vld [vmem:[%s3220] sm:$0x1]
    %v3222 = vsel %vm647, %v3210, 0.0
    %3223 = vadd.xlane.f32.xlu0 %v3222
    %v3224 = vpop.xlane.xlu0 %3223
    %v3225 = vsel %vm647, %v3211, 0.0
    %3226 = vadd.xlane.f32.xlu0 %v3225
    %v3227 = vpop.xlane.xlu0 %3226
    %v3228 = vsel %vm647, %v3212, 0.0
    %3229 = vadd.xlane.f32.xlu0 %v3228
    %v3230 = vpop.xlane.xlu0 %3229
    %v3231 = vsel %vm647, %v3213, 0.0
    %3232 = vadd.xlane.f32.xlu0 %v3231
    %v3233 = vpop.xlane.xlu0 %3232
    %v3234 = vsel %vm647, %v3214, 0.0
    %3235 = vadd.xlane.f32.xlu0 %v3234
    %v3236 = vpop.xlane.xlu0 %3235
    %v3237 = vsel %vm647, %v3215, 0.0
    %3238 = vadd.xlane.f32.xlu0 %v3237
    %v3239 = vpop.xlane.xlu0 %3238
    %v3240 = vsel %vm647, %v3216, 0.0
    %3241 = vadd.xlane.f32.xlu0 %v3240
    %v3242 = vpop.xlane.xlu0 %3241
    %v3243 = vsel %vm647, %v3217, 0.0
    %3244 = vadd.xlane.f32.xlu0 %v3243
    %v3245 = vpop.xlane.xlu0 %3244
    %v3246 = vmul.f32 %v3224, %v1672
    %v3247 = vmul.f32 %v3227, %v1672
    %v3248 = vmul.f32 %v3230, %v1672
    %v3249 = vmul.f32 %v3233, %v1672
    %v3250 = vmul.f32 %v3236, %v1672
    %v3251 = vmul.f32 %v3239, %v1672
    %v3252 = vmul.f32 %v3242, %v1672
    %v3253 = vmul.f32 %v3245, %v1672
    %v3254 = vsub.f32 %v3210, %v3246
    %v3255 = vsub.f32 %v3211, %v3247
    %v3256 = vsub.f32 %v3212, %v3248
    %v3257 = vsub.f32 %v3213, %v3249
    %v3258 = vsub.f32 %v3214, %v3250
    %v3259 = vsub.f32 %v3215, %v3251
    %v3260 = vsub.f32 %v3216, %v3252
    %v3261 = vsub.f32 %v3217, %v3253
    %v3262 = vmul.f32 %v3254, %v3254
    %v3263 = vmul.f32 %v3255, %v3255
    %v3264 = vmul.f32 %v3256, %v3256
    %v3265 = vmul.f32 %v3257, %v3257
    %v3266 = vmul.f32 %v3258, %v3258
    %v3267 = vmul.f32 %v3259, %v3259
    %v3268 = vmul.f32 %v3260, %v3260
    %v3269 = vmul.f32 %v3261, %v3261
    %v3270 = vsel %vm647, %v3262, 0.0
    %3271 = vadd.xlane.f32.xlu0 %v3270
    %v3272 = vpop.xlane.xlu0 %3271
    %v3273 = vsel %vm647, %v3263, 0.0
    %3274 = vadd.xlane.f32.xlu0 %v3273
    %v3275 = vpop.xlane.xlu0 %3274
    %v3276 = vsel %vm647, %v3264, 0.0
    %3277 = vadd.xlane.f32.xlu0 %v3276
    %v3278 = vpop.xlane.xlu0 %3277
    %v3279 = vsel %vm647, %v3265, 0.0
    %3280 = vadd.xlane.f32.xlu0 %v3279
    %v3281 = vpop.xlane.xlu0 %3280
    %v3282 = vsel %vm647, %v3266, 0.0
    %3283 = vadd.xlane.f32.xlu0 %v3282
    %v3284 = vpop.xlane.xlu0 %3283
    %v3285 = vsel %vm647, %v3267, 0.0
    %3286 = vadd.xlane.f32.xlu0 %v3285
    %v3287 = vpop.xlane.xlu0 %3286
    %v3288 = vsel %vm647, %v3268, 0.0
    %3289 = vadd.xlane.f32.xlu0 %v3288
    %v3290 = vpop.xlane.xlu0 %3289
    %v3291 = vsel %vm647, %v3269, 0.0
    %3292 = vadd.xlane.f32.xlu0 %v3291
    %v3293 = vpop.xlane.xlu0 %3292
    %v3294 = vmul.f32 %v3272, %v1672
    %v3295 = vmul.f32 %v3275, %v1672
    %v3296 = vmul.f32 %v3278, %v1672
    %v3297 = vmul.f32 %v3281, %v1672
    %v3298 = vmul.f32 %v3284, %v1672
    %v3299 = vmul.f32 %v3287, %v1672
    %v3300 = vmul.f32 %v3290, %v1672
    %v3301 = vmul.f32 %v3293, %v1672
    %v3302 = vadd.f32 %v3294, 1e-05
    %v3303 = vadd.f32 %v3295, 1e-05
    %v3304 = vadd.f32 %v3296, 1e-05
    %v3305 = vadd.f32 %v3297, 1e-05
    %v3306 = vadd.f32 %v3298, 1e-05
    %v3307 = vadd.f32 %v3299, 1e-05
    %v3308 = vadd.f32 %v3300, 1e-05
    %v3309 = vadd.f32 %v3301, 1e-05
    %v3310 = vrsqrt.pop %v3302
    %v3311 = vmul.f32 %v3310, %v3302
    %v3312 = vmul.f32 %v3311, %v3310
    %v3313 = vmul.f32 0.5, %v3312
    %v3314 = vsub.f32 1.5, %v3313
    %v3315 = vmul.f32 %v3310, %v3314
    %vm3316 = vweird.f32 %v3302
    %vm3317 = vweird.f32 %v3310
    %vm3318 = vmor %vm3316, %vm3317
    %v3319 = vsel %vm3318, %v3310, %v3315
    %v3320 = vrsqrt.pop %v3303
    %v3321 = vmul.f32 %v3320, %v3303
    %v3322 = vmul.f32 %v3321, %v3320
    %v3323 = vmul.f32 0.5, %v3322
    %v3324 = vsub.f32 1.5, %v3323
    %v3325 = vmul.f32 %v3320, %v3324
    %vm3326 = vweird.f32 %v3303
    %vm3327 = vweird.f32 %v3320
    %vm3328 = vmor %vm3326, %vm3327
    %v3329 = vsel %vm3328, %v3320, %v3325
    %v3330 = vrsqrt.pop %v3304
    %v3331 = vmul.f32 %v3330, %v3304
    %v3332 = vmul.f32 %v3331, %v3330
    %v3333 = vmul.f32 0.5, %v3332
    %v3334 = vsub.f32 1.5, %v3333
    %v3335 = vmul.f32 %v3330, %v3334
    %vm3336 = vweird.f32 %v3304
    %vm3337 = vweird.f32 %v3330
    %vm3338 = vmor %vm3336, %vm3337
    %v3339 = vsel %vm3338, %v3330, %v3335
    %v3340 = vrsqrt.pop %v3305
    %v3341 = vmul.f32 %v3340, %v3305
    %v3342 = vmul.f32 %v3341, %v3340
    %v3343 = vmul.f32 0.5, %v3342
    %v3344 = vsub.f32 1.5, %v3343
    %v3345 = vmul.f32 %v3340, %v3344
    %vm3346 = vweird.f32 %v3305
    %vm3347 = vweird.f32 %v3340
    %vm3348 = vmor %vm3346, %vm3347
    %v3349 = vsel %vm3348, %v3340, %v3345
    %v3350 = vrsqrt.pop %v3306
    %v3351 = vmul.f32 %v3350, %v3306
    %v3352 = vmul.f32 %v3351, %v3350
    %v3353 = vmul.f32 0.5, %v3352
    %v3354 = vsub.f32 1.5, %v3353
    %v3355 = vmul.f32 %v3350, %v3354
    %vm3356 = vweird.f32 %v3306
    %vm3357 = vweird.f32 %v3350
    %vm3358 = vmor %vm3356, %vm3357
    %v3359 = vsel %vm3358, %v3350, %v3355
    %v3360 = vrsqrt.pop %v3307
    %v3361 = vmul.f32 %v3360, %v3307
    %v3362 = vmul.f32 %v3361, %v3360
    %v3363 = vmul.f32 0.5, %v3362
    %v3364 = vsub.f32 1.5, %v3363
    %v3365 = vmul.f32 %v3360, %v3364
    %vm3366 = vweird.f32 %v3307
    %vm3367 = vweird.f32 %v3360
    %vm3368 = vmor %vm3366, %vm3367
    %v3369 = vsel %vm3368, %v3360, %v3365
    %v3370 = vrsqrt.pop %v3308
    %v3371 = vmul.f32 %v3370, %v3308
    %v3372 = vmul.f32 %v3371, %v3370
    %v3373 = vmul.f32 0.5, %v3372
    %v3374 = vsub.f32 1.5, %v3373
    %v3375 = vmul.f32 %v3370, %v3374
    %vm3376 = vweird.f32 %v3308
    %vm3377 = vweird.f32 %v3370
    %vm3378 = vmor %vm3376, %vm3377
    %v3379 = vsel %vm3378, %v3370, %v3375
    %v3380 = vrsqrt.pop %v3309
    %v3381 = vmul.f32 %v3380, %v3309
    %v3382 = vmul.f32 %v3381, %v3380
    %v3383 = vmul.f32 0.5, %v3382
    %v3384 = vsub.f32 1.5, %v3383
    %v3385 = vmul.f32 %v3380, %v3384
    %vm3386 = vweird.f32 %v3309
    %vm3387 = vweird.f32 %v3380
    %vm3388 = vmor %vm3386, %vm3387
    %v3389 = vsel %vm3388, %v3380, %v3385
    %v3390 = vmul.f32 %v3254, %v3319
    %v3391 = vmul.f32 %v3255, %v3329
    %v3392 = vmul.f32 %v3256, %v3339
    %v3393 = vmul.f32 %v3257, %v3349
    %v3394 = vmul.f32 %v3258, %v3359
    %v3395 = vmul.f32 %v3259, %v3369
    %v3396 = vmul.f32 %v3260, %v3379
    %v3397 = vmul.f32 %v3261, %v3389
    %v3399 = vperm.slane %v3219, 0
    %v3401 = vmul.f32 %v3390, %v3399
    %v3402 = vmul.f32 %v3391, %v3399
    %v3403 = vmul.f32 %v3392, %v3399
    %v3404 = vmul.f32 %v3393, %v3399
    %v3405 = vmul.f32 %v3394, %v3399
    %v3406 = vmul.f32 %v3395, %v3399
    %v3407 = vmul.f32 %v3396, %v3399
    %v3408 = vmul.f32 %v3397, %v3399
    %v3410 = vperm.slane %v3221, 0
    %v3412 = vadd.f32 %v3401, %v3410
    %v3413 = vadd.f32 %v3402, %v3410
    %v3414 = vadd.f32 %v3403, %v3410
    %v3415 = vadd.f32 %v3404, %v3410
    %v3416 = vadd.f32 %v3405, %v3410
    %v3417 = vadd.f32 %v3406, %v3410
    %v3418 = vadd.f32 %v3407, %v3410
    %v3419 = vadd.f32 %v3408, %v3410
    %s3420 = scalar_lea.vmem %s10, 32
    %v3421 = vld [vmem:[%s3420] sm:$0xff]
    %v3422 = vld [vmem:[%s3420 + $0x8] sm:$0xff]
    %v3423 = vld [vmem:[%s3420 + $0x10] sm:$0xff]
    %v3424 = vld [vmem:[%s3420 + $0x18] sm:$0xff]
    %s3425 = scalar_lea.vmem %s11, 1
    %v3426 = vld [vmem:[%s3425] sm:$0x1]
    %v3428 = vperm.slane %v3426, 0
    %v3431 = vsel %vm647, %v3412, 0
    %v3434 = vsel %vm647, %v3413, 0
    %v3437 = vsel %vm647, %v3414, 0
    %v3440 = vsel %vm647, %v3415, 0
    %v3443 = vsel %vm647, %v3416, 0
    %v3446 = vsel %vm647, %v3417, 0
    %v3449 = vsel %vm647, %v3418, 0
    %v3452 = vsel %vm647, %v3419, 0
    %3454 = vmatpush.msra.mxu0 0.0
    %3455 = vmatpush.msra.mxu0 0.0
    %3456 = vmatpush.msra.mxu0 0.0
    %3457 = vmatpush.msra.mxu0 0.0
    %3458 = vmatpush.msra.mxu0 0.0
    %3459 = vmatpush.msra.mxu0 0.0
    %3460 = vmatpush.msra.mxu0 0.0
    %3461 = vmatpush.msra.mxu0 0.0
    %3462 = vmatpush.msra.mxu0 0.0
    %3463 = vmatpush.msra.mxu0 0.0
    %3464 = vmatpush.msra.mxu0 0.0
    %3465 = vmatpush.msra.mxu0 0.0
    %3466 = vmatpush.msra.mxu0 %v3424
    %3467 = vmatpush.msra.mxu0 %v3423
    %3468 = vmatpush.msra.mxu0 %v3422
    %3469 = vmatpush.msra.mxu0 %v3421
    %3470 = vmatmul.f32.gmra.mxu0 %v3431
    %v3471 = vpop.f32.mrf.mxu0
    %v3472 = vadd.f32 %v3428, %v3471
    %3473 = vmatmul.f32.gmra.mxu0 %v3434
    %v3474 = vpop.f32.mrf.mxu0
    %v3475 = vadd.f32 %v3428, %v3474
    %3476 = vmatmul.f32.gmra.mxu0 %v3437
    %v3477 = vpop.f32.mrf.mxu0
    %v3478 = vadd.f32 %v3428, %v3477
    %3479 = vmatmul.f32.gmra.mxu0 %v3440
    %v3480 = vpop.f32.mrf.mxu0
    %v3481 = vadd.f32 %v3428, %v3480
    %3482 = vmatmul.f32.gmra.mxu0 %v3443
    %v3483 = vpop.f32.mrf.mxu0
    %v3484 = vadd.f32 %v3428, %v3483
    %3485 = vmatmul.f32.gmra.mxu0 %v3446
    %v3486 = vpop.f32.mrf.mxu0
    %v3487 = vadd.f32 %v3428, %v3486
    %3488 = vmatmul.f32.gmra.mxu0 %v3449
    %v3489 = vpop.f32.mrf.mxu0
    %v3490 = vadd.f32 %v3428, %v3489
    %3491 = vmatmul.f32.gmra.mxu0 %v3452
    %v3492 = vpop.f32.mrf.mxu0
    %v3493 = vadd.f32 %v3428, %v3492
    %3494 = vdwg.mxu0
    %v3495 = vmax.f32 %v3472, 0.0
    %v3496 = vmax.f32 %v3475, 0.0
    %v3497 = vmax.f32 %v3478, 0.0
    %v3498 = vmax.f32 %v3481, 0.0
    %v3499 = vmax.f32 %v3484, 0.0
    %v3500 = vmax.f32 %v3487, 0.0
    %v3501 = vmax.f32 %v3490, 0.0
    %v3502 = vmax.f32 %v3493, 0.0
    %s3503 = scalar_lea.vmem %s12, 64
    %v3504 = vld [vmem:[%s3503] sm:$0xff]
    %v3505 = vld [vmem:[%s3503 + $0x8] sm:$0xff]
    %v3506 = vld [vmem:[%s3503 + $0x10] sm:$0xff]
    %v3507 = vld [vmem:[%s3503 + $0x18] sm:$0xff]
    %v3508 = vld [vmem:[%s3503 + $0x20] sm:$0xff]
    %v3509 = vld [vmem:[%s3503 + $0x28] sm:$0xff]
    %v3510 = vld [vmem:[%s3503 + $0x30] sm:$0xff]
    %v3511 = vld [vmem:[%s3503 + $0x38] sm:$0xff]
    %s3512 = scalar_lea.vmem %s13, 1
    %v3513 = vld [vmem:[%s3512] sm:$0x1]
    %v3515 = vperm.slane %v3513, 0
    %v3518 = vsel %vm343, %v3495, 0
    %v3521 = vsel %vm343, %v3496, 0
    %v3524 = vsel %vm343, %v3497, 0
    %v3527 = vsel %vm343, %v3498, 0
    %v3530 = vsel %vm343, %v3499, 0
    %v3533 = vsel %vm343, %v3500, 0
    %v3536 = vsel %vm343, %v3501, 0
    %v3539 = vsel %vm343, %v3502, 0
    %3541 = vmatpush.msra.mxu0 0.0
    %3542 = vmatpush.msra.mxu0 0.0
    %3543 = vmatpush.msra.mxu0 0.0
    %3544 = vmatpush.msra.mxu0 0.0
    %3545 = vmatpush.msra.mxu0 0.0
    %3546 = vmatpush.msra.mxu0 0.0
    %3547 = vmatpush.msra.mxu0 0.0
    %3548 = vmatpush.msra.mxu0 0.0
    %3549 = vmatpush.msra.mxu0 %v3511
    %3550 = vmatpush.msra.mxu0 %v3510
    %3551 = vmatpush.msra.mxu0 %v3509
    %3552 = vmatpush.msra.mxu0 %v3508
    %3553 = vmatpush.msra.mxu0 %v3507
    %3554 = vmatpush.msra.mxu0 %v3506
    %3555 = vmatpush.msra.mxu0 %v3505
    %3556 = vmatpush.msra.mxu0 %v3504
    %3557 = vmatmul.f32.gmra.mxu0 %v3518
    %v3558 = vpop.f32.mrf.mxu0
    %v3559 = vadd.f32 %v3515, %v3558
    %3560 = vmatmul.f32.gmra.mxu0 %v3521
    %v3561 = vpop.f32.mrf.mxu0
    %v3562 = vadd.f32 %v3515, %v3561
    %3563 = vmatmul.f32.gmra.mxu0 %v3524
    %v3564 = vpop.f32.mrf.mxu0
    %v3565 = vadd.f32 %v3515, %v3564
    %3566 = vmatmul.f32.gmra.mxu0 %v3527
    %v3567 = vpop.f32.mrf.mxu0
    %v3568 = vadd.f32 %v3515, %v3567
    %3569 = vmatmul.f32.gmra.mxu0 %v3530
    %v3570 = vpop.f32.mrf.mxu0
    %v3571 = vadd.f32 %v3515, %v3570
    %3572 = vmatmul.f32.gmra.mxu0 %v3533
    %v3573 = vpop.f32.mrf.mxu0
    %v3574 = vadd.f32 %v3515, %v3573
    %3575 = vmatmul.f32.gmra.mxu0 %v3536
    %v3576 = vpop.f32.mrf.mxu0
    %v3577 = vadd.f32 %v3515, %v3576
    %3578 = vmatmul.f32.gmra.mxu0 %v3539
    %v3579 = vpop.f32.mrf.mxu0
    %v3580 = vadd.f32 %v3515, %v3579
    %3581 = vdwg.mxu0
    %v3582 = vadd.f32 %v3412, %v3559
    %v3583 = vadd.f32 %v3413, %v3562
    %v3584 = vadd.f32 %v3414, %v3565
    %v3585 = vadd.f32 %v3415, %v3568
    %v3586 = vadd.f32 %v3416, %v3571
    %v3587 = vadd.f32 %v3417, %v3574
    %v3588 = vadd.f32 %v3418, %v3577
    %v3589 = vadd.f32 %v3419, %v3580
    %s3590 = scalar_lea.vmem %s9, 6
    %v3591 = vld [vmem:[%s3590] sm:$0x1]
    %s3592 = scalar_lea.vmem %s9, 7
    %v3593 = vld [vmem:[%s3592] sm:$0x1]
    %v3594 = vsel %vm647, %v3582, 0.0
    %3595 = vadd.xlane.f32.xlu0 %v3594
    %v3596 = vpop.xlane.xlu0 %3595
    %v3597 = vsel %vm647, %v3583, 0.0
    %3598 = vadd.xlane.f32.xlu0 %v3597
    %v3599 = vpop.xlane.xlu0 %3598
    %v3600 = vsel %vm647, %v3584, 0.0
    %3601 = vadd.xlane.f32.xlu0 %v3600
    %v3602 = vpop.xlane.xlu0 %3601
    %v3603 = vsel %vm647, %v3585, 0.0
    %3604 = vadd.xlane.f32.xlu0 %v3603
    %v3605 = vpop.xlane.xlu0 %3604
    %v3606 = vsel %vm647, %v3586, 0.0
    %3607 = vadd.xlane.f32.xlu0 %v3606
    %v3608 = vpop.xlane.xlu0 %3607
    %v3609 = vsel %vm647, %v3587, 0.0
    %3610 = vadd.xlane.f32.xlu0 %v3609
    %v3611 = vpop.xlane.xlu0 %3610
    %v3612 = vsel %vm647, %v3588, 0.0
    %3613 = vadd.xlane.f32.xlu0 %v3612
    %v3614 = vpop.xlane.xlu0 %3613
    %v3615 = vsel %vm647, %v3589, 0.0
    %3616 = vadd.xlane.f32.xlu0 %v3615
    %v3617 = vpop.xlane.xlu0 %3616
    %v3618 = vmul.f32 %v3596, %v1672
    %v3619 = vmul.f32 %v3599, %v1672
    %v3620 = vmul.f32 %v3602, %v1672
    %v3621 = vmul.f32 %v3605, %v1672
    %v3622 = vmul.f32 %v3608, %v1672
    %v3623 = vmul.f32 %v3611, %v1672
    %v3624 = vmul.f32 %v3614, %v1672
    %v3625 = vmul.f32 %v3617, %v1672
    %v3626 = vsub.f32 %v3582, %v3618
    %v3627 = vsub.f32 %v3583, %v3619
    %v3628 = vsub.f32 %v3584, %v3620
    %v3629 = vsub.f32 %v3585, %v3621
    %v3630 = vsub.f32 %v3586, %v3622
    %v3631 = vsub.f32 %v3587, %v3623
    %v3632 = vsub.f32 %v3588, %v3624
    %v3633 = vsub.f32 %v3589, %v3625
    %v3634 = vmul.f32 %v3626, %v3626
    %v3635 = vmul.f32 %v3627, %v3627
    %v3636 = vmul.f32 %v3628, %v3628
    %v3637 = vmul.f32 %v3629, %v3629
    %v3638 = vmul.f32 %v3630, %v3630
    %v3639 = vmul.f32 %v3631, %v3631
    %v3640 = vmul.f32 %v3632, %v3632
    %v3641 = vmul.f32 %v3633, %v3633
    %v3642 = vsel %vm647, %v3634, 0.0
    %3643 = vadd.xlane.f32.xlu0 %v3642
    %v3644 = vpop.xlane.xlu0 %3643
    %v3645 = vsel %vm647, %v3635, 0.0
    %3646 = vadd.xlane.f32.xlu0 %v3645
    %v3647 = vpop.xlane.xlu0 %3646
    %v3648 = vsel %vm647, %v3636, 0.0
    %3649 = vadd.xlane.f32.xlu0 %v3648
    %v3650 = vpop.xlane.xlu0 %3649
    %v3651 = vsel %vm647, %v3637, 0.0
    %3652 = vadd.xlane.f32.xlu0 %v3651
    %v3653 = vpop.xlane.xlu0 %3652
    %v3654 = vsel %vm647, %v3638, 0.0
    %3655 = vadd.xlane.f32.xlu0 %v3654
    %v3656 = vpop.xlane.xlu0 %3655
    %v3657 = vsel %vm647, %v3639, 0.0
    %3658 = vadd.xlane.f32.xlu0 %v3657
    %v3659 = vpop.xlane.xlu0 %3658
    %v3660 = vsel %vm647, %v3640, 0.0
    %3661 = vadd.xlane.f32.xlu0 %v3660
    %v3662 = vpop.xlane.xlu0 %3661
    %v3663 = vsel %vm647, %v3641, 0.0
    %3664 = vadd.xlane.f32.xlu0 %v3663
    %v3665 = vpop.xlane.xlu0 %3664
    %v3666 = vmul.f32 %v3644, %v1672
    %v3667 = vmul.f32 %v3647, %v1672
    %v3668 = vmul.f32 %v3650, %v1672
    %v3669 = vmul.f32 %v3653, %v1672
    %v3670 = vmul.f32 %v3656, %v1672
    %v3671 = vmul.f32 %v3659, %v1672
    %v3672 = vmul.f32 %v3662, %v1672
    %v3673 = vmul.f32 %v3665, %v1672
    %v3674 = vadd.f32 %v3666, 1e-05
    %v3675 = vadd.f32 %v3667, 1e-05
    %v3676 = vadd.f32 %v3668, 1e-05
    %v3677 = vadd.f32 %v3669, 1e-05
    %v3678 = vadd.f32 %v3670, 1e-05
    %v3679 = vadd.f32 %v3671, 1e-05
    %v3680 = vadd.f32 %v3672, 1e-05
    %v3681 = vadd.f32 %v3673, 1e-05
    %v3682 = vrsqrt.pop %v3674
    %v3683 = vmul.f32 %v3682, %v3674
    %v3684 = vmul.f32 %v3683, %v3682
    %v3685 = vmul.f32 0.5, %v3684
    %v3686 = vsub.f32 1.5, %v3685
    %v3687 = vmul.f32 %v3682, %v3686
    %vm3688 = vweird.f32 %v3674
    %vm3689 = vweird.f32 %v3682
    %vm3690 = vmor %vm3688, %vm3689
    %v3691 = vsel %vm3690, %v3682, %v3687
    %v3692 = vrsqrt.pop %v3675
    %v3693 = vmul.f32 %v3692, %v3675
    %v3694 = vmul.f32 %v3693, %v3692
    %v3695 = vmul.f32 0.5, %v3694
    %v3696 = vsub.f32 1.5, %v3695
    %v3697 = vmul.f32 %v3692, %v3696
    %vm3698 = vweird.f32 %v3675
    %vm3699 = vweird.f32 %v3692
    %vm3700 = vmor %vm3698, %vm3699
    %v3701 = vsel %vm3700, %v3692, %v3697
    %v3702 = vrsqrt.pop %v3676
    %v3703 = vmul.f32 %v3702, %v3676
    %v3704 = vmul.f32 %v3703, %v3702
    %v3705 = vmul.f32 0.5, %v3704
    %v3706 = vsub.f32 1.5, %v3705
    %v3707 = vmul.f32 %v3702, %v3706
    %vm3708 = vweird.f32 %v3676
    %vm3709 = vweird.f32 %v3702
    %vm3710 = vmor %vm3708, %vm3709
    %v3711 = vsel %vm3710, %v3702, %v3707
    %v3712 = vrsqrt.pop %v3677
    %v3713 = vmul.f32 %v3712, %v3677
    %v3714 = vmul.f32 %v3713, %v3712
    %v3715 = vmul.f32 0.5, %v3714
    %v3716 = vsub.f32 1.5, %v3715
    %v3717 = vmul.f32 %v3712, %v3716
    %vm3718 = vweird.f32 %v3677
    %vm3719 = vweird.f32 %v3712
    %vm3720 = vmor %vm3718, %vm3719
    %v3721 = vsel %vm3720, %v3712, %v3717
    %v3722 = vrsqrt.pop %v3678
    %v3723 = vmul.f32 %v3722, %v3678
    %v3724 = vmul.f32 %v3723, %v3722
    %v3725 = vmul.f32 0.5, %v3724
    %v3726 = vsub.f32 1.5, %v3725
    %v3727 = vmul.f32 %v3722, %v3726
    %vm3728 = vweird.f32 %v3678
    %vm3729 = vweird.f32 %v3722
    %vm3730 = vmor %vm3728, %vm3729
    %v3731 = vsel %vm3730, %v3722, %v3727
    %v3732 = vrsqrt.pop %v3679
    %v3733 = vmul.f32 %v3732, %v3679
    %v3734 = vmul.f32 %v3733, %v3732
    %v3735 = vmul.f32 0.5, %v3734
    %v3736 = vsub.f32 1.5, %v3735
    %v3737 = vmul.f32 %v3732, %v3736
    %vm3738 = vweird.f32 %v3679
    %vm3739 = vweird.f32 %v3732
    %vm3740 = vmor %vm3738, %vm3739
    %v3741 = vsel %vm3740, %v3732, %v3737
    %v3742 = vrsqrt.pop %v3680
    %v3743 = vmul.f32 %v3742, %v3680
    %v3744 = vmul.f32 %v3743, %v3742
    %v3745 = vmul.f32 0.5, %v3744
    %v3746 = vsub.f32 1.5, %v3745
    %v3747 = vmul.f32 %v3742, %v3746
    %vm3748 = vweird.f32 %v3680
    %vm3749 = vweird.f32 %v3742
    %vm3750 = vmor %vm3748, %vm3749
    %v3751 = vsel %vm3750, %v3742, %v3747
    %v3752 = vrsqrt.pop %v3681
    %v3753 = vmul.f32 %v3752, %v3681
    %v3754 = vmul.f32 %v3753, %v3752
    %v3755 = vmul.f32 0.5, %v3754
    %v3756 = vsub.f32 1.5, %v3755
    %v3757 = vmul.f32 %v3752, %v3756
    %vm3758 = vweird.f32 %v3681
    %vm3759 = vweird.f32 %v3752
    %vm3760 = vmor %vm3758, %vm3759
    %v3761 = vsel %vm3760, %v3752, %v3757
    %v3762 = vmul.f32 %v3626, %v3691
    %v3763 = vmul.f32 %v3627, %v3701
    %v3764 = vmul.f32 %v3628, %v3711
    %v3765 = vmul.f32 %v3629, %v3721
    %v3766 = vmul.f32 %v3630, %v3731
    %v3767 = vmul.f32 %v3631, %v3741
    %v3768 = vmul.f32 %v3632, %v3751
    %v3769 = vmul.f32 %v3633, %v3761
    %v3771 = vperm.slane %v3591, 0
    %v3773 = vmul.f32 %v3762, %v3771
    %v3774 = vmul.f32 %v3763, %v3771
    %v3775 = vmul.f32 %v3764, %v3771
    %v3776 = vmul.f32 %v3765, %v3771
    %v3777 = vmul.f32 %v3766, %v3771
    %v3778 = vmul.f32 %v3767, %v3771
    %v3779 = vmul.f32 %v3768, %v3771
    %v3780 = vmul.f32 %v3769, %v3771
    %v3782 = vperm.slane %v3593, 0
    %v3784 = vadd.f32 %v3773, %v3782
    %v3785 = vadd.f32 %v3774, %v3782
    %v3786 = vadd.f32 %v3775, %v3782
    %v3787 = vadd.f32 %v3776, %v3782
    %v3788 = vadd.f32 %v3777, %v3782
    %v3789 = vadd.f32 %v3778, %v3782
    %v3790 = vadd.f32 %v3779, %v3782
    %v3791 = vadd.f32 %v3780, %v3782
    %v3792 = vld [vmem:[%s14] sm:$0x1]
    %s3793 = scalar_lea.vmem %s14, 1
    %v3794 = vld [vmem:[%s3793] sm:$0x1]
    %v3795 = vsel %vm647, %v3784, 0.0
    %3796 = vadd.xlane.f32.xlu0 %v3795
    %v3797 = vpop.xlane.xlu0 %3796
    %v3798 = vsel %vm647, %v3785, 0.0
    %3799 = vadd.xlane.f32.xlu0 %v3798
    %v3800 = vpop.xlane.xlu0 %3799
    %v3801 = vsel %vm647, %v3786, 0.0
    %3802 = vadd.xlane.f32.xlu0 %v3801
    %v3803 = vpop.xlane.xlu0 %3802
    %v3804 = vsel %vm647, %v3787, 0.0
    %3805 = vadd.xlane.f32.xlu0 %v3804
    %v3806 = vpop.xlane.xlu0 %3805
    %v3807 = vsel %vm647, %v3788, 0.0
    %3808 = vadd.xlane.f32.xlu0 %v3807
    %v3809 = vpop.xlane.xlu0 %3808
    %v3810 = vsel %vm647, %v3789, 0.0
    %3811 = vadd.xlane.f32.xlu0 %v3810
    %v3812 = vpop.xlane.xlu0 %3811
    %v3813 = vsel %vm647, %v3790, 0.0
    %3814 = vadd.xlane.f32.xlu0 %v3813
    %v3815 = vpop.xlane.xlu0 %3814
    %v3816 = vsel %vm647, %v3791, 0.0
    %3817 = vadd.xlane.f32.xlu0 %v3816
    %v3818 = vpop.xlane.xlu0 %3817
    %v3819 = vmul.f32 %v3797, %v1672
    %v3820 = vmul.f32 %v3800, %v1672
    %v3821 = vmul.f32 %v3803, %v1672
    %v3822 = vmul.f32 %v3806, %v1672
    %v3823 = vmul.f32 %v3809, %v1672
    %v3824 = vmul.f32 %v3812, %v1672
    %v3825 = vmul.f32 %v3815, %v1672
    %v3826 = vmul.f32 %v3818, %v1672
    %v3827 = vsub.f32 %v3784, %v3819
    %v3828 = vsub.f32 %v3785, %v3820
    %v3829 = vsub.f32 %v3786, %v3821
    %v3830 = vsub.f32 %v3787, %v3822
    %v3831 = vsub.f32 %v3788, %v3823
    %v3832 = vsub.f32 %v3789, %v3824
    %v3833 = vsub.f32 %v3790, %v3825
    %v3834 = vsub.f32 %v3791, %v3826
    %v3835 = vmul.f32 %v3827, %v3827
    %v3836 = vmul.f32 %v3828, %v3828
    %v3837 = vmul.f32 %v3829, %v3829
    %v3838 = vmul.f32 %v3830, %v3830
    %v3839 = vmul.f32 %v3831, %v3831
    %v3840 = vmul.f32 %v3832, %v3832
    %v3841 = vmul.f32 %v3833, %v3833
    %v3842 = vmul.f32 %v3834, %v3834
    %v3843 = vsel %vm647, %v3835, 0.0
    %3844 = vadd.xlane.f32.xlu0 %v3843
    %v3845 = vpop.xlane.xlu0 %3844
    %v3846 = vsel %vm647, %v3836, 0.0
    %3847 = vadd.xlane.f32.xlu0 %v3846
    %v3848 = vpop.xlane.xlu0 %3847
    %v3849 = vsel %vm647, %v3837, 0.0
    %3850 = vadd.xlane.f32.xlu0 %v3849
    %v3851 = vpop.xlane.xlu0 %3850
    %v3852 = vsel %vm647, %v3838, 0.0
    %3853 = vadd.xlane.f32.xlu0 %v3852
    %v3854 = vpop.xlane.xlu0 %3853
    %v3855 = vsel %vm647, %v3839, 0.0
    %3856 = vadd.xlane.f32.xlu0 %v3855
    %v3857 = vpop.xlane.xlu0 %3856
    %v3858 = vsel %vm647, %v3840, 0.0
    %3859 = vadd.xlane.f32.xlu0 %v3858
    %v3860 = vpop.xlane.xlu0 %3859
    %v3861 = vsel %vm647, %v3841, 0.0
    %3862 = vadd.xlane.f32.xlu0 %v3861
    %v3863 = vpop.xlane.xlu0 %3862
    %v3864 = vsel %vm647, %v3842, 0.0
    %3865 = vadd.xlane.f32.xlu0 %v3864
    %v3866 = vpop.xlane.xlu0 %3865
    %v3867 = vmul.f32 %v3845, %v1672
    %v3868 = vmul.f32 %v3848, %v1672
    %v3869 = vmul.f32 %v3851, %v1672
    %v3870 = vmul.f32 %v3854, %v1672
    %v3871 = vmul.f32 %v3857, %v1672
    %v3872 = vmul.f32 %v3860, %v1672
    %v3873 = vmul.f32 %v3863, %v1672
    %v3874 = vmul.f32 %v3866, %v1672
    %v3875 = vadd.f32 %v3867, 1e-05
    %v3876 = vadd.f32 %v3868, 1e-05
    %v3877 = vadd.f32 %v3869, 1e-05
    %v3878 = vadd.f32 %v3870, 1e-05
    %v3879 = vadd.f32 %v3871, 1e-05
    %v3880 = vadd.f32 %v3872, 1e-05
    %v3881 = vadd.f32 %v3873, 1e-05
    %v3882 = vadd.f32 %v3874, 1e-05
    %v3883 = vrsqrt.pop %v3875
    %v3884 = vmul.f32 %v3883, %v3875
    %v3885 = vmul.f32 %v3884, %v3883
    %v3886 = vmul.f32 0.5, %v3885
    %v3887 = vsub.f32 1.5, %v3886
    %v3888 = vmul.f32 %v3883, %v3887
    %vm3889 = vweird.f32 %v3875
    %vm3890 = vweird.f32 %v3883
    %vm3891 = vmor %vm3889, %vm3890
    %v3892 = vsel %vm3891, %v3883, %v3888
    %v3893 = vrsqrt.pop %v3876
    %v3894 = vmul.f32 %v3893, %v3876
    %v3895 = vmul.f32 %v3894, %v3893
    %v3896 = vmul.f32 0.5, %v3895
    %v3897 = vsub.f32 1.5, %v3896
    %v3898 = vmul.f32 %v3893, %v3897
    %vm3899 = vweird.f32 %v3876
    %vm3900 = vweird.f32 %v3893
    %vm3901 = vmor %vm3899, %vm3900
    %v3902 = vsel %vm3901, %v3893, %v3898
    %v3903 = vrsqrt.pop %v3877
    %v3904 = vmul.f32 %v3903, %v3877
    %v3905 = vmul.f32 %v3904, %v3903
    %v3906 = vmul.f32 0.5, %v3905
    %v3907 = vsub.f32 1.5, %v3906
    %v3908 = vmul.f32 %v3903, %v3907
    %vm3909 = vweird.f32 %v3877
    %vm3910 = vweird.f32 %v3903
    %vm3911 = vmor %vm3909, %vm3910
    %v3912 = vsel %vm3911, %v3903, %v3908
    %v3913 = vrsqrt.pop %v3878
    %v3914 = vmul.f32 %v3913, %v3878
    %v3915 = vmul.f32 %v3914, %v3913
    %v3916 = vmul.f32 0.5, %v3915
    %v3917 = vsub.f32 1.5, %v3916
    %v3918 = vmul.f32 %v3913, %v3917
    %vm3919 = vweird.f32 %v3878
    %vm3920 = vweird.f32 %v3913
    %vm3921 = vmor %vm3919, %vm3920
    %v3922 = vsel %vm3921, %v3913, %v3918
    %v3923 = vrsqrt.pop %v3879
    %v3924 = vmul.f32 %v3923, %v3879
    %v3925 = vmul.f32 %v3924, %v3923
    %v3926 = vmul.f32 0.5, %v3925
    %v3927 = vsub.f32 1.5, %v3926
    %v3928 = vmul.f32 %v3923, %v3927
    %vm3929 = vweird.f32 %v3879
    %vm3930 = vweird.f32 %v3923
    %vm3931 = vmor %vm3929, %vm3930
    %v3932 = vsel %vm3931, %v3923, %v3928
    %v3933 = vrsqrt.pop %v3880
    %v3934 = vmul.f32 %v3933, %v3880
    %v3935 = vmul.f32 %v3934, %v3933
    %v3936 = vmul.f32 0.5, %v3935
    %v3937 = vsub.f32 1.5, %v3936
    %v3938 = vmul.f32 %v3933, %v3937
    %vm3939 = vweird.f32 %v3880
    %vm3940 = vweird.f32 %v3933
    %vm3941 = vmor %vm3939, %vm3940
    %v3942 = vsel %vm3941, %v3933, %v3938
    %v3943 = vrsqrt.pop %v3881
    %v3944 = vmul.f32 %v3943, %v3881
    %v3945 = vmul.f32 %v3944, %v3943
    %v3946 = vmul.f32 0.5, %v3945
    %v3947 = vsub.f32 1.5, %v3946
    %v3948 = vmul.f32 %v3943, %v3947
    %vm3949 = vweird.f32 %v3881
    %vm3950 = vweird.f32 %v3943
    %vm3951 = vmor %vm3949, %vm3950
    %v3952 = vsel %vm3951, %v3943, %v3948
    %v3953 = vrsqrt.pop %v3882
    %v3954 = vmul.f32 %v3953, %v3882
    %v3955 = vmul.f32 %v3954, %v3953
    %v3956 = vmul.f32 0.5, %v3955
    %v3957 = vsub.f32 1.5, %v3956
    %v3958 = vmul.f32 %v3953, %v3957
    %vm3959 = vweird.f32 %v3882
    %vm3960 = vweird.f32 %v3953
    %vm3961 = vmor %vm3959, %vm3960
    %v3962 = vsel %vm3961, %v3953, %v3958
    %v3963 = vmul.f32 %v3827, %v3892
    %v3964 = vmul.f32 %v3828, %v3902
    %v3965 = vmul.f32 %v3829, %v3912
    %v3966 = vmul.f32 %v3830, %v3922
    %v3967 = vmul.f32 %v3831, %v3932
    %v3968 = vmul.f32 %v3832, %v3942
    %v3969 = vmul.f32 %v3833, %v3952
    %v3970 = vmul.f32 %v3834, %v3962
    %v3972 = vperm.slane %v3792, 0
    %v3974 = vmul.f32 %v3963, %v3972
    %v3975 = vmul.f32 %v3964, %v3972
    %v3976 = vmul.f32 %v3965, %v3972
    %v3977 = vmul.f32 %v3966, %v3972
    %v3978 = vmul.f32 %v3967, %v3972
    %v3979 = vmul.f32 %v3968, %v3972
    %v3980 = vmul.f32 %v3969, %v3972
    %v3981 = vmul.f32 %v3970, %v3972
    %v3983 = vperm.slane %v3794, 0
    %v3985 = vadd.f32 %v3974, %v3983
    %v3986 = vadd.f32 %v3975, %v3983
    %v3987 = vadd.f32 %v3976, %v3983
    %v3988 = vadd.f32 %v3977, %v3983
    %v3989 = vadd.f32 %v3978, %v3983
    %v3990 = vadd.f32 %v3979, %v3983
    %v3991 = vadd.f32 %v3980, %v3983
    %v3992 = vadd.f32 %v3981, %v3983
    %v3994 = vsel %vm343, %v177, 0
    %3996 = vmatpush.msra.mxu0 0.0
    %3997 = vmatpush.msra.mxu0 0.0
    %3998 = vmatpush.msra.mxu0 0.0
    %3999 = vmatpush.msra.mxu0 0.0
    %4000 = vmatpush.msra.mxu0 0.0
    %4001 = vmatpush.msra.mxu0 0.0
    %4002 = vmatpush.msra.mxu0 0.0
    %4003 = vmatpush.msra.mxu0 0.0
    %4004 = vmatpush.msra.mxu0 %v3992
    %4005 = vmatpush.msra.mxu0 %v3991
    %4006 = vmatpush.msra.mxu0 %v3990
    %4007 = vmatpush.msra.mxu0 %v3989
    %4008 = vmatpush.msra.mxu0 %v3988
    %4009 = vmatpush.msra.mxu0 %v3987
    %4010 = vmatpush.msra.mxu0 %v3986
    %4011 = vmatpush.msra.mxu0 %v3985
    %4012 = vmatmul.f32.gmra.mxu0 %v3994
    %v4013 = vpop.f32.mrf.mxu0
    %v4014 = vadd.f32 0.0, %v4013
    %4015 = vdwg.mxu0
    %4016 = vst.msk [vmem:[#allocation2] sm:$0xff] %vm647, %v4014
    // Predicated region
    $region62: #{transformer_encoder.1} parent=1 // pred_check
      _
    $region63: #{transformer_encoder.1} parent=1 // pred_check_branch
      %4018 = sbr.rel (0) target = $region65
    $region64: #{transformer_encoder.1} parent=1 // pred_region
      %4020 = vsyncadd [#allocation3], 0
      %s4022 = sshll.u32 [#allocation2], 4
      %s4023 = int_to_ptr.vmem [resolvable:$true] %s4022
      %s4024 = sshll.u32 %s15, 4
      %s4025 = int_to_ptr.hbm [resolvable:$true] %s4024
      %4027 = dma.vmem_to_hbm [thread:$0]  %s4023, 128, %s4025, [#allocation3]
    $region65: #{transformer_encoder.1} parent=1 // pred_fallthru
      _
    // Predicated region
    $region66: #{transformer_encoder.1} parent=1 // pred_check
      _
    $region67: #{transformer_encoder.1} parent=1 // pred_check_branch
      %4029 = sbr.rel (0) target = $region69
    $region68: #{transformer_encoder.1} parent=1 // pred_region
      %4031 = dma.done [#allocation3], 128
    $region69: #{transformer_encoder.1} parent=1 // pred_fallthru
      _
    %4032 = vsyncpa [#allocation3], 1

</llo_original>
